<compile_context>
chip_gen: v5e
topology: v5e:2x2
jax: 0.10.0
libtpu: 0.0.40
codegen_flags: <defaults>
</compile_context>

<pallas_src>
import functools

import jax
import jax.numpy as jnp
from jax.experimental import pallas as pl
from jax.experimental.pallas import tpu as pltpu

_VMEM_LIMIT = 32 * 1024 * 1024


def _im2col_3x3(ref, H, W, C):
    """(1, H+2, W+2, C) zero-padded ref -> (H*W, 9*C) patch matrix (f32)."""
    cols = []
    for dy in range(3):
        for dx in range(3):
            cols.append(ref[:, dy:dy + H, dx:dx + W, :].reshape(H * W, C))
    return jnp.concatenate(cols, axis=-1)


# ---------------------------------------------------------------------------
# Kernel 1: head Conv3x3 + n ResBlocks + trailing ReLU (fully fused in VMEM).
# ---------------------------------------------------------------------------
def _head_res_kernel(xp_ref, w0_ref, b0_ref, rw1_ref, rb1_ref, rw2_ref,
                     rb2_ref, o_ref, hpad_ref, *, H, W, n_res):
    Cin = xp_ref.shape[-1]
    Ch = o_ref.shape[-1]

    # Head conv: single im2col matmul, bf16 operands, f32 accumulation.
    patches = _im2col_3x3(xp_ref, H, W, Cin).astype(jnp.bfloat16)
    cur = jnp.dot(patches, w0_ref[...],
                  preferred_element_type=jnp.float32) + b0_ref[...]

    # Residual blocks.  NOTE: nn.ReLU(inplace=True) rectifies the block input
    # in place in PyTorch, so the residual add uses relu(input).
    hpad_ref[...] = jnp.zeros_like(hpad_ref)          # zero the border once
    for i in range(n_res):
        a = jnp.maximum(cur, 0.0)                     # relu'd input == skip
        hpad_ref[:, 1:H + 1, 1:W + 1, :] = a.reshape(1, H, W, Ch)
        p = _im2col_3x3(hpad_ref, H, W, Ch).astype(jnp.bfloat16)
        t = jnp.dot(p, rw1_ref[i],
                    preferred_element_type=jnp.float32) + rb1_ref[i]
        t = jnp.maximum(t, 0.0).astype(jnp.bfloat16)
        d = jnp.dot(t, rw2_ref[i],
                    preferred_element_type=jnp.float32) + rb2_ref[i]
        cur = a + d

    out = jnp.maximum(cur, 0.0)                       # Decoder's trailing ReLU
    # Emit the feature map already zero-padded for the first transposed conv.
    o_ref[...] = jnp.zeros_like(o_ref)
    o_ref[:, 1:H + 1, 1:W + 1, :] = out.reshape(1, H, W, Ch)


def _head_res_call(xp, w0, b0, rw1, rb1, rw2, rb2, *, H, W, Ch, n_res):
    N, _, _, Cin = xp.shape
    Cr = rw1.shape[-1]
    kernel = functools.partial(_head_res_kernel, H=H, W=W, n_res=n_res)
    return pl.pallas_call(
        kernel,
        out_shape=jax.ShapeDtypeStruct((N, H + 2, W + 2, Ch), jnp.float32),
        grid=(N,),
        in_specs=[
            pl.BlockSpec((1, H + 2, W + 2, Cin), lambda n: (n, 0, 0, 0)),
            pl.BlockSpec((9 * Cin, Ch), lambda n: (0, 0)),
            pl.BlockSpec((1, Ch), lambda n: (0, 0)),
            pl.BlockSpec((n_res, 9 * Ch, Cr), lambda n: (0, 0, 0)),
            pl.BlockSpec((n_res, 1, Cr), lambda n: (0, 0, 0)),
            pl.BlockSpec((n_res, Cr, Ch), lambda n: (0, 0, 0)),
            pl.BlockSpec((n_res, 1, Ch), lambda n: (0, 0, 0)),
        ],
        out_specs=pl.BlockSpec((1, H + 2, W + 2, Ch), lambda n: (n, 0, 0, 0)),
        scratch_shapes=[pltpu.VMEM((1, H + 2, W + 2, Ch), jnp.float32)],
        compiler_params=pltpu.CompilerParams(
            dimension_semantics=("parallel",),
            vmem_limit_bytes=_VMEM_LIMIT),
    )(xp, w0, b0, rw1, rb1, rw2, rb2)


# ---------------------------------------------------------------------------
# Kernel 2: ConvTranspose2d(k=4, stride=2, pad=1) as 4 polyphase matmuls.
# ---------------------------------------------------------------------------
_KTAP = ((3, 1), (2, 0))   # polyphase tap -> original 4-tap index, per parity


def _convT_kernel(xp_ref, w_ref, b_ref, o_ref, *, H, W, apply_relu):
    Cin = xp_ref.shape[-1]
    Cout = o_ref.shape[-1]
    for r in range(2):
        for s in range(2):
            cols = []
            for p in range(2):
                for q in range(2):
                    cols.append(xp_ref[:, r + p:r + p + H,
                                       s + q:s + q + W, :].reshape(H * W, Cin))
            patch = jnp.concatenate(cols, axis=-1).astype(jnp.bfloat16)
            y = jnp.dot(patch, w_ref[2 * r + s],
                        preferred_element_type=jnp.float32) + b_ref[...]
            if apply_relu:
                y = jnp.maximum(y, 0.0)
            k = 2 * r + s
            o_ref[:, k * H:(k + 1) * H, :, :] = y.reshape(1, H, W, Cout)


def _convT_call(xp, w_sub, b, *, H, W, Cout, apply_relu):
    N, _, _, Cin = xp.shape
    kernel = functools.partial(_convT_kernel, H=H, W=W, apply_relu=apply_relu)
    return pl.pallas_call(
        kernel,
        out_shape=jax.ShapeDtypeStruct((N, 4 * H, W, Cout), jnp.float32),
        grid=(N,),
        in_specs=[
            pl.BlockSpec((1, H + 2, W + 2, Cin), lambda n: (n, 0, 0, 0)),
            pl.BlockSpec((4, 4 * Cin, Cout), lambda n: (0, 0, 0)),
            pl.BlockSpec((1, Cout), lambda n: (0, 0)),
        ],
        out_specs=pl.BlockSpec((1, 4 * H, W, Cout), lambda n: (n, 0, 0, 0)),
        compiler_params=pltpu.CompilerParams(
            dimension_semantics=("parallel",),
            vmem_limit_bytes=_VMEM_LIMIT),
    )(xp, w_sub, b)


def _convT_subweights(wt):
    """PyTorch ConvTranspose2d weight (Cin, Cout, 4, 4) ->
    (4, 4*Cin, Cout) polyphase im2col weights (phase k = 2*r + s)."""
    mats = []
    for r in range(2):
        for s in range(2):
            taps = []
            for p in range(2):
                for q in range(2):
                    taps.append(wt[:, :, _KTAP[r][p], _KTAP[s][q]])  # (Cin,Cout)
            mats.append(jnp.concatenate(taps, axis=0))               # (4Cin,Cout)
    return jnp.stack(mats, axis=0)


# ---------------------------------------------------------------------------
# Decoder forward (wrapper).
# ---------------------------------------------------------------------------
def decoder_forward(x_nchw, params, *, stride):
    """Decoder.forward.  x_nchw: (N, in_channel, H, W) float32 -> NCHW out."""
    N, Cin, H, W = x_nchw.shape
    Ch = params["head_w"].shape[-1]
    n_res = params["res_w1"].shape[0]

    x = jnp.transpose(x_nchw, (0, 2, 3, 1)).astype(jnp.float32)   # NCHW->NHWC
    xp = jnp.pad(x, ((0, 0), (1, 1), (1, 1), (0, 0)))

    feat = _head_res_call(
        xp,
        params["head_w"].reshape(9 * Cin, Ch).astype(jnp.bfloat16),
        params["head_b"].reshape(1, Ch),
        params["res_w1"].reshape(n_res, 9 * Ch, -1).astype(jnp.bfloat16),
        params["res_b1"].reshape(n_res, 1, -1),
        params["res_w2"].astype(jnp.bfloat16),
        params["res_b2"].reshape(n_res, 1, -1),
        H=H, W=W, Ch=Ch, n_res=n_res)
    # feat: (N, H+2, W+2, Ch), zero border -> directly consumable by convT.

    n_up = {2: 1, 4: 2, 8: 3}[stride]
    cur, curH, curW = feat, H, W
    for i in range(n_up):
        wt, b = params["up_w"][i], params["up_b"][i]
        Cout_i = wt.shape[1]
        last = i == n_up - 1
        o = _convT_call(cur, _convT_subweights(wt).astype(jnp.bfloat16),
                        b.reshape(1, Cout_i),
                        H=curH, W=curW, Cout=Cout_i, apply_relu=not last)
        # Interleave the 4 polyphases: (N, 4*H, W, C) -> (N, 2H, 2W, C).
        o = o.reshape(N, 2, 2, curH, curW, Cout_i)
        o = jnp.transpose(o, (0, 3, 1, 4, 2, 5)).reshape(
            N, 2 * curH, 2 * curW, Cout_i)
        curH, curW = 2 * curH, 2 * curW
        if not last:
            o = jnp.pad(o, ((0, 0), (1, 1), (1, 1), (0, 0)))
        cur = o
    return jnp.transpose(cur, (0, 3, 1, 2))                        # NHWC->NCHW


# ----------------------- pure-JAX reference (for checking) -----------------
def _ref_decoder(x_nchw, params, *, stride):
    x = jnp.transpose(x_nchw, (0, 2, 3, 1))

    def conv3x3(h, w_hwio, b):
        return jax.lax.conv_general_dilated(
            h, w_hwio, (1, 1), "SAME",
            dimension_numbers=("NHWC", "HWIO", "NHWC")) + b

    def conv_t(h, wt, b):   # wt: (Cin, Cout, 4, 4), PyTorch ConvTranspose2d
        w_hwio = jnp.transpose(wt[:, :, ::-1, ::-1], (2, 3, 0, 1))
        return jax.lax.conv_general_dilated(
            h, w_hwio, (1, 1), [(2, 2), (2, 2)], lhs_dilation=(2, 2),
            dimension_numbers=("NHWC", "HWIO", "NHWC")) + b

    h = conv3x3(x, params["head_w"], params["head_b"])
    for i in range(params["res_w1"].shape[0]):
        a = jnp.maximum(h, 0.0)      # inplace ReLU rectifies the skip too
        t = jnp.maximum(conv3x3(a, params["res_w1"][i], params["res_b1"][i]),
                        0.0)
        h = a + jnp.einsum("nhwc,cd->nhwd", t,
                           params["res_w2"][i]) + params["res_b2"][i]
    h = jnp.maximum(h, 0.0)
    n_up = {2: 1, 4: 2, 8: 3}[stride]
    for i in range(n_up):
        h = conv_t(h, params["up_w"][i], params["up_b"][i])
        if i != n_up - 1:
            h = jnp.maximum(h, 0.0)
    return jnp.transpose(h, (0, 3, 1, 2))


if __name__ == "__main__":
    N, in_ch, H, W = 2, 4, 16, 16
    channel, n_res_block, n_res_channel = 32, 2, 8
    out_ch, stride = 3, 4            # stride=4 branch: ConvT -> ReLU -> ConvT

    keys = jax.random.split(jax.random.PRNGKey(0), 11)

    def nrm(k, shape, scale=0.1):
        return scale * jax.random.normal(k, shape, dtype=jnp.float32)

    params = {
        "head_w": nrm(keys[0], (3, 3, in_ch, channel)),          # HWIO
        "head_b": nrm(keys[1], (channel,)),
        "res_w1": nrm(keys[2], (n_res_block, 3, 3, channel, n_res_channel)),
        "res_b1": nrm(keys[3], (n_res_block, n_res_channel)),
        "res_w2": nrm(keys[4], (n_res_block, n_res_channel, channel)),
        "res_b2": nrm(keys[5], (n_res_block, channel)),
        "up_w": [nrm(keys[6], (channel, channel // 2, 4, 4)),    # torch layout
                 nrm(keys[7], (channel // 2, out_ch, 4, 4))],
        "up_b": [nrm(keys[8], (channel // 2,)),
                 nrm(keys[9], (out_ch,))],
    }
    x = jax.random.normal(keys[10], (N, in_ch, H, W), dtype=jnp.float32)

    out = jax.block_until_ready(decoder_forward(x, params, stride=stride))
    ref = jax.block_until_ready(_ref_decoder(x, params, stride=stride))

    assert out.shape == (N, out_ch, H * stride, W * stride), out.shape
    err = float(jnp.max(jnp.abs(out - ref)))
    # bf16 MXU operands (f32 accumulation) -> loosened tolerance vs f32 ref.
    assert jnp.allclose(out, ref, atol=5e-2, rtol=5e-2), f"max abs err {err}"
    print("KERNEL_OK")
</pallas_src>

<mosaic_0001>
module attributes {stable_mosaic.version = 11 : i64} {
  func.func @_head_res_kernel(%arg0: i32, %arg1: memref<1x18x18x4xf32, #tpu.memory_space<vmem>>, %arg2: memref<36x32xbf16, #tpu.memory_space<vmem>>, %arg3: memref<1x32xf32, #tpu.memory_space<vmem>>, %arg4: memref<2x288x8xbf16, #tpu.memory_space<vmem>>, %arg5: memref<2x1x8xf32, #tpu.memory_space<vmem>>, %arg6: memref<2x8x32xbf16, #tpu.memory_space<vmem>>, %arg7: memref<2x1x32xf32, #tpu.memory_space<vmem>>, %arg8: memref<1x18x18x32xf32, #tpu.memory_space<vmem>>, %arg9: memref<1x18x18x32xf32, #tpu.memory_space<vmem>>) attributes {dimension_semantics = [#tpu.dimension_semantics<parallel>], iteration_bounds = array<i64: 2>, scalar_prefetch = 0 : i64, scratch_operands = 1 : i64, tpu.core_type = #tpu.core_type<tc>, window_params = [{transform_indices = @transform_0, window_bounds = array<i64: 1, 18, 18, 4>}, {pipeline_mode = #tpu.pipeline_mode<synchronous>, transform_indices = @transform_1, window_bounds = array<i64: 36, 32>}, {pipeline_mode = #tpu.pipeline_mode<synchronous>, transform_indices = @transform_2, window_bounds = array<i64: 1, 32>}, {pipeline_mode = #tpu.pipeline_mode<synchronous>, transform_indices = @transform_3, window_bounds = array<i64: 2, 288, 8>}, {pipeline_mode = #tpu.pipeline_mode<synchronous>, transform_indices = @transform_4, window_bounds = array<i64: 2, 1, 8>}, {pipeline_mode = #tpu.pipeline_mode<synchronous>, transform_indices = @transform_5, window_bounds = array<i64: 2, 8, 32>}, {pipeline_mode = #tpu.pipeline_mode<synchronous>, transform_indices = @transform_6, window_bounds = array<i64: 2, 1, 32>}, {transform_indices = @transform_7, window_bounds = array<i64: 1, 18, 18, 32>}]} {
    %c0 = arith.constant 0 : index
    %c0_0 = arith.constant 0 : index
    %c0_1 = arith.constant 0 : index
    %c0_2 = arith.constant 0 : index
    %0 = vector.load %arg1[%c0, %c0_0, %c0_1, %c0_2] : memref<1x18x18x4xf32, #tpu.memory_space<vmem>>, vector<1x16x16x4xf32>
    %1 = vector.shape_cast %0 : vector<1x16x16x4xf32> to vector<256x4xf32>
    %c0_3 = arith.constant 0 : index
    %c0_4 = arith.constant 0 : index
    %c1 = arith.constant 1 : index
    %c0_5 = arith.constant 0 : index
    %2 = vector.load %arg1[%c0_3, %c0_4, %c1, %c0_5] : memref<1x18x18x4xf32, #tpu.memory_space<vmem>>, vector<1x16x16x4xf32>
    %3 = vector.shape_cast %2 : vector<1x16x16x4xf32> to vector<256x4xf32>
    %c0_6 = arith.constant 0 : index
    %c0_7 = arith.constant 0 : index
    %c2 = arith.constant 2 : index
    %c0_8 = arith.constant 0 : index
    %4 = vector.load %arg1[%c0_6, %c0_7, %c2, %c0_8] : memref<1x18x18x4xf32, #tpu.memory_space<vmem>>, vector<1x16x16x4xf32>
    %5 = vector.shape_cast %4 : vector<1x16x16x4xf32> to vector<256x4xf32>
    %c0_9 = arith.constant 0 : index
    %c1_10 = arith.constant 1 : index
    %c0_11 = arith.constant 0 : index
    %c0_12 = arith.constant 0 : index
    %6 = vector.load %arg1[%c0_9, %c1_10, %c0_11, %c0_12] : memref<1x18x18x4xf32, #tpu.memory_space<vmem>>, vector<1x16x16x4xf32>
    %7 = vector.shape_cast %6 : vector<1x16x16x4xf32> to vector<256x4xf32>
    %c0_13 = arith.constant 0 : index
    %c1_14 = arith.constant 1 : index
    %c1_15 = arith.constant 1 : index
    %c0_16 = arith.constant 0 : index
    %8 = vector.load %arg1[%c0_13, %c1_14, %c1_15, %c0_16] : memref<1x18x18x4xf32, #tpu.memory_space<vmem>>, vector<1x16x16x4xf32>
    %9 = vector.shape_cast %8 : vector<1x16x16x4xf32> to vector<256x4xf32>
    %c0_17 = arith.constant 0 : index
    %c1_18 = arith.constant 1 : index
    %c2_19 = arith.constant 2 : index
    %c0_20 = arith.constant 0 : index
    %10 = vector.load %arg1[%c0_17, %c1_18, %c2_19, %c0_20] : memref<1x18x18x4xf32, #tpu.memory_space<vmem>>, vector<1x16x16x4xf32>
    %11 = vector.shape_cast %10 : vector<1x16x16x4xf32> to vector<256x4xf32>
    %c0_21 = arith.constant 0 : index
    %c2_22 = arith.constant 2 : index
    %c0_23 = arith.constant 0 : index
    %c0_24 = arith.constant 0 : index
    %12 = vector.load %arg1[%c0_21, %c2_22, %c0_23, %c0_24] : memref<1x18x18x4xf32, #tpu.memory_space<vmem>>, vector<1x16x16x4xf32>
    %13 = vector.shape_cast %12 : vector<1x16x16x4xf32> to vector<256x4xf32>
    %c0_25 = arith.constant 0 : index
    %c2_26 = arith.constant 2 : index
    %c1_27 = arith.constant 1 : index
    %c0_28 = arith.constant 0 : index
    %14 = vector.load %arg1[%c0_25, %c2_26, %c1_27, %c0_28] : memref<1x18x18x4xf32, #tpu.memory_space<vmem>>, vector<1x16x16x4xf32>
    %15 = vector.shape_cast %14 : vector<1x16x16x4xf32> to vector<256x4xf32>
    %c0_29 = arith.constant 0 : index
    %c2_30 = arith.constant 2 : index
    %c2_31 = arith.constant 2 : index
    %c0_32 = arith.constant 0 : index
    %16 = vector.load %arg1[%c0_29, %c2_30, %c2_31, %c0_32] : memref<1x18x18x4xf32, #tpu.memory_space<vmem>>, vector<1x16x16x4xf32>
    %17 = vector.shape_cast %16 : vector<1x16x16x4xf32> to vector<256x4xf32>
    %18 = tpu.concatenate %1, %3, %5, %7, %9, %11, %13, %15, %17 in 1 : vector<256x4xf32>, vector<256x4xf32>, vector<256x4xf32>, vector<256x4xf32>, vector<256x4xf32>, vector<256x4xf32>, vector<256x4xf32>, vector<256x4xf32>, vector<256x4xf32> -> vector<256x36xf32>
    %19 = arith.truncf %18 : vector<256x36xf32> to vector<256x36xbf16>
    %c0_33 = arith.constant 0 : index
    %c0_34 = arith.constant 0 : index
    %20 = vector.load %arg2[%c0_33, %c0_34] : memref<36x32xbf16, #tpu.memory_space<vmem>>, vector<36x32xbf16>
    %cst = arith.constant dense<0.000000e+00> : vector<256x32xf32>
    %21 = tpu.matmul %19, %20, %cst {dimension_numbers = #tpu.dot_dimension_numbers<[1], [0], [0], [1], [0, 0, 1, 1], [], []>} : vector<256x36xbf16>, vector<36x32xbf16>, vector<256x32xf32> -> vector<256x32xf32>
    %c0_35 = arith.constant 0 : index
    %c0_36 = arith.constant 0 : index
    %22 = vector.load %arg3[%c0_35, %c0_36] : memref<1x32xf32, #tpu.memory_space<vmem>>, vector<1x32xf32>
    %23 = vector.broadcast %22 : vector<1x32xf32> to vector<256x32xf32>
    %24 = arith.addf %21, %23 : vector<256x32xf32>
    %cst_37 = arith.constant 0.000000e+00 : f32
    %25 = vector.broadcast %cst_37 : f32 to vector<1x18x18x32xf32>
    %c0_38 = arith.constant 0 : index
    %c0_39 = arith.constant 0 : index
    %c0_40 = arith.constant 0 : index
    %c0_41 = arith.constant 0 : index
    %26 = vector.load %arg9[%c0_38, %c0_39, %c0_40, %c0_41] : memref<1x18x18x32xf32, #tpu.memory_space<vmem>>, vector<1x18x18x32xf32>
    tpu.vector_store %arg9[%c0_38, %c0_39, %c0_40, %c0_41], %25 {strides = array<i32>} : memref<1x18x18x32xf32, #tpu.memory_space<vmem>>, vector<1x18x18x32xf32>,
    %cst_42 = arith.constant 0.000000e+00 : f32
    %27 = vector.broadcast %cst_42 : f32 to vector<256x32xf32>
    %28 = arith.maximumf %24, %27 : vector<256x32xf32>
    %29 = vector.shape_cast %28 : vector<256x32xf32> to vector<1x16x16x32xf32>
    %c0_43 = arith.constant 0 : index
    %c1_44 = arith.constant 1 : index
    %c1_45 = arith.constant 1 : index
    %c0_46 = arith.constant 0 : index
    %30 = vector.load %arg9[%c0_43, %c1_44, %c1_45, %c0_46] : memref<1x18x18x32xf32, #tpu.memory_space<vmem>>, vector<1x16x16x32xf32>
    tpu.vector_store %arg9[%c0_43, %c1_44, %c1_45, %c0_46], %29 {strides = array<i32>} : memref<1x18x18x32xf32, #tpu.memory_space<vmem>>, vector<1x16x16x32xf32>,
    %c0_47 = arith.constant 0 : index
    %c0_48 = arith.constant 0 : index
    %c0_49 = arith.constant 0 : index
    %c0_50 = arith.constant 0 : index
    %31 = vector.load %arg9[%c0_47, %c0_48, %c0_49, %c0_50] : memref<1x18x18x32xf32, #tpu.memory_space<vmem>>, vector<1x16x16x32xf32>
    %32 = vector.shape_cast %31 : vector<1x16x16x32xf32> to vector<256x32xf32>
    %c0_51 = arith.constant 0 : index
    %c0_52 = arith.constant 0 : index
    %c1_53 = arith.constant 1 : index
    %c0_54 = arith.constant 0 : index
    %33 = vector.load %arg9[%c0_51, %c0_52, %c1_53, %c0_54] : memref<1x18x18x32xf32, #tpu.memory_space<vmem>>, vector<1x16x16x32xf32>
    %34 = vector.shape_cast %33 : vector<1x16x16x32xf32> to vector<256x32xf32>
    %c0_55 = arith.constant 0 : index
    %c0_56 = arith.constant 0 : index
    %c2_57 = arith.constant 2 : index
    %c0_58 = arith.constant 0 : index
    %35 = vector.load %arg9[%c0_55, %c0_56, %c2_57, %c0_58] : memref<1x18x18x32xf32, #tpu.memory_space<vmem>>, vector<1x16x16x32xf32>
    %36 = vector.shape_cast %35 : vector<1x16x16x32xf32> to vector<256x32xf32>
    %c0_59 = arith.constant 0 : index
    %c1_60 = arith.constant 1 : index
    %c0_61 = arith.constant 0 : index
    %c0_62 = arith.constant 0 : index
    %37 = vector.load %arg9[%c0_59, %c1_60, %c0_61, %c0_62] : memref<1x18x18x32xf32, #tpu.memory_space<vmem>>, vector<1x16x16x32xf32>
    %38 = vector.shape_cast %37 : vector<1x16x16x32xf32> to vector<256x32xf32>
    %c0_63 = arith.constant 0 : index
    %c1_64 = arith.constant 1 : index
    %c1_65 = arith.constant 1 : index
    %c0_66 = arith.constant 0 : index
    %39 = vector.load %arg9[%c0_63, %c1_64, %c1_65, %c0_66] : memref<1x18x18x32xf32, #tpu.memory_space<vmem>>, vector<1x16x16x32xf32>
    %40 = vector.shape_cast %39 : vector<1x16x16x32xf32> to vector<256x32xf32>
    %c0_67 = arith.constant 0 : index
    %c1_68 = arith.constant 1 : index
    %c2_69 = arith.constant 2 : index
    %c0_70 = arith.constant 0 : index
    %41 = vector.load %arg9[%c0_67, %c1_68, %c2_69, %c0_70] : memref<1x18x18x32xf32, #tpu.memory_space<vmem>>, vector<1x16x16x32xf32>
    %42 = vector.shape_cast %41 : vector<1x16x16x32xf32> to vector<256x32xf32>
    %c0_71 = arith.constant 0 : index
    %c2_72 = arith.constant 2 : index
    %c0_73 = arith.constant 0 : index
    %c0_74 = arith.constant 0 : index
    %43 = vector.load %arg9[%c0_71, %c2_72, %c0_73, %c0_74] : memref<1x18x18x32xf32, #tpu.memory_space<vmem>>, vector<1x16x16x32xf32>
    %44 = vector.shape_cast %43 : vector<1x16x16x32xf32> to vector<256x32xf32>
    %c0_75 = arith.constant 0 : index
    %c2_76 = arith.constant 2 : index
    %c1_77 = arith.constant 1 : index
    %c0_78 = arith.constant 0 : index
    %45 = vector.load %arg9[%c0_75, %c2_76, %c1_77, %c0_78] : memref<1x18x18x32xf32, #tpu.memory_space<vmem>>, vector<1x16x16x32xf32>
    %46 = vector.shape_cast %45 : vector<1x16x16x32xf32> to vector<256x32xf32>
    %c0_79 = arith.constant 0 : index
    %c2_80 = arith.constant 2 : index
    %c2_81 = arith.constant 2 : index
    %c0_82 = arith.constant 0 : index
    %47 = vector.load %arg9[%c0_79, %c2_80, %c2_81, %c0_82] : memref<1x18x18x32xf32, #tpu.memory_space<vmem>>, vector<1x16x16x32xf32>
    %48 = vector.shape_cast %47 : vector<1x16x16x32xf32> to vector<256x32xf32>
    %49 = tpu.concatenate %32, %34, %36, %38, %40, %42, %44, %46, %48 in 1 : vector<256x32xf32>, vector<256x32xf32>, vector<256x32xf32>, vector<256x32xf32>, vector<256x32xf32>, vector<256x32xf32>, vector<256x32xf32>, vector<256x32xf32>, vector<256x32xf32> -> vector<256x288xf32>
    %50 = arith.truncf %49 : vector<256x288xf32> to vector<256x288xbf16>
    %c0_83 = arith.constant 0 : index
    %c0_84 = arith.constant 0 : index
    %c0_85 = arith.constant 0 : index
    %51 = vector.load %arg4[%c0_83, %c0_84, %c0_85] : memref<2x288x8xbf16, #tpu.memory_space<vmem>>, vector<1x288x8xbf16>
    %52 = vector.shape_cast %51 : vector<1x288x8xbf16> to vector<288x8xbf16>
    %cst_86 = arith.constant dense<0.000000e+00> : vector<256x8xf32>
    %53 = tpu.matmul %50, %52, %cst_86 {dimension_numbers = #tpu.dot_dimension_numbers<[1], [0], [0], [1], [0, 0, 1, 1], [], []>} : vector<256x288xbf16>, vector<288x8xbf16>, vector<256x8xf32> -> vector<256x8xf32>
    %c0_87 = arith.constant 0 : index
    %c0_88 = arith.constant 0 : index
    %c0_89 = arith.constant 0 : index
    %54 = vector.load %arg5[%c0_87, %c0_88, %c0_89] : memref<2x1x8xf32, #tpu.memory_space<vmem>>, vector<1x1x8xf32>
    %55 = vector.shape_cast %54 : vector<1x1x8xf32> to vector<1x8xf32>
    %56 = vector.broadcast %55 : vector<1x8xf32> to vector<256x8xf32>
    %57 = arith.addf %53, %56 : vector<256x8xf32>
    %cst_90 = arith.constant 0.000000e+00 : f32
    %58 = vector.broadcast %cst_90 : f32 to vector<256x8xf32>
    %59 = arith.maximumf %57, %58 : vector<256x8xf32>
    %60 = arith.truncf %59 : vector<256x8xf32> to vector<256x8xbf16>
    %c0_91 = arith.constant 0 : index
    %c0_92 = arith.constant 0 : index
    %c0_93 = arith.constant 0 : index
    %61 = vector.load %arg6[%c0_91, %c0_92, %c0_93] : memref<2x8x32xbf16, #tpu.memory_space<vmem>>, vector<1x8x32xbf16>
    %62 = vector.shape_cast %61 : vector<1x8x32xbf16> to vector<8x32xbf16>
    %cst_94 = arith.constant dense<0.000000e+00> : vector<256x32xf32>
    %63 = tpu.matmul %60, %62, %cst_94 {dimension_numbers = #tpu.dot_dimension_numbers<[1], [0], [0], [1], [0, 0, 1, 1], [], []>} : vector<256x8xbf16>, vector<8x32xbf16>, vector<256x32xf32> -> vector<256x32xf32>
    %c0_95 = arith.constant 0 : index
    %c0_96 = arith.constant 0 : index
    %c0_97 = arith.constant 0 : index
    %64 = vector.load %arg7[%c0_95, %c0_96, %c0_97] : memref<2x1x32xf32, #tpu.memory_space<vmem>>, vector<1x1x32xf32>
    %65 = vector.shape_cast %64 : vector<1x1x32xf32> to vector<1x32xf32>
    %66 = vector.broadcast %65 : vector<1x32xf32> to vector<256x32xf32>
    %67 = arith.addf %63, %66 : vector<256x32xf32>
    %68 = arith.addf %28, %67 : vector<256x32xf32>
    %cst_98 = arith.constant 0.000000e+00 : f32
    %69 = vector.broadcast %cst_98 : f32 to vector<256x32xf32>
    %70 = arith.maximumf %68, %69 : vector<256x32xf32>
    %71 = vector.shape_cast %70 : vector<256x32xf32> to vector<1x16x16x32xf32>
    %c0_99 = arith.constant 0 : index
    %c1_100 = arith.constant 1 : index
    %c1_101 = arith.constant 1 : index
    %c0_102 = arith.constant 0 : index
    %72 = vector.load %arg9[%c0_99, %c1_100, %c1_101, %c0_102] : memref<1x18x18x32xf32, #tpu.memory_space<vmem>>, vector<1x16x16x32xf32>
    tpu.vector_store %arg9[%c0_99, %c1_100, %c1_101, %c0_102], %71 {strides = array<i32>} : memref<1x18x18x32xf32, #tpu.memory_space<vmem>>, vector<1x16x16x32xf32>,
    %c0_103 = arith.constant 0 : index
    %c0_104 = arith.constant 0 : index
    %c0_105 = arith.constant 0 : index
    %c0_106 = arith.constant 0 : index
    %73 = vector.load %arg9[%c0_103, %c0_104, %c0_105, %c0_106] : memref<1x18x18x32xf32, #tpu.memory_space<vmem>>, vector<1x16x16x32xf32>
    %74 = vector.shape_cast %73 : vector<1x16x16x32xf32> to vector<256x32xf32>
    %c0_107 = arith.constant 0 : index
    %c0_108 = arith.constant 0 : index
    %c1_109 = arith.constant 1 : index
    %c0_110 = arith.constant 0 : index
    %75 = vector.load %arg9[%c0_107, %c0_108, %c1_109, %c0_110] : memref<1x18x18x32xf32, #tpu.memory_space<vmem>>, vector<1x16x16x32xf32>
    %76 = vector.shape_cast %75 : vector<1x16x16x32xf32> to vector<256x32xf32>
    %c0_111 = arith.constant 0 : index
    %c0_112 = arith.constant 0 : index
    %c2_113 = arith.constant 2 : index
    %c0_114 = arith.constant 0 : index
    %77 = vector.load %arg9[%c0_111, %c0_112, %c2_113, %c0_114] : memref<1x18x18x32xf32, #tpu.memory_space<vmem>>, vector<1x16x16x32xf32>
    %78 = vector.shape_cast %77 : vector<1x16x16x32xf32> to vector<256x32xf32>
    %c0_115 = arith.constant 0 : index
    %c1_116 = arith.constant 1 : index
    %c0_117 = arith.constant 0 : index
    %c0_118 = arith.constant 0 : index
    %79 = vector.load %arg9[%c0_115, %c1_116, %c0_117, %c0_118] : memref<1x18x18x32xf32, #tpu.memory_space<vmem>>, vector<1x16x16x32xf32>
    %80 = vector.shape_cast %79 : vector<1x16x16x32xf32> to vector<256x32xf32>
    %c0_119 = arith.constant 0 : index
    %c1_120 = arith.constant 1 : index
    %c1_121 = arith.constant 1 : index
    %c0_122 = arith.constant 0 : index
    %81 = vector.load %arg9[%c0_119, %c1_120, %c1_121, %c0_122] : memref<1x18x18x32xf32, #tpu.memory_space<vmem>>, vector<1x16x16x32xf32>
    %82 = vector.shape_cast %81 : vector<1x16x16x32xf32> to vector<256x32xf32>
    %c0_123 = arith.constant 0 : index
    %c1_124 = arith.constant 1 : index
    %c2_125 = arith.constant 2 : index
    %c0_126 = arith.constant 0 : index
    %83 = vector.load %arg9[%c0_123, %c1_124, %c2_125, %c0_126] : memref<1x18x18x32xf32, #tpu.memory_space<vmem>>, vector<1x16x16x32xf32>
    %84 = vector.shape_cast %83 : vector<1x16x16x32xf32> to vector<256x32xf32>
    %c0_127 = arith.constant 0 : index
    %c2_128 = arith.constant 2 : index
    %c0_129 = arith.constant 0 : index
    %c0_130 = arith.constant 0 : index
    %85 = vector.load %arg9[%c0_127, %c2_128, %c0_129, %c0_130] : memref<1x18x18x32xf32, #tpu.memory_space<vmem>>, vector<1x16x16x32xf32>
    %86 = vector.shape_cast %85 : vector<1x16x16x32xf32> to vector<256x32xf32>
    %c0_131 = arith.constant 0 : index
    %c2_132 = arith.constant 2 : index
    %c1_133 = arith.constant 1 : index
    %c0_134 = arith.constant 0 : index
    %87 = vector.load %arg9[%c0_131, %c2_132, %c1_133, %c0_134] : memref<1x18x18x32xf32, #tpu.memory_space<vmem>>, vector<1x16x16x32xf32>
    %88 = vector.shape_cast %87 : vector<1x16x16x32xf32> to vector<256x32xf32>
    %c0_135 = arith.constant 0 : index
    %c2_136 = arith.constant 2 : index
    %c2_137 = arith.constant 2 : index
    %c0_138 = arith.constant 0 : index
    %89 = vector.load %arg9[%c0_135, %c2_136, %c2_137, %c0_138] : memref<1x18x18x32xf32, #tpu.memory_space<vmem>>, vector<1x16x16x32xf32>
    %90 = vector.shape_cast %89 : vector<1x16x16x32xf32> to vector<256x32xf32>
    %91 = tpu.concatenate %74, %76, %78, %80, %82, %84, %86, %88, %90 in 1 : vector<256x32xf32>, vector<256x32xf32>, vector<256x32xf32>, vector<256x32xf32>, vector<256x32xf32>, vector<256x32xf32>, vector<256x32xf32>, vector<256x32xf32>, vector<256x32xf32> -> vector<256x288xf32>
    %92 = arith.truncf %91 : vector<256x288xf32> to vector<256x288xbf16>
    %c1_139 = arith.constant 1 : index
    %c0_140 = arith.constant 0 : index
    %c0_141 = arith.constant 0 : index
    %93 = vector.load %arg4[%c1_139, %c0_140, %c0_141] : memref<2x288x8xbf16, #tpu.memory_space<vmem>>, vector<1x288x8xbf16>
    %94 = vector.shape_cast %93 : vector<1x288x8xbf16> to vector<288x8xbf16>
    %cst_142 = arith.constant dense<0.000000e+00> : vector<256x8xf32>
    %95 = tpu.matmul %92, %94, %cst_142 {dimension_numbers = #tpu.dot_dimension_numbers<[1], [0], [0], [1], [0, 0, 1, 1], [], []>} : vector<256x288xbf16>, vector<288x8xbf16>, vector<256x8xf32> -> vector<256x8xf32>
    %c1_143 = arith.constant 1 : index
    %c0_144 = arith.constant 0 : index
    %c0_145 = arith.constant 0 : index
    %96 = vector.load %arg5[%c1_143, %c0_144, %c0_145] : memref<2x1x8xf32, #tpu.memory_space<vmem>>, vector<1x1x8xf32>
    %97 = vector.shape_cast %96 : vector<1x1x8xf32> to vector<1x8xf32>
    %98 = vector.broadcast %97 : vector<1x8xf32> to vector<256x8xf32>
    %99 = arith.addf %95, %98 : vector<256x8xf32>
    %cst_146 = arith.constant 0.000000e+00 : f32
    %100 = vector.broadcast %cst_146 : f32 to vector<256x8xf32>
    %101 = arith.maximumf %99, %100 : vector<256x8xf32>
    %102 = arith.truncf %101 : vector<256x8xf32> to vector<256x8xbf16>
    %c1_147 = arith.constant 1 : index
    %c0_148 = arith.constant 0 : index
    %c0_149 = arith.constant 0 : index
    %103 = vector.load %arg6[%c1_147, %c0_148, %c0_149] : memref<2x8x32xbf16, #tpu.memory_space<vmem>>, vector<1x8x32xbf16>
    %104 = vector.shape_cast %103 : vector<1x8x32xbf16> to vector<8x32xbf16>
    %cst_150 = arith.constant dense<0.000000e+00> : vector<256x32xf32>
    %105 = tpu.matmul %102, %104, %cst_150 {dimension_numbers = #tpu.dot_dimension_numbers<[1], [0], [0], [1], [0, 0, 1, 1], [], []>} : vector<256x8xbf16>, vector<8x32xbf16>, vector<256x32xf32> -> vector<256x32xf32>
    %c1_151 = arith.constant 1 : index
    %c0_152 = arith.constant 0 : index
    %c0_153 = arith.constant 0 : index
    %106 = vector.load %arg7[%c1_151, %c0_152, %c0_153] : memref<2x1x32xf32, #tpu.memory_space<vmem>>, vector<1x1x32xf32>
    %107 = vector.shape_cast %106 : vector<1x1x32xf32> to vector<1x32xf32>
    %108 = vector.broadcast %107 : vector<1x32xf32> to vector<256x32xf32>
    %109 = arith.addf %105, %108 : vector<256x32xf32>
    %110 = arith.addf %70, %109 : vector<256x32xf32>
    %cst_154 = arith.constant 0.000000e+00 : f32
    %111 = vector.broadcast %cst_154 : f32 to vector<256x32xf32>
    %112 = arith.maximumf %110, %111 : vector<256x32xf32>
    %cst_155 = arith.constant 0.000000e+00 : f32
    %113 = vector.broadcast %cst_155 : f32 to vector<1x18x18x32xf32>
    %c0_156 = arith.constant 0 : index
    %c0_157 = arith.constant 0 : index
    %c0_158 = arith.constant 0 : index
    %c0_159 = arith.constant 0 : index
    %114 = vector.load %arg8[%c0_156, %c0_157, %c0_158, %c0_159] : memref<1x18x18x32xf32, #tpu.memory_space<vmem>>, vector<1x18x18x32xf32>
    tpu.vector_store %arg8[%c0_156, %c0_157, %c0_158, %c0_159], %113 {strides = array<i32>} : memref<1x18x18x32xf32, #tpu.memory_space<vmem>>, vector<1x18x18x32xf32>,
    %115 = vector.shape_cast %112 : vector<256x32xf32> to vector<1x16x16x32xf32>
    %c0_160 = arith.constant 0 : index
    %c1_161 = arith.constant 1 : index
    %c1_162 = arith.constant 1 : index
    %c0_163 = arith.constant 0 : index
    %116 = vector.load %arg8[%c0_160, %c1_161, %c1_162, %c0_163] : memref<1x18x18x32xf32, #tpu.memory_space<vmem>>, vector<1x16x16x32xf32>
    tpu.vector_store %arg8[%c0_160, %c1_161, %c1_162, %c0_163], %115 {strides = array<i32>} : memref<1x18x18x32xf32, #tpu.memory_space<vmem>>, vector<1x16x16x32xf32>,
    return
  }
  func.func @transform_0(%arg0: i32) -> (i32, i32, i32, i32) {
    %c0_i32 = arith.constant 0 : i32
    %c0_i32_0 = arith.constant 0 : i32
    %c0_i32_1 = arith.constant 0 : i32
    %c0_i32_2 = arith.constant 0 : i32
    return %arg0, %c0_i32, %c0_i32_0, %c0_i32_1 : i32, i32, i32, i32
  }
  func.func @transform_1(%arg0: i32) -> (i32, i32) {
    %c0_i32 = arith.constant 0 : i32
    %c0_i32_0 = arith.constant 0 : i32
    %c0_i32_1 = arith.constant 0 : i32
    return %c0_i32, %c0_i32_0 : i32, i32
  }
  func.func @transform_2(%arg0: i32) -> (i32, i32) {
    %c0_i32 = arith.constant 0 : i32
    %c0_i32_0 = arith.constant 0 : i32
    %c0_i32_1 = arith.constant 0 : i32
    return %c0_i32, %c0_i32_0 : i32, i32
  }
  func.func @transform_3(%arg0: i32) -> (i32, i32, i32) {
    %c0_i32 = arith.constant 0 : i32
    %c0_i32_0 = arith.constant 0 : i32
    %c0_i32_1 = arith.constant 0 : i32
    %c0_i32_2 = arith.constant 0 : i32
    return %c0_i32, %c0_i32_0, %c0_i32_1 : i32, i32, i32
  }
  func.func @transform_4(%arg0: i32) -> (i32, i32, i32) {
    %c0_i32 = arith.constant 0 : i32
    %c0_i32_0 = arith.constant 0 : i32
    %c0_i32_1 = arith.constant 0 : i32
    %c0_i32_2 = arith.constant 0 : i32
    return %c0_i32, %c0_i32_0, %c0_i32_1 : i32, i32, i32
  }
  func.func @transform_5(%arg0: i32) -> (i32, i32, i32) {
    %c0_i32 = arith.constant 0 : i32
    %c0_i32_0 = arith.constant 0 : i32
    %c0_i32_1 = arith.constant 0 : i32
    %c0_i32_2 = arith.constant 0 : i32
    return %c0_i32, %c0_i32_0, %c0_i32_1 : i32, i32, i32
  }
  func.func @transform_6(%arg0: i32) -> (i32, i32, i32) {
    %c0_i32 = arith.constant 0 : i32
    %c0_i32_0 = arith.constant 0 : i32
    %c0_i32_1 = arith.constant 0 : i32
    %c0_i32_2 = arith.constant 0 : i32
    return %c0_i32, %c0_i32_0, %c0_i32_1 : i32, i32, i32
  }
  func.func @transform_7(%arg0: i32) -> (i32, i32, i32, i32) {
    %c0_i32 = arith.constant 0 : i32
    %c0_i32_0 = arith.constant 0 : i32
    %c0_i32_1 = arith.constant 0 : i32
    %c0_i32_2 = arith.constant 0 : i32
    return %arg0, %c0_i32, %c0_i32_0, %c0_i32_1 : i32, i32, i32, i32
  }
}

</mosaic_0001>

<llo_original>
// kernel: tpu_custom_call.1
$region0: #{tpu_custom_call.1}
  #allocation0 [shape = 'u32[]', space=smem, size = 0x4, offset = 0x4, fixed_abs, tag = 'smem constant byte address 0x4 - core index']
  #allocation1 [shape = 'u32[72,128]{1,0:T(1,128)}', space=vmem, size = 0x9000, scoped, tag = 'internal scratch']
  #allocation2 [shape = 'f32[1,18,18,32]{3,2,1,0:T(8,128)}', space=vmem, size = 0x36000, scoped, tag = 'scratch operand']
  %s0 = inlined_call_operand.vmem [shape: f32[2,18,18,4], index: 0, kind: input, shape index: {}]
  %s1 = inlined_call_operand.vmem [shape: bf16[36,32], index: 1, kind: input, shape index: {}]
  %s2 = inlined_call_operand.vmem [shape: f32[1,32], index: 2, kind: input, shape index: {}]
  %s3 = inlined_call_operand.vmem [shape: bf16[2,288,8], index: 3, kind: input, shape index: {}]
  %s4 = inlined_call_operand.vmem [shape: f32[2,1,8], index: 4, kind: input, shape index: {}]
  %s5 = inlined_call_operand.vmem [shape: bf16[2,8,32], index: 5, kind: input, shape index: {}]
  %s6 = inlined_call_operand.vmem [shape: f32[2,1,32], index: 6, kind: input, shape index: {}]
  %s7 = inlined_call_operand.vmem [shape: f32[2,18,18,32], index: 7, kind: output, shape index: {}]
  %s8 = sld [smem:[#allocation0]]
  $region61: #{tpu_custom_call.1} parent=0
    _
  %s10 = ssub.s32 1, %s8
  %s11 = scalar_select 0, %s10, %s8
  loop: start=0, step=1, limit=4
  $region2: #{tpu_custom_call.1} parent=0 // loop_pre_header
    _
  $region3: #{tpu_custom_call.1} parent=0 // loop_header
    %s13 = sphi 0, %s17
    %p14 = scmp.ge.s32.totalorder %s13, 4
    %s23 = sphi 0, %s25
    %s26 = sphi 0, %s23
    %s27 = sphi 0, %s26
    %s43 = sphi 0, %s27
    %s47 = sphi 0, %s47
    %s49 = sphi 0, %s47
    %s50 = sphi 0, %s49
    %s64 = sphi 0, %s50
    %s68 = sphi 0, %s68
    %s70 = sphi 0, %s68
    %s71 = sphi 0, %s70
    %s85 = sphi 0, %s71
    %s89 = sphi 0, %s89
    %s91 = sphi 0, %s89
    %s92 = sphi 0, %s91
    %s106 = sphi 0, %s92
    %s110 = sphi 0, %s110
    %s112 = sphi 0, %s110
    %s113 = sphi 0, %s112
    %s127 = sphi 0, %s113
    %s131 = sphi 0, %s131
    %s133 = sphi 0, %s131
    %s134 = sphi 0, %s133
    %s148 = sphi 0, %s134
    %s152 = sphi 0, %s152
    %s154 = sphi 0, %s152
    %s155 = sphi 0, %s154
    %s169 = sphi 0, %s155
    %s175 = sphi 0, %s177
    %s178 = sphi 0, %s175
    %s179 = sphi 0, %s178
    %s195 = sphi 0, %s179
  $region4: #{tpu_custom_call.1} parent=0 // loop_header_branch
    %16 = sbr.rel (%p14) target = $region8
  $region5: #{tpu_custom_call.1} parent=0 // loop_body
    %s18 = ssub.s32 %s13, 1
    %s19 = ssub.s32 %s13, 2
    %s20 = sadd.s32 %s13, 1
    %s21 = ssub.s32 %s13, %s20
    %p22 = scmp.eq.s32.totalorder %s21, 0
    %s24 = sadd.s32 %s23, 1
    %s25 = scalar_select %p22, %s23, %s24
    %p28 = pneg %p22
    %p29 = scmp.eq.s32.totalorder %s13, 1
    %p30 = por %p28, %p29
    %p31 = scmp.ne.s32.totalorder %s23, %s26
    %p32 = scmp.eq.s32.totalorder %s13, 0
    %p33 = por %p31, %p32
    %p34 = scmp.ne.s32.totalorder %s23, %s26
    %p35 = scmp.eq.s32.totalorder %s18, 1
    %p36 = por %p34, %p35
    %p37 = scmp.ne.s32.totalorder %s26, %s27
    %p38 = scmp.eq.s32.totalorder %s18, 0
    %p39 = por %p37, %p38
    %p40 = scmp.ne.s32.totalorder %s26, %s27
    %p41 = scmp.eq.s32.totalorder %s19, 1
    %p42 = por %p40, %p41
    %p44 = scmp.ne.s32.totalorder %s27, %s43
    %p45 = scmp.eq.s32.totalorder %s19, 0
    %p46 = por %p44, %p45
    %s48 = sadd.s32 %s47, 1
    %p51 = scmp.eq.s32.totalorder %s13, 1
    %p52 = scmp.ne.s32.totalorder %s47, %s49
    %p53 = scmp.eq.s32.totalorder %s13, 0
    %p54 = por %p52, %p53
    %p55 = scmp.ne.s32.totalorder %s47, %s49
    %p56 = scmp.eq.s32.totalorder %s18, 1
    %p57 = por %p55, %p56
    %p58 = scmp.ne.s32.totalorder %s49, %s50
    %p59 = scmp.eq.s32.totalorder %s18, 0
    %p60 = por %p58, %p59
    %p61 = scmp.ne.s32.totalorder %s49, %s50
    %p62 = scmp.eq.s32.totalorder %s19, 1
    %p63 = por %p61, %p62
    %p65 = scmp.ne.s32.totalorder %s50, %s64
    %p66 = scmp.eq.s32.totalorder %s19, 0
    %p67 = por %p65, %p66
    %s69 = sadd.s32 %s68, 1
    %p72 = scmp.eq.s32.totalorder %s13, 1
    %p73 = scmp.ne.s32.totalorder %s68, %s70
    %p74 = scmp.eq.s32.totalorder %s13, 0
    %p75 = por %p73, %p74
    %p76 = scmp.ne.s32.totalorder %s68, %s70
    %p77 = scmp.eq.s32.totalorder %s18, 1
    %p78 = por %p76, %p77
    %p79 = scmp.ne.s32.totalorder %s70, %s71
    %p80 = scmp.eq.s32.totalorder %s18, 0
    %p81 = por %p79, %p80
    %p82 = scmp.ne.s32.totalorder %s70, %s71
    %p83 = scmp.eq.s32.totalorder %s19, 1
    %p84 = por %p82, %p83
    %p86 = scmp.ne.s32.totalorder %s71, %s85
    %p87 = scmp.eq.s32.totalorder %s19, 0
    %p88 = por %p86, %p87
    %s90 = sadd.s32 %s89, 1
    %p93 = scmp.eq.s32.totalorder %s13, 1
    %p94 = scmp.ne.s32.totalorder %s89, %s91
    %p95 = scmp.eq.s32.totalorder %s13, 0
    %p96 = por %p94, %p95
    %p97 = scmp.ne.s32.totalorder %s89, %s91
    %p98 = scmp.eq.s32.totalorder %s18, 1
    %p99 = por %p97, %p98
    %p100 = scmp.ne.s32.totalorder %s91, %s92
    %p101 = scmp.eq.s32.totalorder %s18, 0
    %p102 = por %p100, %p101
    %p103 = scmp.ne.s32.totalorder %s91, %s92
    %p104 = scmp.eq.s32.totalorder %s19, 1
    %p105 = por %p103, %p104
    %p107 = scmp.ne.s32.totalorder %s92, %s106
    %p108 = scmp.eq.s32.totalorder %s19, 0
    %p109 = por %p107, %p108
    %s111 = sadd.s32 %s110, 1
    %p114 = scmp.eq.s32.totalorder %s13, 1
    %p115 = scmp.ne.s32.totalorder %s110, %s112
    %p116 = scmp.eq.s32.totalorder %s13, 0
    %p117 = por %p115, %p116
    %p118 = scmp.ne.s32.totalorder %s110, %s112
    %p119 = scmp.eq.s32.totalorder %s18, 1
    %p120 = por %p118, %p119
    %p121 = scmp.ne.s32.totalorder %s112, %s113
    %p122 = scmp.eq.s32.totalorder %s18, 0
    %p123 = por %p121, %p122
    %p124 = scmp.ne.s32.totalorder %s112, %s113
    %p125 = scmp.eq.s32.totalorder %s19, 1
    %p126 = por %p124, %p125
    %p128 = scmp.ne.s32.totalorder %s113, %s127
    %p129 = scmp.eq.s32.totalorder %s19, 0
    %p130 = por %p128, %p129
    %s132 = sadd.s32 %s131, 1
    %p135 = scmp.eq.s32.totalorder %s13, 1
    %p136 = scmp.ne.s32.totalorder %s131, %s133
    %p137 = scmp.eq.s32.totalorder %s13, 0
    %p138 = por %p136, %p137
    %p139 = scmp.ne.s32.totalorder %s131, %s133
    %p140 = scmp.eq.s32.totalorder %s18, 1
    %p141 = por %p139, %p140
    %p142 = scmp.ne.s32.totalorder %s133, %s134
    %p143 = scmp.eq.s32.totalorder %s18, 0
    %p144 = por %p142, %p143
    %p145 = scmp.ne.s32.totalorder %s133, %s134
    %p146 = scmp.eq.s32.totalorder %s19, 1
    %p147 = por %p145, %p146
    %p149 = scmp.ne.s32.totalorder %s134, %s148
    %p150 = scmp.eq.s32.totalorder %s19, 0
    %p151 = por %p149, %p150
    %s153 = sadd.s32 %s152, 1
    %p156 = scmp.eq.s32.totalorder %s13, 1
    %p157 = scmp.ne.s32.totalorder %s152, %s154
    %p158 = scmp.eq.s32.totalorder %s13, 0
    %p159 = por %p157, %p158
    %p160 = scmp.ne.s32.totalorder %s152, %s154
    %p161 = scmp.eq.s32.totalorder %s18, 1
    %p162 = por %p160, %p161
    %p163 = scmp.ne.s32.totalorder %s154, %s155
    %p164 = scmp.eq.s32.totalorder %s18, 0
    %p165 = por %p163, %p164
    %p166 = scmp.ne.s32.totalorder %s154, %s155
    %p167 = scmp.eq.s32.totalorder %s19, 1
    %p168 = por %p166, %p167
    %p170 = scmp.ne.s32.totalorder %s155, %s169
    %p171 = scmp.eq.s32.totalorder %s19, 0
    %p172 = por %p170, %p171
    %s173 = ssub.s32 %s13, %s20
    %p174 = scmp.eq.s32.totalorder %s173, 0
    %s176 = sadd.s32 %s175, 1
    %s177 = scalar_select %p174, %s175, %s176
    %p180 = pneg %p174
    %p181 = scmp.eq.s32.totalorder %s13, 1
    %p182 = por %p180, %p181
    %p183 = scmp.ne.s32.totalorder %s175, %s178
    %p184 = scmp.eq.s32.totalorder %s13, 0
    %p185 = por %p183, %p184
    %p186 = scmp.ne.s32.totalorder %s175, %s178
    %p187 = scmp.eq.s32.totalorder %s18, 1
    %p188 = por %p186, %p187
    %p189 = scmp.ne.s32.totalorder %s178, %s179
    %p190 = scmp.eq.s32.totalorder %s18, 0
    %p191 = por %p189, %p190
    %p192 = scmp.ne.s32.totalorder %s178, %s179
    %p193 = scmp.eq.s32.totalorder %s19, 1
    %p194 = por %p192, %p193
    %p196 = scmp.ne.s32.totalorder %s179, %s195
    %p197 = scmp.eq.s32.totalorder %s19, 0
    %p198 = por %p196, %p197
    %p199 = scmp.le.s32.totalorder 1, %s13
    %p200 = scmp.lt.s32.totalorder %s13, 3
    %p201 = pnand %p199, %p200
    %p202 = pneg %p201
    // Predicated region
    $region9: #{tpu_custom_call.1} parent=5 // pred_check
      _
    $region10: #{tpu_custom_call.1} parent=5 // pred_check_branch
      %204 = sbr.rel (%p201) target = $region12
    $region11: #{tpu_custom_call.1} parent=5 // pred_region
      %s205 = ssub.s32 %s13, 1
      // Predicated region
      $region13: #{tpu_custom_call.1} parent=11 // pred_check
        %p206 = pneg %p60
      $region14: #{tpu_custom_call.1} parent=11 // pred_check_branch
        %208 = sbr.rel (%p206) target = $region16
      $region15: #{tpu_custom_call.1} parent=11 // pred_region
        _
      $region16: #{tpu_custom_call.1} parent=11 // pred_fallthru
        _
      // Predicated region
      $region17: #{tpu_custom_call.1} parent=11 // pred_check
        %p209 = pneg %p81
      $region18: #{tpu_custom_call.1} parent=11 // pred_check_branch
        %211 = sbr.rel (%p209) target = $region20
      $region19: #{tpu_custom_call.1} parent=11 // pred_region
        _
      $region20: #{tpu_custom_call.1} parent=11 // pred_fallthru
        _
      // Predicated region
      $region21: #{tpu_custom_call.1} parent=11 // pred_check
        %p212 = pneg %p102
      $region22: #{tpu_custom_call.1} parent=11 // pred_check_branch
        %214 = sbr.rel (%p212) target = $region24
      $region23: #{tpu_custom_call.1} parent=11 // pred_region
        _
      $region24: #{tpu_custom_call.1} parent=11 // pred_fallthru
        _
      // Predicated region
      $region25: #{tpu_custom_call.1} parent=11 // pred_check
        %p215 = pneg %p123
      $region26: #{tpu_custom_call.1} parent=11 // pred_check_branch
        %217 = sbr.rel (%p215) target = $region28
      $region27: #{tpu_custom_call.1} parent=11 // pred_region
        _
      $region28: #{tpu_custom_call.1} parent=11 // pred_fallthru
        _
      // Predicated region
      $region29: #{tpu_custom_call.1} parent=11 // pred_check
        %p218 = pneg %p144
      $region30: #{tpu_custom_call.1} parent=11 // pred_check_branch
        %220 = sbr.rel (%p218) target = $region32
      $region31: #{tpu_custom_call.1} parent=11 // pred_region
        _
      $region32: #{tpu_custom_call.1} parent=11 // pred_fallthru
        _
      // Predicated region
      $region33: #{tpu_custom_call.1} parent=11 // pred_check
        %p221 = pneg %p165
      $region34: #{tpu_custom_call.1} parent=11 // pred_check_branch
        %223 = sbr.rel (%p221) target = $region36
      $region35: #{tpu_custom_call.1} parent=11 // pred_region
        _
      $region36: #{tpu_custom_call.1} parent=11 // pred_fallthru
        _
    $region12: #{tpu_custom_call.1} parent=5 // pred_fallthru
      _
    %p224 = scmp.lt.s32.totalorder %s13, 2
    // Predicated region
    $region37: #{tpu_custom_call.1} parent=5 // pred_check
      %p225 = pneg %p224
    $region38: #{tpu_custom_call.1} parent=5 // pred_check_branch
      %227 = sbr.rel (%p225) target = $region40
    $region39: #{tpu_custom_call.1} parent=5 // pred_region
      // Predicated region
      $region41: #{tpu_custom_call.1} parent=39 // pred_check
        %p228 = pneg %p33
      $region42: #{tpu_custom_call.1} parent=39 // pred_check_branch
        %230 = sbr.rel (%p228) target = $region44
      $region43: #{tpu_custom_call.1} parent=39 // pred_region
        %p231 = scmp.lt.s32.totalorder %s13, 1
        %s232 = scalar_select %p231, %s13, 1
        %s233 = smul.addr %s232, 54
        %s234 = smul.addr %s233, 8
        %s235 = scalar_lea.vmem %s0, %s234
      $region44: #{tpu_custom_call.1} parent=39 // pred_fallthru
        _
    $region40: #{tpu_custom_call.1} parent=5 // pred_fallthru
      _
    %p236 = scmp.le.s32.totalorder 1, %s13
    %p237 = scmp.lt.s32.totalorder %s13, 3
    %p238 = pnand %p236, %p237
    %p239 = pneg %p238
    // Predicated region
    $region45: #{tpu_custom_call.1} parent=5 // pred_check
      _
    $region46: #{tpu_custom_call.1} parent=5 // pred_check_branch
      %241 = sbr.rel (%p238) target = $region48
    $region47: #{tpu_custom_call.1} parent=5 // pred_region
      %s242 = ssub.s32 %s13, 1
      %p243 = scmp.lt.s32.totalorder %s18, 1
      %s244 = scalar_select %p243, %s18, 1
      %s245 = smul.addr %s244, 54
      %s246 = smul.addr %s245, 8
      %s247 = scalar_lea.vmem %s0, %s246
      %p248 = pneg %p39
      %p249 = pneg %p36
      %p250 = pneg %p60
      %p251 = pneg %p57
      %p252 = pneg %p81
      %p253 = pneg %p78
      %p254 = pneg %p102
      %p255 = pneg %p99
      %p256 = pneg %p123
      %p257 = pneg %p120
      %p258 = pneg %p144
      %p259 = pneg %p141
      %p260 = pneg %p165
      %p261 = pneg %p162
      %p262 = pneg %p191
      %p263 = pneg %p188
      %p264 = scmp.lt.s32.totalorder %s18, 1
      %s265 = scalar_select %p264, %s18, 1
      %s266 = smul.addr %s265, 54
      %s267 = smul.addr %s266, 8
      %s268 = scalar_lea.vmem %s7, %s267
      %p269 = scmp.lt.s32.totalorder %s18, 1
      %s270 = scalar_select %p269, %s18, 1
      %s271 = smul.addr %s270, 54
      %s272 = smul.addr %s271, 8
      %s273 = scalar_lea.vmem %s0, %s272
      %p274 = scmp.lt.s32.totalorder %s18, 1
      %s275 = scalar_select %p274, %s18, 1
      %s276 = smul.addr %s275, 54
      %s277 = smul.addr %s276, 8
      %s278 = scalar_lea.vmem %s7, %s277
      %v280 = vld [vmem:[%s273] sm:$0xff]
      %v281 = vld [vmem:[%s273 + $0x8] sm:$0xff]
      %v282 = vld [vmem:[%s273 + $0x18] sm:$0xff]
      %v283 = vld [vmem:[%s273 + $0x20] sm:$0xff]
      %v284 = vld [vmem:[%s273 + $0x30] sm:$0xff]
      %v285 = vld [vmem:[%s273 + $0x38] sm:$0xff]
      %v286 = vld [vmem:[%s273 + $0x48] sm:$0xff]
      %v287 = vld [vmem:[%s273 + $0x50] sm:$0xff]
      %v288 = vld [vmem:[%s273 + $0x60] sm:$0xff]
      %v289 = vld [vmem:[%s273 + $0x68] sm:$0xff]
      %v290 = vld [vmem:[%s273 + $0x78] sm:$0xff]
      %v291 = vld [vmem:[%s273 + $0x80] sm:$0xff]
      %v292 = vld [vmem:[%s273 + $0x90] sm:$0xff]
      %v293 = vld [vmem:[%s273 + $0x98] sm:$0xff]
      %v294 = vld [vmem:[%s273 + $0xa8] sm:$0xff]
      %v295 = vld [vmem:[%s273 + $0xb0] sm:$0xff]
      %v296 = vld [vmem:[%s273 + $0xc0] sm:$0xff]
      %v297 = vld [vmem:[%s273 + $0xc8] sm:$0xff]
      %v298 = vld [vmem:[%s273 + $0xd8] sm:$0xff]
      %v299 = vld [vmem:[%s273 + $0xe0] sm:$0xff]
      %v300 = vld [vmem:[%s273 + $0xf0] sm:$0xff]
      %v301 = vld [vmem:[%s273 + $0xf8] sm:$0xff]
      %v302 = vld [vmem:[%s273 + $0x108] sm:$0xff]
      %v303 = vld [vmem:[%s273 + $0x110] sm:$0xff]
      %v304 = vld [vmem:[%s273 + $0x120] sm:$0xff]
      %v305 = vld [vmem:[%s273 + $0x128] sm:$0xff]
      %v306 = vld [vmem:[%s273 + $0x138] sm:$0xff]
      %v307 = vld [vmem:[%s273 + $0x140] sm:$0xff]
      %v308 = vld [vmem:[%s273 + $0x150] sm:$0xff]
      %v309 = vld [vmem:[%s273 + $0x158] sm:$0xff]
      %v310 = vld [vmem:[%s273 + $0x168] sm:$0xff]
      %v311 = vld [vmem:[%s273 + $0x170] sm:$0xff]
      %v312 = vld [vmem:[%s273 + $0x1] sm:$0xff]
      %v313 = vld [vmem:[%s273 + $0x9] sm:$0xff]
      %v314 = vld [vmem:[%s273 + $0x19] sm:$0xff]
      %v315 = vld [vmem:[%s273 + $0x21] sm:$0xff]
      %v316 = vld [vmem:[%s273 + $0x31] sm:$0xff]
      %v317 = vld [vmem:[%s273 + $0x39] sm:$0xff]
      %v318 = vld [vmem:[%s273 + $0x49] sm:$0xff]
      %v319 = vld [vmem:[%s273 + $0x51] sm:$0xff]
      %v320 = vld [vmem:[%s273 + $0x61] sm:$0xff]
      %v321 = vld [vmem:[%s273 + $0x69] sm:$0xff]
      %v322 = vld [vmem:[%s273 + $0x79] sm:$0xff]
      %v323 = vld [vmem:[%s273 + $0x81] sm:$0xff]
      %v324 = vld [vmem:[%s273 + $0x91] sm:$0xff]
      %v325 = vld [vmem:[%s273 + $0x99] sm:$0xff]
      %v326 = vld [vmem:[%s273 + $0xa9] sm:$0xff]
      %v327 = vld [vmem:[%s273 + $0xb1] sm:$0xff]
      %v328 = vld [vmem:[%s273 + $0xc1] sm:$0xff]
      %v329 = vld [vmem:[%s273 + $0xc9] sm:$0xff]
      %v330 = vld [vmem:[%s273 + $0xd9] sm:$0xff]
      %v331 = vld [vmem:[%s273 + $0xe1] sm:$0xff]
      %v332 = vld [vmem:[%s273 + $0xf1] sm:$0xff]
      %v333 = vld [vmem:[%s273 + $0xf9] sm:$0xff]
      %v334 = vld [vmem:[%s273 + $0x109] sm:$0xff]
      %v335 = vld [vmem:[%s273 + $0x111] sm:$0xff]
      %v336 = vld [vmem:[%s273 + $0x121] sm:$0xff]
      %v337 = vld [vmem:[%s273 + $0x129] sm:$0xff]
      %v338 = vld [vmem:[%s273 + $0x139] sm:$0xff]
      %v339 = vld [vmem:[%s273 + $0x141] sm:$0xff]
      %v340 = vld [vmem:[%s273 + $0x151] sm:$0xff]
      %v341 = vld [vmem:[%s273 + $0x159] sm:$0xff]
      %v342 = vld [vmem:[%s273 + $0x169] sm:$0xff]
      %v343 = vld [vmem:[%s273 + $0x171] sm:$0xff]
      %v344 = vld [vmem:[%s273 + $0x2] sm:$0xff]
      %v345 = vld [vmem:[%s273 + $0xa] sm:$0xff]
      %v346 = vld [vmem:[%s273 + $0x1a] sm:$0xff]
      %v347 = vld [vmem:[%s273 + $0x22] sm:$0xff]
      %v348 = vld [vmem:[%s273 + $0x32] sm:$0xff]
      %v349 = vld [vmem:[%s273 + $0x3a] sm:$0xff]
      %v350 = vld [vmem:[%s273 + $0x4a] sm:$0xff]
      %v351 = vld [vmem:[%s273 + $0x52] sm:$0xff]
      %v352 = vld [vmem:[%s273 + $0x62] sm:$0xff]
      %v353 = vld [vmem:[%s273 + $0x6a] sm:$0xff]
      %v354 = vld [vmem:[%s273 + $0x7a] sm:$0xff]
      %v355 = vld [vmem:[%s273 + $0x82] sm:$0xff]
      %v356 = vld [vmem:[%s273 + $0x92] sm:$0xff]
      %v357 = vld [vmem:[%s273 + $0x9a] sm:$0xff]
      %v358 = vld [vmem:[%s273 + $0xaa] sm:$0xff]
      %v359 = vld [vmem:[%s273 + $0xb2] sm:$0xff]
      %v360 = vld [vmem:[%s273 + $0xc2] sm:$0xff]
      %v361 = vld [vmem:[%s273 + $0xca] sm:$0xff]
      %v362 = vld [vmem:[%s273 + $0xda] sm:$0xff]
      %v363 = vld [vmem:[%s273 + $0xe2] sm:$0xff]
      %v364 = vld [vmem:[%s273 + $0xf2] sm:$0xff]
      %v365 = vld [vmem:[%s273 + $0xfa] sm:$0xff]
      %v366 = vld [vmem:[%s273 + $0x10a] sm:$0xff]
      %v367 = vld [vmem:[%s273 + $0x112] sm:$0xff]
      %v368 = vld [vmem:[%s273 + $0x122] sm:$0xff]
      %v369 = vld [vmem:[%s273 + $0x12a] sm:$0xff]
      %v370 = vld [vmem:[%s273 + $0x13a] sm:$0xff]
      %v371 = vld [vmem:[%s273 + $0x142] sm:$0xff]
      %v372 = vld [vmem:[%s273 + $0x152] sm:$0xff]
      %v373 = vld [vmem:[%s273 + $0x15a] sm:$0xff]
      %v374 = vld [vmem:[%s273 + $0x16a] sm:$0xff]
      %v375 = vld [vmem:[%s273 + $0x172] sm:$0xff]
      %s376 = scalar_lea.vmem %s273, 24
      %v377 = vld [vmem:[%s376] sm:$0xff]
      %v378 = vld [vmem:[%s376 + $0x8] sm:$0xff]
      %v379 = vld [vmem:[%s376 + $0x18] sm:$0xff]
      %v380 = vld [vmem:[%s376 + $0x20] sm:$0xff]
      %v381 = vld [vmem:[%s376 + $0x30] sm:$0xff]
      %v382 = vld [vmem:[%s376 + $0x38] sm:$0xff]
      %v383 = vld [vmem:[%s376 + $0x48] sm:$0xff]
      %v384 = vld [vmem:[%s376 + $0x50] sm:$0xff]
      %v385 = vld [vmem:[%s376 + $0x60] sm:$0xff]
      %v386 = vld [vmem:[%s376 + $0x68] sm:$0xff]
      %v387 = vld [vmem:[%s376 + $0x78] sm:$0xff]
      %v388 = vld [vmem:[%s376 + $0x80] sm:$0xff]
      %v389 = vld [vmem:[%s376 + $0x90] sm:$0xff]
      %v390 = vld [vmem:[%s376 + $0x98] sm:$0xff]
      %v391 = vld [vmem:[%s376 + $0xa8] sm:$0xff]
      %v392 = vld [vmem:[%s376 + $0xb0] sm:$0xff]
      %v393 = vld [vmem:[%s376 + $0xc0] sm:$0xff]
      %v394 = vld [vmem:[%s376 + $0xc8] sm:$0xff]
      %v395 = vld [vmem:[%s376 + $0xd8] sm:$0xff]
      %v396 = vld [vmem:[%s376 + $0xe0] sm:$0xff]
      %v397 = vld [vmem:[%s376 + $0xf0] sm:$0xff]
      %v398 = vld [vmem:[%s376 + $0xf8] sm:$0xff]
      %v399 = vld [vmem:[%s376 + $0x108] sm:$0xff]
      %v400 = vld [vmem:[%s376 + $0x110] sm:$0xff]
      %v401 = vld [vmem:[%s376 + $0x120] sm:$0xff]
      %v402 = vld [vmem:[%s376 + $0x128] sm:$0xff]
      %v403 = vld [vmem:[%s376 + $0x138] sm:$0xff]
      %v404 = vld [vmem:[%s376 + $0x140] sm:$0xff]
      %v405 = vld [vmem:[%s376 + $0x150] sm:$0xff]
      %v406 = vld [vmem:[%s376 + $0x158] sm:$0xff]
      %v407 = vld [vmem:[%s376 + $0x168] sm:$0xff]
      %v408 = vld [vmem:[%s376 + $0x170] sm:$0xff]
      %v409 = vld [vmem:[%s376 + $0x1] sm:$0xff]
      %v410 = vld [vmem:[%s376 + $0x9] sm:$0xff]
      %v411 = vld [vmem:[%s376 + $0x19] sm:$0xff]
      %v412 = vld [vmem:[%s376 + $0x21] sm:$0xff]
      %v413 = vld [vmem:[%s376 + $0x31] sm:$0xff]
      %v414 = vld [vmem:[%s376 + $0x39] sm:$0xff]
      %v415 = vld [vmem:[%s376 + $0x49] sm:$0xff]
      %v416 = vld [vmem:[%s376 + $0x51] sm:$0xff]
      %v417 = vld [vmem:[%s376 + $0x61] sm:$0xff]
      %v418 = vld [vmem:[%s376 + $0x69] sm:$0xff]
      %v419 = vld [vmem:[%s376 + $0x79] sm:$0xff]
      %v420 = vld [vmem:[%s376 + $0x81] sm:$0xff]
      %v421 = vld [vmem:[%s376 + $0x91] sm:$0xff]
      %v422 = vld [vmem:[%s376 + $0x99] sm:$0xff]
      %v423 = vld [vmem:[%s376 + $0xa9] sm:$0xff]
      %v424 = vld [vmem:[%s376 + $0xb1] sm:$0xff]
      %v425 = vld [vmem:[%s376 + $0xc1] sm:$0xff]
      %v426 = vld [vmem:[%s376 + $0xc9] sm:$0xff]
      %v427 = vld [vmem:[%s376 + $0xd9] sm:$0xff]
      %v428 = vld [vmem:[%s376 + $0xe1] sm:$0xff]
      %v429 = vld [vmem:[%s376 + $0xf1] sm:$0xff]
      %v430 = vld [vmem:[%s376 + $0xf9] sm:$0xff]
      %v431 = vld [vmem:[%s376 + $0x109] sm:$0xff]
      %v432 = vld [vmem:[%s376 + $0x111] sm:$0xff]
      %v433 = vld [vmem:[%s376 + $0x121] sm:$0xff]
      %v434 = vld [vmem:[%s376 + $0x129] sm:$0xff]
      %v435 = vld [vmem:[%s376 + $0x139] sm:$0xff]
      %v436 = vld [vmem:[%s376 + $0x141] sm:$0xff]
      %v437 = vld [vmem:[%s376 + $0x151] sm:$0xff]
      %v438 = vld [vmem:[%s376 + $0x159] sm:$0xff]
      %v439 = vld [vmem:[%s376 + $0x169] sm:$0xff]
      %v440 = vld [vmem:[%s376 + $0x171] sm:$0xff]
      %v441 = vld [vmem:[%s376 + $0x2] sm:$0xff]
      %v442 = vld [vmem:[%s376 + $0xa] sm:$0xff]
      %v443 = vld [vmem:[%s376 + $0x1a] sm:$0xff]
      %v444 = vld [vmem:[%s376 + $0x22] sm:$0xff]
      %v445 = vld [vmem:[%s376 + $0x32] sm:$0xff]
      %v446 = vld [vmem:[%s376 + $0x3a] sm:$0xff]
      %v447 = vld [vmem:[%s376 + $0x4a] sm:$0xff]
      %v448 = vld [vmem:[%s376 + $0x52] sm:$0xff]
      %v449 = vld [vmem:[%s376 + $0x62] sm:$0xff]
      %v450 = vld [vmem:[%s376 + $0x6a] sm:$0xff]
      %v451 = vld [vmem:[%s376 + $0x7a] sm:$0xff]
      %v452 = vld [vmem:[%s376 + $0x82] sm:$0xff]
      %v453 = vld [vmem:[%s376 + $0x92] sm:$0xff]
      %v454 = vld [vmem:[%s376 + $0x9a] sm:$0xff]
      %v455 = vld [vmem:[%s376 + $0xaa] sm:$0xff]
      %v456 = vld [vmem:[%s376 + $0xb2] sm:$0xff]
      %v457 = vld [vmem:[%s376 + $0xc2] sm:$0xff]
      %v458 = vld [vmem:[%s376 + $0xca] sm:$0xff]
      %v459 = vld [vmem:[%s376 + $0xda] sm:$0xff]
      %v460 = vld [vmem:[%s376 + $0xe2] sm:$0xff]
      %v461 = vld [vmem:[%s376 + $0xf2] sm:$0xff]
      %v462 = vld [vmem:[%s376 + $0xfa] sm:$0xff]
      %v463 = vld [vmem:[%s376 + $0x10a] sm:$0xff]
      %v464 = vld [vmem:[%s376 + $0x112] sm:$0xff]
      %v465 = vld [vmem:[%s376 + $0x122] sm:$0xff]
      %v466 = vld [vmem:[%s376 + $0x12a] sm:$0xff]
      %v467 = vld [vmem:[%s376 + $0x13a] sm:$0xff]
      %v468 = vld [vmem:[%s376 + $0x142] sm:$0xff]
      %v469 = vld [vmem:[%s376 + $0x152] sm:$0xff]
      %v470 = vld [vmem:[%s376 + $0x15a] sm:$0xff]
      %v471 = vld [vmem:[%s376 + $0x16a] sm:$0xff]
      %v472 = vld [vmem:[%s376 + $0x172] sm:$0xff]
      %s473 = scalar_lea.vmem %s273, 48
      %v474 = vld [vmem:[%s473] sm:$0xff]
      %v475 = vld [vmem:[%s473 + $0x8] sm:$0xff]
      %v476 = vld [vmem:[%s473 + $0x18] sm:$0xff]
      %v477 = vld [vmem:[%s473 + $0x20] sm:$0xff]
      %v478 = vld [vmem:[%s473 + $0x30] sm:$0xff]
      %v479 = vld [vmem:[%s473 + $0x38] sm:$0xff]
      %v480 = vld [vmem:[%s473 + $0x48] sm:$0xff]
      %v481 = vld [vmem:[%s473 + $0x50] sm:$0xff]
      %v482 = vld [vmem:[%s473 + $0x60] sm:$0xff]
      %v483 = vld [vmem:[%s473 + $0x68] sm:$0xff]
      %v484 = vld [vmem:[%s473 + $0x78] sm:$0xff]
      %v485 = vld [vmem:[%s473 + $0x80] sm:$0xff]
      %v486 = vld [vmem:[%s473 + $0x90] sm:$0xff]
      %v487 = vld [vmem:[%s473 + $0x98] sm:$0xff]
      %v488 = vld [vmem:[%s473 + $0xa8] sm:$0xff]
      %v489 = vld [vmem:[%s473 + $0xb0] sm:$0xff]
      %v490 = vld [vmem:[%s473 + $0xc0] sm:$0xff]
      %v491 = vld [vmem:[%s473 + $0xc8] sm:$0xff]
      %v492 = vld [vmem:[%s473 + $0xd8] sm:$0xff]
      %v493 = vld [vmem:[%s473 + $0xe0] sm:$0xff]
      %v494 = vld [vmem:[%s473 + $0xf0] sm:$0xff]
      %v495 = vld [vmem:[%s473 + $0xf8] sm:$0xff]
      %v496 = vld [vmem:[%s473 + $0x108] sm:$0xff]
      %v497 = vld [vmem:[%s473 + $0x110] sm:$0xff]
      %v498 = vld [vmem:[%s473 + $0x120] sm:$0xff]
      %v499 = vld [vmem:[%s473 + $0x128] sm:$0xff]
      %v500 = vld [vmem:[%s473 + $0x138] sm:$0xff]
      %v501 = vld [vmem:[%s473 + $0x140] sm:$0xff]
      %v502 = vld [vmem:[%s473 + $0x150] sm:$0xff]
      %v503 = vld [vmem:[%s473 + $0x158] sm:$0xff]
      %v504 = vld [vmem:[%s473 + $0x168] sm:$0xff]
      %v505 = vld [vmem:[%s473 + $0x170] sm:$0xff]
      %v506 = vld [vmem:[%s473 + $0x1] sm:$0xff]
      %v507 = vld [vmem:[%s473 + $0x9] sm:$0xff]
      %v508 = vld [vmem:[%s473 + $0x19] sm:$0xff]
      %v509 = vld [vmem:[%s473 + $0x21] sm:$0xff]
      %v510 = vld [vmem:[%s473 + $0x31] sm:$0xff]
      %v511 = vld [vmem:[%s473 + $0x39] sm:$0xff]
      %v512 = vld [vmem:[%s473 + $0x49] sm:$0xff]
      %v513 = vld [vmem:[%s473 + $0x51] sm:$0xff]
      %v514 = vld [vmem:[%s473 + $0x61] sm:$0xff]
      %v515 = vld [vmem:[%s473 + $0x69] sm:$0xff]
      %v516 = vld [vmem:[%s473 + $0x79] sm:$0xff]
      %v517 = vld [vmem:[%s473 + $0x81] sm:$0xff]
      %v518 = vld [vmem:[%s473 + $0x91] sm:$0xff]
      %v519 = vld [vmem:[%s473 + $0x99] sm:$0xff]
      %v520 = vld [vmem:[%s473 + $0xa9] sm:$0xff]
      %v521 = vld [vmem:[%s473 + $0xb1] sm:$0xff]
      %v522 = vld [vmem:[%s473 + $0xc1] sm:$0xff]
      %v523 = vld [vmem:[%s473 + $0xc9] sm:$0xff]
      %v524 = vld [vmem:[%s473 + $0xd9] sm:$0xff]
      %v525 = vld [vmem:[%s473 + $0xe1] sm:$0xff]
      %v526 = vld [vmem:[%s473 + $0xf1] sm:$0xff]
      %v527 = vld [vmem:[%s473 + $0xf9] sm:$0xff]
      %v528 = vld [vmem:[%s473 + $0x109] sm:$0xff]
      %v529 = vld [vmem:[%s473 + $0x111] sm:$0xff]
      %v530 = vld [vmem:[%s473 + $0x121] sm:$0xff]
      %v531 = vld [vmem:[%s473 + $0x129] sm:$0xff]
      %v532 = vld [vmem:[%s473 + $0x139] sm:$0xff]
      %v533 = vld [vmem:[%s473 + $0x141] sm:$0xff]
      %v534 = vld [vmem:[%s473 + $0x151] sm:$0xff]
      %v535 = vld [vmem:[%s473 + $0x159] sm:$0xff]
      %v536 = vld [vmem:[%s473 + $0x169] sm:$0xff]
      %v537 = vld [vmem:[%s473 + $0x171] sm:$0xff]
      %v538 = vld [vmem:[%s473 + $0x2] sm:$0xff]
      %v539 = vld [vmem:[%s473 + $0xa] sm:$0xff]
      %v540 = vld [vmem:[%s473 + $0x1a] sm:$0xff]
      %v541 = vld [vmem:[%s473 + $0x22] sm:$0xff]
      %v542 = vld [vmem:[%s473 + $0x32] sm:$0xff]
      %v543 = vld [vmem:[%s473 + $0x3a] sm:$0xff]
      %v544 = vld [vmem:[%s473 + $0x4a] sm:$0xff]
      %v545 = vld [vmem:[%s473 + $0x52] sm:$0xff]
      %v546 = vld [vmem:[%s473 + $0x62] sm:$0xff]
      %v547 = vld [vmem:[%s473 + $0x6a] sm:$0xff]
      %v548 = vld [vmem:[%s473 + $0x7a] sm:$0xff]
      %v549 = vld [vmem:[%s473 + $0x82] sm:$0xff]
      %v550 = vld [vmem:[%s473 + $0x92] sm:$0xff]
      %v551 = vld [vmem:[%s473 + $0x9a] sm:$0xff]
      %v552 = vld [vmem:[%s473 + $0xaa] sm:$0xff]
      %v553 = vld [vmem:[%s473 + $0xb2] sm:$0xff]
      %v554 = vld [vmem:[%s473 + $0xc2] sm:$0xff]
      %v555 = vld [vmem:[%s473 + $0xca] sm:$0xff]
      %v556 = vld [vmem:[%s473 + $0xda] sm:$0xff]
      %v557 = vld [vmem:[%s473 + $0xe2] sm:$0xff]
      %v558 = vld [vmem:[%s473 + $0xf2] sm:$0xff]
      %v559 = vld [vmem:[%s473 + $0xfa] sm:$0xff]
      %v560 = vld [vmem:[%s473 + $0x10a] sm:$0xff]
      %v561 = vld [vmem:[%s473 + $0x112] sm:$0xff]
      %v562 = vld [vmem:[%s473 + $0x122] sm:$0xff]
      %v563 = vld [vmem:[%s473 + $0x12a] sm:$0xff]
      %v564 = vld [vmem:[%s473 + $0x13a] sm:$0xff]
      %v565 = vld [vmem:[%s473 + $0x142] sm:$0xff]
      %v566 = vld [vmem:[%s473 + $0x152] sm:$0xff]
      %v567 = vld [vmem:[%s473 + $0x15a] sm:$0xff]
      %v568 = vld [vmem:[%s473 + $0x16a] sm:$0xff]
      %v569 = vld [vmem:[%s473 + $0x172] sm:$0xff]
      %602 = vrot.lane.b32.xlu0 %v312, 4
      %v603 = vpop.permute.xlu0 %602
      %604 = vrot.lane.b32.xlu0 %v313, 4
      %v605 = vpop.permute.xlu0 %604
      %606 = vrot.lane.b32.xlu0 %v314, 4
      %v607 = vpop.permute.xlu0 %606
      %608 = vrot.lane.b32.xlu0 %v315, 4
      %v609 = vpop.permute.xlu0 %608
      %610 = vrot.lane.b32.xlu0 %v316, 4
      %v611 = vpop.permute.xlu0 %610
      %612 = vrot.lane.b32.xlu0 %v317, 4
      %v613 = vpop.permute.xlu0 %612
      %614 = vrot.lane.b32.xlu0 %v318, 4
      %v615 = vpop.permute.xlu0 %614
      %616 = vrot.lane.b32.xlu0 %v319, 4
      %v617 = vpop.permute.xlu0 %616
      %618 = vrot.lane.b32.xlu0 %v320, 4
      %v619 = vpop.permute.xlu0 %618
      %620 = vrot.lane.b32.xlu0 %v321, 4
      %v621 = vpop.permute.xlu0 %620
      %622 = vrot.lane.b32.xlu0 %v322, 4
      %v623 = vpop.permute.xlu0 %622
      %624 = vrot.lane.b32.xlu0 %v323, 4
      %v625 = vpop.permute.xlu0 %624
      %626 = vrot.lane.b32.xlu0 %v324, 4
      %v627 = vpop.permute.xlu0 %626
      %628 = vrot.lane.b32.xlu0 %v325, 4
      %v629 = vpop.permute.xlu0 %628
      %630 = vrot.lane.b32.xlu0 %v326, 4
      %v631 = vpop.permute.xlu0 %630
      %632 = vrot.lane.b32.xlu0 %v327, 4
      %v633 = vpop.permute.xlu0 %632
      %634 = vrot.lane.b32.xlu0 %v328, 4
      %v635 = vpop.permute.xlu0 %634
      %636 = vrot.lane.b32.xlu0 %v329, 4
      %v637 = vpop.permute.xlu0 %636
      %638 = vrot.lane.b32.xlu0 %v330, 4
      %v639 = vpop.permute.xlu0 %638
      %640 = vrot.lane.b32.xlu0 %v331, 4
      %v641 = vpop.permute.xlu0 %640
      %642 = vrot.lane.b32.xlu0 %v332, 4
      %v643 = vpop.permute.xlu0 %642
      %644 = vrot.lane.b32.xlu0 %v333, 4
      %v645 = vpop.permute.xlu0 %644
      %646 = vrot.lane.b32.xlu0 %v334, 4
      %v647 = vpop.permute.xlu0 %646
      %648 = vrot.lane.b32.xlu0 %v335, 4
      %v649 = vpop.permute.xlu0 %648
      %650 = vrot.lane.b32.xlu0 %v336, 4
      %v651 = vpop.permute.xlu0 %650
      %652 = vrot.lane.b32.xlu0 %v337, 4
      %v653 = vpop.permute.xlu0 %652
      %654 = vrot.lane.b32.xlu0 %v338, 4
      %v655 = vpop.permute.xlu0 %654
      %656 = vrot.lane.b32.xlu0 %v339, 4
      %v657 = vpop.permute.xlu0 %656
      %658 = vrot.lane.b32.xlu0 %v340, 4
      %v659 = vpop.permute.xlu0 %658
      %660 = vrot.lane.b32.xlu0 %v341, 4
      %v661 = vpop.permute.xlu0 %660
      %662 = vrot.lane.b32.xlu0 %v342, 4
      %v663 = vpop.permute.xlu0 %662
      %664 = vrot.lane.b32.xlu0 %v343, 4
      %v665 = vpop.permute.xlu0 %664
      %730 = vrot.lane.b32.xlu0 %v344, 8
      %v731 = vpop.permute.xlu0 %730
      %732 = vrot.lane.b32.xlu0 %v345, 8
      %v733 = vpop.permute.xlu0 %732
      %734 = vrot.lane.b32.xlu0 %v346, 8
      %v735 = vpop.permute.xlu0 %734
      %736 = vrot.lane.b32.xlu0 %v347, 8
      %v737 = vpop.permute.xlu0 %736
      %738 = vrot.lane.b32.xlu0 %v348, 8
      %v739 = vpop.permute.xlu0 %738
      %740 = vrot.lane.b32.xlu0 %v349, 8
      %v741 = vpop.permute.xlu0 %740
      %742 = vrot.lane.b32.xlu0 %v350, 8
      %v743 = vpop.permute.xlu0 %742
      %744 = vrot.lane.b32.xlu0 %v351, 8
      %v745 = vpop.permute.xlu0 %744
      %746 = vrot.lane.b32.xlu0 %v352, 8
      %v747 = vpop.permute.xlu0 %746
      %748 = vrot.lane.b32.xlu0 %v353, 8
      %v749 = vpop.permute.xlu0 %748
      %750 = vrot.lane.b32.xlu0 %v354, 8
      %v751 = vpop.permute.xlu0 %750
      %752 = vrot.lane.b32.xlu0 %v355, 8
      %v753 = vpop.permute.xlu0 %752
      %754 = vrot.lane.b32.xlu0 %v356, 8
      %v755 = vpop.permute.xlu0 %754
      %756 = vrot.lane.b32.xlu0 %v357, 8
      %v757 = vpop.permute.xlu0 %756
      %758 = vrot.lane.b32.xlu0 %v358, 8
      %v759 = vpop.permute.xlu0 %758
      %760 = vrot.lane.b32.xlu0 %v359, 8
      %v761 = vpop.permute.xlu0 %760
      %762 = vrot.lane.b32.xlu0 %v360, 8
      %v763 = vpop.permute.xlu0 %762
      %764 = vrot.lane.b32.xlu0 %v361, 8
      %v765 = vpop.permute.xlu0 %764
      %766 = vrot.lane.b32.xlu0 %v362, 8
      %v767 = vpop.permute.xlu0 %766
      %768 = vrot.lane.b32.xlu0 %v363, 8
      %v769 = vpop.permute.xlu0 %768
      %770 = vrot.lane.b32.xlu0 %v364, 8
      %v771 = vpop.permute.xlu0 %770
      %772 = vrot.lane.b32.xlu0 %v365, 8
      %v773 = vpop.permute.xlu0 %772
      %774 = vrot.lane.b32.xlu0 %v366, 8
      %v775 = vpop.permute.xlu0 %774
      %776 = vrot.lane.b32.xlu0 %v367, 8
      %v777 = vpop.permute.xlu0 %776
      %778 = vrot.lane.b32.xlu0 %v368, 8
      %v779 = vpop.permute.xlu0 %778
      %780 = vrot.lane.b32.xlu0 %v369, 8
      %v781 = vpop.permute.xlu0 %780
      %782 = vrot.lane.b32.xlu0 %v370, 8
      %v783 = vpop.permute.xlu0 %782
      %784 = vrot.lane.b32.xlu0 %v371, 8
      %v785 = vpop.permute.xlu0 %784
      %786 = vrot.lane.b32.xlu0 %v372, 8
      %v787 = vpop.permute.xlu0 %786
      %788 = vrot.lane.b32.xlu0 %v373, 8
      %v789 = vpop.permute.xlu0 %788
      %790 = vrot.lane.b32.xlu0 %v374, 8
      %v791 = vpop.permute.xlu0 %790
      %792 = vrot.lane.b32.xlu0 %v375, 8
      %v793 = vpop.permute.xlu0 %792
      %858 = vrot.lane.b32.xlu0 %v377, 12
      %v859 = vpop.permute.xlu0 %858
      %860 = vrot.lane.b32.xlu0 %v378, 12
      %v861 = vpop.permute.xlu0 %860
      %862 = vrot.lane.b32.xlu0 %v379, 12
      %v863 = vpop.permute.xlu0 %862
      %864 = vrot.lane.b32.xlu0 %v380, 12
      %v865 = vpop.permute.xlu0 %864
      %866 = vrot.lane.b32.xlu0 %v381, 12
      %v867 = vpop.permute.xlu0 %866
      %868 = vrot.lane.b32.xlu0 %v382, 12
      %v869 = vpop.permute.xlu0 %868
      %870 = vrot.lane.b32.xlu0 %v383, 12
      %v871 = vpop.permute.xlu0 %870
      %872 = vrot.lane.b32.xlu0 %v384, 12
      %v873 = vpop.permute.xlu0 %872
      %874 = vrot.lane.b32.xlu0 %v385, 12
      %v875 = vpop.permute.xlu0 %874
      %876 = vrot.lane.b32.xlu0 %v386, 12
      %v877 = vpop.permute.xlu0 %876
      %878 = vrot.lane.b32.xlu0 %v387, 12
      %v879 = vpop.permute.xlu0 %878
      %880 = vrot.lane.b32.xlu0 %v388, 12
      %v881 = vpop.permute.xlu0 %880
      %882 = vrot.lane.b32.xlu0 %v389, 12
      %v883 = vpop.permute.xlu0 %882
      %884 = vrot.lane.b32.xlu0 %v390, 12
      %v885 = vpop.permute.xlu0 %884
      %886 = vrot.lane.b32.xlu0 %v391, 12
      %v887 = vpop.permute.xlu0 %886
      %888 = vrot.lane.b32.xlu0 %v392, 12
      %v889 = vpop.permute.xlu0 %888
      %890 = vrot.lane.b32.xlu0 %v393, 12
      %v891 = vpop.permute.xlu0 %890
      %892 = vrot.lane.b32.xlu0 %v394, 12
      %v893 = vpop.permute.xlu0 %892
      %894 = vrot.lane.b32.xlu0 %v395, 12
      %v895 = vpop.permute.xlu0 %894
      %896 = vrot.lane.b32.xlu0 %v396, 12
      %v897 = vpop.permute.xlu0 %896
      %898 = vrot.lane.b32.xlu0 %v397, 12
      %v899 = vpop.permute.xlu0 %898
      %900 = vrot.lane.b32.xlu0 %v398, 12
      %v901 = vpop.permute.xlu0 %900
      %902 = vrot.lane.b32.xlu0 %v399, 12
      %v903 = vpop.permute.xlu0 %902
      %904 = vrot.lane.b32.xlu0 %v400, 12
      %v905 = vpop.permute.xlu0 %904
      %906 = vrot.lane.b32.xlu0 %v401, 12
      %v907 = vpop.permute.xlu0 %906
      %908 = vrot.lane.b32.xlu0 %v402, 12
      %v909 = vpop.permute.xlu0 %908
      %910 = vrot.lane.b32.xlu0 %v403, 12
      %v911 = vpop.permute.xlu0 %910
      %912 = vrot.lane.b32.xlu0 %v404, 12
      %v913 = vpop.permute.xlu0 %912
      %914 = vrot.lane.b32.xlu0 %v405, 12
      %v915 = vpop.permute.xlu0 %914
      %916 = vrot.lane.b32.xlu0 %v406, 12
      %v917 = vpop.permute.xlu0 %916
      %918 = vrot.lane.b32.xlu0 %v407, 12
      %v919 = vpop.permute.xlu0 %918
      %920 = vrot.lane.b32.xlu0 %v408, 12
      %v921 = vpop.permute.xlu0 %920
      %986 = vrot.lane.b32.xlu0 %v409, 16
      %v987 = vpop.permute.xlu0 %986
      %988 = vrot.lane.b32.xlu0 %v410, 16
      %v989 = vpop.permute.xlu0 %988
      %990 = vrot.lane.b32.xlu0 %v411, 16
      %v991 = vpop.permute.xlu0 %990
      %992 = vrot.lane.b32.xlu0 %v412, 16
      %v993 = vpop.permute.xlu0 %992
      %994 = vrot.lane.b32.xlu0 %v413, 16
      %v995 = vpop.permute.xlu0 %994
      %996 = vrot.lane.b32.xlu0 %v414, 16
      %v997 = vpop.permute.xlu0 %996
      %998 = vrot.lane.b32.xlu0 %v415, 16
      %v999 = vpop.permute.xlu0 %998
      %1000 = vrot.lane.b32.xlu0 %v416, 16
      %v1001 = vpop.permute.xlu0 %1000
      %1002 = vrot.lane.b32.xlu0 %v417, 16
      %v1003 = vpop.permute.xlu0 %1002
      %1004 = vrot.lane.b32.xlu0 %v418, 16
      %v1005 = vpop.permute.xlu0 %1004
      %1006 = vrot.lane.b32.xlu0 %v419, 16
      %v1007 = vpop.permute.xlu0 %1006
      %1008 = vrot.lane.b32.xlu0 %v420, 16
      %v1009 = vpop.permute.xlu0 %1008
      %1010 = vrot.lane.b32.xlu0 %v421, 16
      %v1011 = vpop.permute.xlu0 %1010
      %1012 = vrot.lane.b32.xlu0 %v422, 16
      %v1013 = vpop.permute.xlu0 %1012
      %1014 = vrot.lane.b32.xlu0 %v423, 16
      %v1015 = vpop.permute.xlu0 %1014
      %1016 = vrot.lane.b32.xlu0 %v424, 16
      %v1017 = vpop.permute.xlu0 %1016
      %1018 = vrot.lane.b32.xlu0 %v425, 16
      %v1019 = vpop.permute.xlu0 %1018
      %1020 = vrot.lane.b32.xlu0 %v426, 16
      %v1021 = vpop.permute.xlu0 %1020
      %1022 = vrot.lane.b32.xlu0 %v427, 16
      %v1023 = vpop.permute.xlu0 %1022
      %1024 = vrot.lane.b32.xlu0 %v428, 16
      %v1025 = vpop.permute.xlu0 %1024
      %1026 = vrot.lane.b32.xlu0 %v429, 16
      %v1027 = vpop.permute.xlu0 %1026
      %1028 = vrot.lane.b32.xlu0 %v430, 16
      %v1029 = vpop.permute.xlu0 %1028
      %1030 = vrot.lane.b32.xlu0 %v431, 16
      %v1031 = vpop.permute.xlu0 %1030
      %1032 = vrot.lane.b32.xlu0 %v432, 16
      %v1033 = vpop.permute.xlu0 %1032
      %1034 = vrot.lane.b32.xlu0 %v433, 16
      %v1035 = vpop.permute.xlu0 %1034
      %1036 = vrot.lane.b32.xlu0 %v434, 16
      %v1037 = vpop.permute.xlu0 %1036
      %1038 = vrot.lane.b32.xlu0 %v435, 16
      %v1039 = vpop.permute.xlu0 %1038
      %1040 = vrot.lane.b32.xlu0 %v436, 16
      %v1041 = vpop.permute.xlu0 %1040
      %1042 = vrot.lane.b32.xlu0 %v437, 16
      %v1043 = vpop.permute.xlu0 %1042
      %1044 = vrot.lane.b32.xlu0 %v438, 16
      %v1045 = vpop.permute.xlu0 %1044
      %1046 = vrot.lane.b32.xlu0 %v439, 16
      %v1047 = vpop.permute.xlu0 %1046
      %1048 = vrot.lane.b32.xlu0 %v440, 16
      %v1049 = vpop.permute.xlu0 %1048
      %1114 = vrot.lane.b32.xlu0 %v441, 20
      %v1115 = vpop.permute.xlu0 %1114
      %1116 = vrot.lane.b32.xlu0 %v442, 20
      %v1117 = vpop.permute.xlu0 %1116
      %1118 = vrot.lane.b32.xlu0 %v443, 20
      %v1119 = vpop.permute.xlu0 %1118
      %1120 = vrot.lane.b32.xlu0 %v444, 20
      %v1121 = vpop.permute.xlu0 %1120
      %1122 = vrot.lane.b32.xlu0 %v445, 20
      %v1123 = vpop.permute.xlu0 %1122
      %1124 = vrot.lane.b32.xlu0 %v446, 20
      %v1125 = vpop.permute.xlu0 %1124
      %1126 = vrot.lane.b32.xlu0 %v447, 20
      %v1127 = vpop.permute.xlu0 %1126
      %1128 = vrot.lane.b32.xlu0 %v448, 20
      %v1129 = vpop.permute.xlu0 %1128
      %1130 = vrot.lane.b32.xlu0 %v449, 20
      %v1131 = vpop.permute.xlu0 %1130
      %1132 = vrot.lane.b32.xlu0 %v450, 20
      %v1133 = vpop.permute.xlu0 %1132
      %1134 = vrot.lane.b32.xlu0 %v451, 20
      %v1135 = vpop.permute.xlu0 %1134
      %1136 = vrot.lane.b32.xlu0 %v452, 20
      %v1137 = vpop.permute.xlu0 %1136
      %1138 = vrot.lane.b32.xlu0 %v453, 20
      %v1139 = vpop.permute.xlu0 %1138
      %1140 = vrot.lane.b32.xlu0 %v454, 20
      %v1141 = vpop.permute.xlu0 %1140
      %1142 = vrot.lane.b32.xlu0 %v455, 20
      %v1143 = vpop.permute.xlu0 %1142
      %1144 = vrot.lane.b32.xlu0 %v456, 20
      %v1145 = vpop.permute.xlu0 %1144
      %1146 = vrot.lane.b32.xlu0 %v457, 20
      %v1147 = vpop.permute.xlu0 %1146
      %1148 = vrot.lane.b32.xlu0 %v458, 20
      %v1149 = vpop.permute.xlu0 %1148
      %1150 = vrot.lane.b32.xlu0 %v459, 20
      %v1151 = vpop.permute.xlu0 %1150
      %1152 = vrot.lane.b32.xlu0 %v460, 20
      %v1153 = vpop.permute.xlu0 %1152
      %1154 = vrot.lane.b32.xlu0 %v461, 20
      %v1155 = vpop.permute.xlu0 %1154
      %1156 = vrot.lane.b32.xlu0 %v462, 20
      %v1157 = vpop.permute.xlu0 %1156
      %1158 = vrot.lane.b32.xlu0 %v463, 20
      %v1159 = vpop.permute.xlu0 %1158
      %1160 = vrot.lane.b32.xlu0 %v464, 20
      %v1161 = vpop.permute.xlu0 %1160
      %1162 = vrot.lane.b32.xlu0 %v465, 20
      %v1163 = vpop.permute.xlu0 %1162
      %1164 = vrot.lane.b32.xlu0 %v466, 20
      %v1165 = vpop.permute.xlu0 %1164
      %1166 = vrot.lane.b32.xlu0 %v467, 20
      %v1167 = vpop.permute.xlu0 %1166
      %1168 = vrot.lane.b32.xlu0 %v468, 20
      %v1169 = vpop.permute.xlu0 %1168
      %1170 = vrot.lane.b32.xlu0 %v469, 20
      %v1171 = vpop.permute.xlu0 %1170
      %1172 = vrot.lane.b32.xlu0 %v470, 20
      %v1173 = vpop.permute.xlu0 %1172
      %1174 = vrot.lane.b32.xlu0 %v471, 20
      %v1175 = vpop.permute.xlu0 %1174
      %1176 = vrot.lane.b32.xlu0 %v472, 20
      %v1177 = vpop.permute.xlu0 %1176
      %1242 = vrot.lane.b32.xlu0 %v474, 24
      %v1243 = vpop.permute.xlu0 %1242
      %1244 = vrot.lane.b32.xlu0 %v475, 24
      %v1245 = vpop.permute.xlu0 %1244
      %1246 = vrot.lane.b32.xlu0 %v476, 24
      %v1247 = vpop.permute.xlu0 %1246
      %1248 = vrot.lane.b32.xlu0 %v477, 24
      %v1249 = vpop.permute.xlu0 %1248
      %1250 = vrot.lane.b32.xlu0 %v478, 24
      %v1251 = vpop.permute.xlu0 %1250
      %1252 = vrot.lane.b32.xlu0 %v479, 24
      %v1253 = vpop.permute.xlu0 %1252
      %1254 = vrot.lane.b32.xlu0 %v480, 24
      %v1255 = vpop.permute.xlu0 %1254
      %1256 = vrot.lane.b32.xlu0 %v481, 24
      %v1257 = vpop.permute.xlu0 %1256
      %1258 = vrot.lane.b32.xlu0 %v482, 24
      %v1259 = vpop.permute.xlu0 %1258
      %1260 = vrot.lane.b32.xlu0 %v483, 24
      %v1261 = vpop.permute.xlu0 %1260
      %1262 = vrot.lane.b32.xlu0 %v484, 24
      %v1263 = vpop.permute.xlu0 %1262
      %1264 = vrot.lane.b32.xlu0 %v485, 24
      %v1265 = vpop.permute.xlu0 %1264
      %1266 = vrot.lane.b32.xlu0 %v486, 24
      %v1267 = vpop.permute.xlu0 %1266
      %1268 = vrot.lane.b32.xlu0 %v487, 24
      %v1269 = vpop.permute.xlu0 %1268
      %1270 = vrot.lane.b32.xlu0 %v488, 24
      %v1271 = vpop.permute.xlu0 %1270
      %1272 = vrot.lane.b32.xlu0 %v489, 24
      %v1273 = vpop.permute.xlu0 %1272
      %1274 = vrot.lane.b32.xlu0 %v490, 24
      %v1275 = vpop.permute.xlu0 %1274
      %1276 = vrot.lane.b32.xlu0 %v491, 24
      %v1277 = vpop.permute.xlu0 %1276
      %1278 = vrot.lane.b32.xlu0 %v492, 24
      %v1279 = vpop.permute.xlu0 %1278
      %1280 = vrot.lane.b32.xlu0 %v493, 24
      %v1281 = vpop.permute.xlu0 %1280
      %1282 = vrot.lane.b32.xlu0 %v494, 24
      %v1283 = vpop.permute.xlu0 %1282
      %1284 = vrot.lane.b32.xlu0 %v495, 24
      %v1285 = vpop.permute.xlu0 %1284
      %1286 = vrot.lane.b32.xlu0 %v496, 24
      %v1287 = vpop.permute.xlu0 %1286
      %1288 = vrot.lane.b32.xlu0 %v497, 24
      %v1289 = vpop.permute.xlu0 %1288
      %1290 = vrot.lane.b32.xlu0 %v498, 24
      %v1291 = vpop.permute.xlu0 %1290
      %1292 = vrot.lane.b32.xlu0 %v499, 24
      %v1293 = vpop.permute.xlu0 %1292
      %1294 = vrot.lane.b32.xlu0 %v500, 24
      %v1295 = vpop.permute.xlu0 %1294
      %1296 = vrot.lane.b32.xlu0 %v501, 24
      %v1297 = vpop.permute.xlu0 %1296
      %1298 = vrot.lane.b32.xlu0 %v502, 24
      %v1299 = vpop.permute.xlu0 %1298
      %1300 = vrot.lane.b32.xlu0 %v503, 24
      %v1301 = vpop.permute.xlu0 %1300
      %1302 = vrot.lane.b32.xlu0 %v504, 24
      %v1303 = vpop.permute.xlu0 %1302
      %1304 = vrot.lane.b32.xlu0 %v505, 24
      %v1305 = vpop.permute.xlu0 %1304
      %1370 = vrot.lane.b32.xlu0 %v506, 28
      %v1371 = vpop.permute.xlu0 %1370
      %1372 = vrot.lane.b32.xlu0 %v507, 28
      %v1373 = vpop.permute.xlu0 %1372
      %1374 = vrot.lane.b32.xlu0 %v508, 28
      %v1375 = vpop.permute.xlu0 %1374
      %1376 = vrot.lane.b32.xlu0 %v509, 28
      %v1377 = vpop.permute.xlu0 %1376
      %1378 = vrot.lane.b32.xlu0 %v510, 28
      %v1379 = vpop.permute.xlu0 %1378
      %1380 = vrot.lane.b32.xlu0 %v511, 28
      %v1381 = vpop.permute.xlu0 %1380
      %1382 = vrot.lane.b32.xlu0 %v512, 28
      %v1383 = vpop.permute.xlu0 %1382
      %1384 = vrot.lane.b32.xlu0 %v513, 28
      %v1385 = vpop.permute.xlu0 %1384
      %1386 = vrot.lane.b32.xlu0 %v514, 28
      %v1387 = vpop.permute.xlu0 %1386
      %1388 = vrot.lane.b32.xlu0 %v515, 28
      %v1389 = vpop.permute.xlu0 %1388
      %1390 = vrot.lane.b32.xlu0 %v516, 28
      %v1391 = vpop.permute.xlu0 %1390
      %1392 = vrot.lane.b32.xlu0 %v517, 28
      %v1393 = vpop.permute.xlu0 %1392
      %1394 = vrot.lane.b32.xlu0 %v518, 28
      %v1395 = vpop.permute.xlu0 %1394
      %1396 = vrot.lane.b32.xlu0 %v519, 28
      %v1397 = vpop.permute.xlu0 %1396
      %1398 = vrot.lane.b32.xlu0 %v520, 28
      %v1399 = vpop.permute.xlu0 %1398
      %1400 = vrot.lane.b32.xlu0 %v521, 28
      %v1401 = vpop.permute.xlu0 %1400
      %1402 = vrot.lane.b32.xlu0 %v522, 28
      %v1403 = vpop.permute.xlu0 %1402
      %1404 = vrot.lane.b32.xlu0 %v523, 28
      %v1405 = vpop.permute.xlu0 %1404
      %1406 = vrot.lane.b32.xlu0 %v524, 28
      %v1407 = vpop.permute.xlu0 %1406
      %1408 = vrot.lane.b32.xlu0 %v525, 28
      %v1409 = vpop.permute.xlu0 %1408
      %1410 = vrot.lane.b32.xlu0 %v526, 28
      %v1411 = vpop.permute.xlu0 %1410
      %1412 = vrot.lane.b32.xlu0 %v527, 28
      %v1413 = vpop.permute.xlu0 %1412
      %1414 = vrot.lane.b32.xlu0 %v528, 28
      %v1415 = vpop.permute.xlu0 %1414
      %1416 = vrot.lane.b32.xlu0 %v529, 28
      %v1417 = vpop.permute.xlu0 %1416
      %1418 = vrot.lane.b32.xlu0 %v530, 28
      %v1419 = vpop.permute.xlu0 %1418
      %1420 = vrot.lane.b32.xlu0 %v531, 28
      %v1421 = vpop.permute.xlu0 %1420
      %1422 = vrot.lane.b32.xlu0 %v532, 28
      %v1423 = vpop.permute.xlu0 %1422
      %1424 = vrot.lane.b32.xlu0 %v533, 28
      %v1425 = vpop.permute.xlu0 %1424
      %1426 = vrot.lane.b32.xlu0 %v534, 28
      %v1427 = vpop.permute.xlu0 %1426
      %1428 = vrot.lane.b32.xlu0 %v535, 28
      %v1429 = vpop.permute.xlu0 %1428
      %1430 = vrot.lane.b32.xlu0 %v536, 28
      %v1431 = vpop.permute.xlu0 %1430
      %1432 = vrot.lane.b32.xlu0 %v537, 28
      %v1433 = vpop.permute.xlu0 %1432
      %1498 = vrot.lane.b32.xlu0 %v538, 32
      %v1499 = vpop.permute.xlu0 %1498
      %1500 = vrot.lane.b32.xlu0 %v539, 32
      %v1501 = vpop.permute.xlu0 %1500
      %1502 = vrot.lane.b32.xlu0 %v540, 32
      %v1503 = vpop.permute.xlu0 %1502
      %1504 = vrot.lane.b32.xlu0 %v541, 32
      %v1505 = vpop.permute.xlu0 %1504
      %1506 = vrot.lane.b32.xlu0 %v542, 32
      %v1507 = vpop.permute.xlu0 %1506
      %1508 = vrot.lane.b32.xlu0 %v543, 32
      %v1509 = vpop.permute.xlu0 %1508
      %1510 = vrot.lane.b32.xlu0 %v544, 32
      %v1511 = vpop.permute.xlu0 %1510
      %1512 = vrot.lane.b32.xlu0 %v545, 32
      %v1513 = vpop.permute.xlu0 %1512
      %1514 = vrot.lane.b32.xlu0 %v546, 32
      %v1515 = vpop.permute.xlu0 %1514
      %1516 = vrot.lane.b32.xlu0 %v547, 32
      %v1517 = vpop.permute.xlu0 %1516
      %1518 = vrot.lane.b32.xlu0 %v548, 32
      %v1519 = vpop.permute.xlu0 %1518
      %1520 = vrot.lane.b32.xlu0 %v549, 32
      %v1521 = vpop.permute.xlu0 %1520
      %1522 = vrot.lane.b32.xlu0 %v550, 32
      %v1523 = vpop.permute.xlu0 %1522
      %1524 = vrot.lane.b32.xlu0 %v551, 32
      %v1525 = vpop.permute.xlu0 %1524
      %1526 = vrot.lane.b32.xlu0 %v552, 32
      %v1527 = vpop.permute.xlu0 %1526
      %1528 = vrot.lane.b32.xlu0 %v553, 32
      %v1529 = vpop.permute.xlu0 %1528
      %1530 = vrot.lane.b32.xlu0 %v554, 32
      %v1531 = vpop.permute.xlu0 %1530
      %1532 = vrot.lane.b32.xlu0 %v555, 32
      %v1533 = vpop.permute.xlu0 %1532
      %1534 = vrot.lane.b32.xlu0 %v556, 32
      %v1535 = vpop.permute.xlu0 %1534
      %1536 = vrot.lane.b32.xlu0 %v557, 32
      %v1537 = vpop.permute.xlu0 %1536
      %1538 = vrot.lane.b32.xlu0 %v558, 32
      %v1539 = vpop.permute.xlu0 %1538
      %1540 = vrot.lane.b32.xlu0 %v559, 32
      %v1541 = vpop.permute.xlu0 %1540
      %1542 = vrot.lane.b32.xlu0 %v560, 32
      %v1543 = vpop.permute.xlu0 %1542
      %1544 = vrot.lane.b32.xlu0 %v561, 32
      %v1545 = vpop.permute.xlu0 %1544
      %1546 = vrot.lane.b32.xlu0 %v562, 32
      %v1547 = vpop.permute.xlu0 %1546
      %1548 = vrot.lane.b32.xlu0 %v563, 32
      %v1549 = vpop.permute.xlu0 %1548
      %1550 = vrot.lane.b32.xlu0 %v564, 32
      %v1551 = vpop.permute.xlu0 %1550
      %1552 = vrot.lane.b32.xlu0 %v565, 32
      %v1553 = vpop.permute.xlu0 %1552
      %1554 = vrot.lane.b32.xlu0 %v566, 32
      %v1555 = vpop.permute.xlu0 %1554
      %1556 = vrot.lane.b32.xlu0 %v567, 32
      %v1557 = vpop.permute.xlu0 %1556
      %1558 = vrot.lane.b32.xlu0 %v568, 32
      %v1559 = vpop.permute.xlu0 %1558
      %1560 = vrot.lane.b32.xlu0 %v569, 32
      %v1561 = vpop.permute.xlu0 %1560
      %vm1594 = vcmask 31744
      %v1595 = vsel %vm1594, %v280, %v603
      %v1596 = vsel %vm1594, %v281, %v605
      %v1597 = vsel %vm1594, %v282, %v607
      %v1598 = vsel %vm1594, %v283, %v609
      %v1599 = vsel %vm1594, %v284, %v611
      %v1600 = vsel %vm1594, %v285, %v613
      %v1601 = vsel %vm1594, %v286, %v615
      %v1602 = vsel %vm1594, %v287, %v617
      %v1603 = vsel %vm1594, %v288, %v619
      %v1604 = vsel %vm1594, %v289, %v621
      %v1605 = vsel %vm1594, %v290, %v623
      %v1606 = vsel %vm1594, %v291, %v625
      %v1607 = vsel %vm1594, %v292, %v627
      %v1608 = vsel %vm1594, %v293, %v629
      %v1609 = vsel %vm1594, %v294, %v631
      %v1610 = vsel %vm1594, %v295, %v633
      %v1611 = vsel %vm1594, %v296, %v635
      %v1612 = vsel %vm1594, %v297, %v637
      %v1613 = vsel %vm1594, %v298, %v639
      %v1614 = vsel %vm1594, %v299, %v641
      %v1615 = vsel %vm1594, %v300, %v643
      %v1616 = vsel %vm1594, %v301, %v645
      %v1617 = vsel %vm1594, %v302, %v647
      %v1618 = vsel %vm1594, %v303, %v649
      %v1619 = vsel %vm1594, %v304, %v651
      %v1620 = vsel %vm1594, %v305, %v653
      %v1621 = vsel %vm1594, %v306, %v655
      %v1622 = vsel %vm1594, %v307, %v657
      %v1623 = vsel %vm1594, %v308, %v659
      %v1624 = vsel %vm1594, %v309, %v661
      %v1625 = vsel %vm1594, %v310, %v663
      %v1626 = vsel %vm1594, %v311, %v665
      %vm1627 = vcmask 64512
      %v1628 = vsel %vm1627, %v1595, %v731
      %v1629 = vsel %vm1627, %v1596, %v733
      %v1630 = vsel %vm1627, %v1597, %v735
      %v1631 = vsel %vm1627, %v1598, %v737
      %v1632 = vsel %vm1627, %v1599, %v739
      %v1633 = vsel %vm1627, %v1600, %v741
      %v1634 = vsel %vm1627, %v1601, %v743
      %v1635 = vsel %vm1627, %v1602, %v745
      %v1636 = vsel %vm1627, %v1603, %v747
      %v1637 = vsel %vm1627, %v1604, %v749
      %v1638 = vsel %vm1627, %v1605, %v751
      %v1639 = vsel %vm1627, %v1606, %v753
      %v1640 = vsel %vm1627, %v1607, %v755
      %v1641 = vsel %vm1627, %v1608, %v757
      %v1642 = vsel %vm1627, %v1609, %v759
      %v1643 = vsel %vm1627, %v1610, %v761
      %v1644 = vsel %vm1627, %v1611, %v763
      %v1645 = vsel %vm1627, %v1612, %v765
      %v1646 = vsel %vm1627, %v1613, %v767
      %v1647 = vsel %vm1627, %v1614, %v769
      %v1648 = vsel %vm1627, %v1615, %v771
      %v1649 = vsel %vm1627, %v1616, %v773
      %v1650 = vsel %vm1627, %v1617, %v775
      %v1651 = vsel %vm1627, %v1618, %v777
      %v1652 = vsel %vm1627, %v1619, %v779
      %v1653 = vsel %vm1627, %v1620, %v781
      %v1654 = vsel %vm1627, %v1621, %v783
      %v1655 = vsel %vm1627, %v1622, %v785
      %v1656 = vsel %vm1627, %v1623, %v787
      %v1657 = vsel %vm1627, %v1624, %v789
      %v1658 = vsel %vm1627, %v1625, %v791
      %v1659 = vsel %vm1627, %v1626, %v793
      %vm1660 = vcmask 97280
      %v1661 = vsel %vm1660, %v1628, %v859
      %v1662 = vsel %vm1660, %v1629, %v861
      %v1663 = vsel %vm1660, %v1630, %v863
      %v1664 = vsel %vm1660, %v1631, %v865
      %v1665 = vsel %vm1660, %v1632, %v867
      %v1666 = vsel %vm1660, %v1633, %v869
      %v1667 = vsel %vm1660, %v1634, %v871
      %v1668 = vsel %vm1660, %v1635, %v873
      %v1669 = vsel %vm1660, %v1636, %v875
      %v1670 = vsel %vm1660, %v1637, %v877
      %v1671 = vsel %vm1660, %v1638, %v879
      %v1672 = vsel %vm1660, %v1639, %v881
      %v1673 = vsel %vm1660, %v1640, %v883
      %v1674 = vsel %vm1660, %v1641, %v885
      %v1675 = vsel %vm1660, %v1642, %v887
      %v1676 = vsel %vm1660, %v1643, %v889
      %v1677 = vsel %vm1660, %v1644, %v891
      %v1678 = vsel %vm1660, %v1645, %v893
      %v1679 = vsel %vm1660, %v1646, %v895
      %v1680 = vsel %vm1660, %v1647, %v897
      %v1681 = vsel %vm1660, %v1648, %v899
      %v1682 = vsel %vm1660, %v1649, %v901
      %v1683 = vsel %vm1660, %v1650, %v903
      %v1684 = vsel %vm1660, %v1651, %v905
      %v1685 = vsel %vm1660, %v1652, %v907
      %v1686 = vsel %vm1660, %v1653, %v909
      %v1687 = vsel %vm1660, %v1654, %v911
      %v1688 = vsel %vm1660, %v1655, %v913
      %v1689 = vsel %vm1660, %v1656, %v915
      %v1690 = vsel %vm1660, %v1657, %v917
      %v1691 = vsel %vm1660, %v1658, %v919
      %v1692 = vsel %vm1660, %v1659, %v921
      %vm1693 = vcmask 130048
      %v1694 = vsel %vm1693, %v1661, %v987
      %v1695 = vsel %vm1693, %v1662, %v989
      %v1696 = vsel %vm1693, %v1663, %v991
      %v1697 = vsel %vm1693, %v1664, %v993
      %v1698 = vsel %vm1693, %v1665, %v995
      %v1699 = vsel %vm1693, %v1666, %v997
      %v1700 = vsel %vm1693, %v1667, %v999
      %v1701 = vsel %vm1693, %v1668, %v1001
      %v1702 = vsel %vm1693, %v1669, %v1003
      %v1703 = vsel %vm1693, %v1670, %v1005
      %v1704 = vsel %vm1693, %v1671, %v1007
      %v1705 = vsel %vm1693, %v1672, %v1009
      %v1706 = vsel %vm1693, %v1673, %v1011
      %v1707 = vsel %vm1693, %v1674, %v1013
      %v1708 = vsel %vm1693, %v1675, %v1015
      %v1709 = vsel %vm1693, %v1676, %v1017
      %v1710 = vsel %vm1693, %v1677, %v1019
      %v1711 = vsel %vm1693, %v1678, %v1021
      %v1712 = vsel %vm1693, %v1679, %v1023
      %v1713 = vsel %vm1693, %v1680, %v1025
      %v1714 = vsel %vm1693, %v1681, %v1027
      %v1715 = vsel %vm1693, %v1682, %v1029
      %v1716 = vsel %vm1693, %v1683, %v1031
      %v1717 = vsel %vm1693, %v1684, %v1033
      %v1718 = vsel %vm1693, %v1685, %v1035
      %v1719 = vsel %vm1693, %v1686, %v1037
      %v1720 = vsel %vm1693, %v1687, %v1039
      %v1721 = vsel %vm1693, %v1688, %v1041
      %v1722 = vsel %vm1693, %v1689, %v1043
      %v1723 = vsel %vm1693, %v1690, %v1045
      %v1724 = vsel %vm1693, %v1691, %v1047
      %v1725 = vsel %vm1693, %v1692, %v1049
      %vm1726 = vcmask 162816
      %v1727 = vsel %vm1726, %v1694, %v1115
      %v1728 = vsel %vm1726, %v1695, %v1117
      %v1729 = vsel %vm1726, %v1696, %v1119
      %v1730 = vsel %vm1726, %v1697, %v1121
      %v1731 = vsel %vm1726, %v1698, %v1123
      %v1732 = vsel %vm1726, %v1699, %v1125
      %v1733 = vsel %vm1726, %v1700, %v1127
      %v1734 = vsel %vm1726, %v1701, %v1129
      %v1735 = vsel %vm1726, %v1702, %v1131
      %v1736 = vsel %vm1726, %v1703, %v1133
      %v1737 = vsel %vm1726, %v1704, %v1135
      %v1738 = vsel %vm1726, %v1705, %v1137
      %v1739 = vsel %vm1726, %v1706, %v1139
      %v1740 = vsel %vm1726, %v1707, %v1141
      %v1741 = vsel %vm1726, %v1708, %v1143
      %v1742 = vsel %vm1726, %v1709, %v1145
      %v1743 = vsel %vm1726, %v1710, %v1147
      %v1744 = vsel %vm1726, %v1711, %v1149
      %v1745 = vsel %vm1726, %v1712, %v1151
      %v1746 = vsel %vm1726, %v1713, %v1153
      %v1747 = vsel %vm1726, %v1714, %v1155
      %v1748 = vsel %vm1726, %v1715, %v1157
      %v1749 = vsel %vm1726, %v1716, %v1159
      %v1750 = vsel %vm1726, %v1717, %v1161
      %v1751 = vsel %vm1726, %v1718, %v1163
      %v1752 = vsel %vm1726, %v1719, %v1165
      %v1753 = vsel %vm1726, %v1720, %v1167
      %v1754 = vsel %vm1726, %v1721, %v1169
      %v1755 = vsel %vm1726, %v1722, %v1171
      %v1756 = vsel %vm1726, %v1723, %v1173
      %v1757 = vsel %vm1726, %v1724, %v1175
      %v1758 = vsel %vm1726, %v1725, %v1177
      %vm1759 = vcmask 195584
      %v1760 = vsel %vm1759, %v1727, %v1243
      %v1761 = vsel %vm1759, %v1728, %v1245
      %v1762 = vsel %vm1759, %v1729, %v1247
      %v1763 = vsel %vm1759, %v1730, %v1249
      %v1764 = vsel %vm1759, %v1731, %v1251
      %v1765 = vsel %vm1759, %v1732, %v1253
      %v1766 = vsel %vm1759, %v1733, %v1255
      %v1767 = vsel %vm1759, %v1734, %v1257
      %v1768 = vsel %vm1759, %v1735, %v1259
      %v1769 = vsel %vm1759, %v1736, %v1261
      %v1770 = vsel %vm1759, %v1737, %v1263
      %v1771 = vsel %vm1759, %v1738, %v1265
      %v1772 = vsel %vm1759, %v1739, %v1267
      %v1773 = vsel %vm1759, %v1740, %v1269
      %v1774 = vsel %vm1759, %v1741, %v1271
      %v1775 = vsel %vm1759, %v1742, %v1273
      %v1776 = vsel %vm1759, %v1743, %v1275
      %v1777 = vsel %vm1759, %v1744, %v1277
      %v1778 = vsel %vm1759, %v1745, %v1279
      %v1779 = vsel %vm1759, %v1746, %v1281
      %v1780 = vsel %vm1759, %v1747, %v1283
      %v1781 = vsel %vm1759, %v1748, %v1285
      %v1782 = vsel %vm1759, %v1749, %v1287
      %v1783 = vsel %vm1759, %v1750, %v1289
      %v1784 = vsel %vm1759, %v1751, %v1291
      %v1785 = vsel %vm1759, %v1752, %v1293
      %v1786 = vsel %vm1759, %v1753, %v1295
      %v1787 = vsel %vm1759, %v1754, %v1297
      %v1788 = vsel %vm1759, %v1755, %v1299
      %v1789 = vsel %vm1759, %v1756, %v1301
      %v1790 = vsel %vm1759, %v1757, %v1303
      %v1791 = vsel %vm1759, %v1758, %v1305
      %vm1792 = vcmask 228352
      %v1793 = vsel %vm1792, %v1760, %v1371
      %v1794 = vsel %vm1792, %v1761, %v1373
      %v1795 = vsel %vm1792, %v1762, %v1375
      %v1796 = vsel %vm1792, %v1763, %v1377
      %v1797 = vsel %vm1792, %v1764, %v1379
      %v1798 = vsel %vm1792, %v1765, %v1381
      %v1799 = vsel %vm1792, %v1766, %v1383
      %v1800 = vsel %vm1792, %v1767, %v1385
      %v1801 = vsel %vm1792, %v1768, %v1387
      %v1802 = vsel %vm1792, %v1769, %v1389
      %v1803 = vsel %vm1792, %v1770, %v1391
      %v1804 = vsel %vm1792, %v1771, %v1393
      %v1805 = vsel %vm1792, %v1772, %v1395
      %v1806 = vsel %vm1792, %v1773, %v1397
      %v1807 = vsel %vm1792, %v1774, %v1399
      %v1808 = vsel %vm1792, %v1775, %v1401
      %v1809 = vsel %vm1792, %v1776, %v1403
      %v1810 = vsel %vm1792, %v1777, %v1405
      %v1811 = vsel %vm1792, %v1778, %v1407
      %v1812 = vsel %vm1792, %v1779, %v1409
      %v1813 = vsel %vm1792, %v1780, %v1411
      %v1814 = vsel %vm1792, %v1781, %v1413
      %v1815 = vsel %vm1792, %v1782, %v1415
      %v1816 = vsel %vm1792, %v1783, %v1417
      %v1817 = vsel %vm1792, %v1784, %v1419
      %v1818 = vsel %vm1792, %v1785, %v1421
      %v1819 = vsel %vm1792, %v1786, %v1423
      %v1820 = vsel %vm1792, %v1787, %v1425
      %v1821 = vsel %vm1792, %v1788, %v1427
      %v1822 = vsel %vm1792, %v1789, %v1429
      %v1823 = vsel %vm1792, %v1790, %v1431
      %v1824 = vsel %vm1792, %v1791, %v1433
      %vm1825 = vcmask 261120
      %v1826 = vsel %vm1825, %v1793, %v1499
      %v1827 = vsel %vm1825, %v1794, %v1501
      %v1828 = vsel %vm1825, %v1795, %v1503
      %v1829 = vsel %vm1825, %v1796, %v1505
      %v1830 = vsel %vm1825, %v1797, %v1507
      %v1831 = vsel %vm1825, %v1798, %v1509
      %v1832 = vsel %vm1825, %v1799, %v1511
      %v1833 = vsel %vm1825, %v1800, %v1513
      %v1834 = vsel %vm1825, %v1801, %v1515
      %v1835 = vsel %vm1825, %v1802, %v1517
      %v1836 = vsel %vm1825, %v1803, %v1519
      %v1837 = vsel %vm1825, %v1804, %v1521
      %v1838 = vsel %vm1825, %v1805, %v1523
      %v1839 = vsel %vm1825, %v1806, %v1525
      %v1840 = vsel %vm1825, %v1807, %v1527
      %v1841 = vsel %vm1825, %v1808, %v1529
      %v1842 = vsel %vm1825, %v1809, %v1531
      %v1843 = vsel %vm1825, %v1810, %v1533
      %v1844 = vsel %vm1825, %v1811, %v1535
      %v1845 = vsel %vm1825, %v1812, %v1537
      %v1846 = vsel %vm1825, %v1813, %v1539
      %v1847 = vsel %vm1825, %v1814, %v1541
      %v1848 = vsel %vm1825, %v1815, %v1543
      %v1849 = vsel %vm1825, %v1816, %v1545
      %v1850 = vsel %vm1825, %v1817, %v1547
      %v1851 = vsel %vm1825, %v1818, %v1549
      %v1852 = vsel %vm1825, %v1819, %v1551
      %v1853 = vsel %vm1825, %v1820, %v1553
      %v1854 = vsel %vm1825, %v1821, %v1555
      %v1855 = vsel %vm1825, %v1822, %v1557
      %v1856 = vsel %vm1825, %v1823, %v1559
      %v1857 = vsel %vm1825, %v1824, %v1561
      %v1858 = vpack.c.bf16 %v1827, %v1826
      %v1859 = vpack.c.bf16 %v1829, %v1828
      %v1860 = vpack.c.bf16 %v1831, %v1830
      %v1861 = vpack.c.bf16 %v1833, %v1832
      %v1862 = vpack.c.bf16 %v1835, %v1834
      %v1863 = vpack.c.bf16 %v1837, %v1836
      %v1864 = vpack.c.bf16 %v1839, %v1838
      %v1865 = vpack.c.bf16 %v1841, %v1840
      %v1866 = vpack.c.bf16 %v1843, %v1842
      %v1867 = vpack.c.bf16 %v1845, %v1844
      %v1868 = vpack.c.bf16 %v1847, %v1846
      %v1869 = vpack.c.bf16 %v1849, %v1848
      %v1870 = vpack.c.bf16 %v1851, %v1850
      %v1871 = vpack.c.bf16 %v1853, %v1852
      %v1872 = vpack.c.bf16 %v1855, %v1854
      %v1873 = vpack.c.bf16 %v1857, %v1856
      %v1874 = vld [vmem:[%s1] sm:$0xf]
      %v1875 = vld [vmem:[%s1 + $0x4] sm:$0xf]
      %v1876 = vld [vmem:[%s1 + $0x8] sm:$0xf]
      %v1877 = vld [vmem:[%s1 + $0xc] sm:$0xf]
      %v1878 = vld [vmem:[%s1 + $0x10] sm:$0x3]
      %v1879 = vld [vmem:[%s2] sm:$0x1]
      %v1881 = vperm.slane %v1879, 0
      %v1888 = vunpack.c.l.b16 %v1874
      %v1889 = vunpack.c.l.b16 %v1875
      %v1890 = vunpack.c.l.b16 %v1876
      %v1891 = vunpack.c.l.b16 %v1877
      %v1892 = vunpack.c.l.b16 %v1878
      %v1893 = vpack.c.b16 %v1889, %v1888
      %v1894 = vpack.c.b16 %v1891, %v1890
      %v1895 = vpack.c.b16 %v1892, %v1892
      %vm1898 = vcmask 293888
      %v1900 = vsel %vm1898, %v1858, 0
      %v1903 = vsel %vm1898, %v1859, 0
      %v1906 = vsel %vm1898, %v1860, 0
      %v1909 = vsel %vm1898, %v1861, 0
      %v1912 = vsel %vm1898, %v1862, 0
      %v1915 = vsel %vm1898, %v1863, 0
      %v1918 = vsel %vm1898, %v1864, 0
      %v1921 = vsel %vm1898, %v1865, 0
      %v1924 = vsel %vm1898, %v1866, 0
      %v1927 = vsel %vm1898, %v1867, 0
      %v1930 = vsel %vm1898, %v1868, 0
      %v1933 = vsel %vm1898, %v1869, 0
      %v1936 = vsel %vm1898, %v1870, 0
      %v1939 = vsel %vm1898, %v1871, 0
      %v1942 = vsel %vm1898, %v1872, 0
      %v1945 = vsel %vm1898, %v1873, 0
      %vm1947 = vcmask 1041408
      %v1949 = vsel %vm1947, %v1895, 0
      %1951 = vmatpush.bf16.msra.mxu0 0
      %1952 = vmatpush.bf16.msra.mxu0 0
      %1953 = vmatpush.bf16.msra.mxu0 0
      %1954 = vmatpush.bf16.msra.mxu0 0
      %1955 = vmatpush.bf16.msra.mxu0 0
      %1956 = vmatpush.bf16.msra.mxu0 %v1949
      %1957 = vmatpush.bf16.msra.mxu0 %v1894
      %1958 = vmatpush.bf16.msra.mxu0 %v1893
      %1959 = vmatmul.bf16.gmra.mxu0 %v1900
      %v1960 = vpop.f32.mrf.mxu0
      %v1961 = vadd.f32 %v1881, %v1960
      %v1962 = vpop.f32.mrf.mxu0
      %v1963 = vadd.f32 %v1881, %v1962
      %1964 = vmatmul.bf16.gmra.mxu0 %v1903
      %v1965 = vpop.f32.mrf.mxu0
      %v1966 = vadd.f32 %v1881, %v1965
      %v1967 = vpop.f32.mrf.mxu0
      %v1968 = vadd.f32 %v1881, %v1967
      %1969 = vmatmul.bf16.gmra.mxu0 %v1906
      %v1970 = vpop.f32.mrf.mxu0
      %v1971 = vadd.f32 %v1881, %v1970
      %v1972 = vpop.f32.mrf.mxu0
      %v1973 = vadd.f32 %v1881, %v1972
      %1974 = vmatmul.bf16.gmra.mxu0 %v1909
      %v1975 = vpop.f32.mrf.mxu0
      %v1976 = vadd.f32 %v1881, %v1975
      %v1977 = vpop.f32.mrf.mxu0
      %v1978 = vadd.f32 %v1881, %v1977
      %1979 = vmatmul.bf16.gmra.mxu0 %v1912
      %v1980 = vpop.f32.mrf.mxu0
      %v1981 = vadd.f32 %v1881, %v1980
      %v1982 = vpop.f32.mrf.mxu0
      %v1983 = vadd.f32 %v1881, %v1982
      %1984 = vmatmul.bf16.gmra.mxu0 %v1915
      %v1985 = vpop.f32.mrf.mxu0
      %v1986 = vadd.f32 %v1881, %v1985
      %v1987 = vpop.f32.mrf.mxu0
      %v1988 = vadd.f32 %v1881, %v1987
      %1989 = vmatmul.bf16.gmra.mxu0 %v1918
      %v1990 = vpop.f32.mrf.mxu0
      %v1991 = vadd.f32 %v1881, %v1990
      %v1992 = vpop.f32.mrf.mxu0
      %v1993 = vadd.f32 %v1881, %v1992
      %1994 = vmatmul.bf16.gmra.mxu0 %v1921
      %v1995 = vpop.f32.mrf.mxu0
      %v1996 = vadd.f32 %v1881, %v1995
      %v1997 = vpop.f32.mrf.mxu0
      %v1998 = vadd.f32 %v1881, %v1997
      %1999 = vmatmul.bf16.gmra.mxu0 %v1924
      %v2000 = vpop.f32.mrf.mxu0
      %v2001 = vadd.f32 %v1881, %v2000
      %v2002 = vpop.f32.mrf.mxu0
      %v2003 = vadd.f32 %v1881, %v2002
      %2004 = vmatmul.bf16.gmra.mxu0 %v1927
      %v2005 = vpop.f32.mrf.mxu0
      %v2006 = vadd.f32 %v1881, %v2005
      %v2007 = vpop.f32.mrf.mxu0
      %v2008 = vadd.f32 %v1881, %v2007
      %2009 = vmatmul.bf16.gmra.mxu0 %v1930
      %v2010 = vpop.f32.mrf.mxu0
      %v2011 = vadd.f32 %v1881, %v2010
      %v2012 = vpop.f32.mrf.mxu0
      %v2013 = vadd.f32 %v1881, %v2012
      %2014 = vmatmul.bf16.gmra.mxu0 %v1933
      %v2015 = vpop.f32.mrf.mxu0
      %v2016 = vadd.f32 %v1881, %v2015
      %v2017 = vpop.f32.mrf.mxu0
      %v2018 = vadd.f32 %v1881, %v2017
      %2019 = vmatmul.bf16.gmra.mxu0 %v1936
      %v2020 = vpop.f32.mrf.mxu0
      %v2021 = vadd.f32 %v1881, %v2020
      %v2022 = vpop.f32.mrf.mxu0
      %v2023 = vadd.f32 %v1881, %v2022
      %2024 = vmatmul.bf16.gmra.mxu0 %v1939
      %v2025 = vpop.f32.mrf.mxu0
      %v2026 = vadd.f32 %v1881, %v2025
      %v2027 = vpop.f32.mrf.mxu0
      %v2028 = vadd.f32 %v1881, %v2027
      %2029 = vmatmul.bf16.gmra.mxu0 %v1942
      %v2030 = vpop.f32.mrf.mxu0
      %v2031 = vadd.f32 %v1881, %v2030
      %v2032 = vpop.f32.mrf.mxu0
      %v2033 = vadd.f32 %v1881, %v2032
      %2034 = vmatmul.bf16.gmra.mxu0 %v1945
      %v2035 = vpop.f32.mrf.mxu0
      %v2036 = vadd.f32 %v1881, %v2035
      %v2037 = vpop.f32.mrf.mxu0
      %v2038 = vadd.f32 %v1881, %v2037
      %2039 = vdwg.mxu0
      %2040 = vst.msk [vmem:[#allocation2] sm:$0xff] %vm1825, 0.0
      %2041 = vst.msk [vmem:[#allocation2 + $0x8] sm:$0xff] %vm1825, 0.0
      %vm2042 = vcmask 254976
      %2043 = vst.msk [vmem:[#allocation2 + $0x10] sm:$0x3] %vm2042, 0.0
      %2044 = vst.msk [vmem:[#allocation2 + $0x18] sm:$0xff] %vm1825, 0.0
      %2045 = vst.msk [vmem:[#allocation2 + $0x20] sm:$0xff] %vm1825, 0.0
      %2046 = vst.msk [vmem:[#allocation2 + $0x28] sm:$0x3] %vm2042, 0.0
      %2047 = vst.msk [vmem:[#allocation2 + $0x30] sm:$0xff] %vm1825, 0.0
      %2048 = vst.msk [vmem:[#allocation2 + $0x38] sm:$0xff] %vm1825, 0.0
      %2049 = vst.msk [vmem:[#allocation2 + $0x40] sm:$0x3] %vm2042, 0.0
      %2050 = vst.msk [vmem:[#allocation2 + $0x48] sm:$0xff] %vm1825, 0.0
      %2051 = vst.msk [vmem:[#allocation2 + $0x50] sm:$0xff] %vm1825, 0.0
      %2052 = vst.msk [vmem:[#allocation2 + $0x58] sm:$0x3] %vm2042, 0.0
      %2053 = vst.msk [vmem:[#allocation2 + $0x60] sm:$0xff] %vm1825, 0.0
      %2054 = vst.msk [vmem:[#allocation2 + $0x68] sm:$0xff] %vm1825, 0.0
      %2055 = vst.msk [vmem:[#allocation2 + $0x70] sm:$0x3] %vm2042, 0.0
      %2056 = vst.msk [vmem:[#allocation2 + $0x78] sm:$0xff] %vm1825, 0.0
      %2057 = vst.msk [vmem:[#allocation2 + $0x80] sm:$0xff] %vm1825, 0.0
      %2058 = vst.msk [vmem:[#allocation2 + $0x88] sm:$0x3] %vm2042, 0.0
      %2059 = vst.msk [vmem:[#allocation2 + $0x90] sm:$0xff] %vm1825, 0.0
      %2060 = vst.msk [vmem:[#allocation2 + $0x98] sm:$0xff] %vm1825, 0.0
      %2061 = vst.msk [vmem:[#allocation2 + $0xa0] sm:$0x3] %vm2042, 0.0
      %2062 = vst.msk [vmem:[#allocation2 + $0xa8] sm:$0xff] %vm1825, 0.0
      %2063 = vst.msk [vmem:[#allocation2 + $0xb0] sm:$0xff] %vm1825, 0.0
      %2064 = vst.msk [vmem:[#allocation2 + $0xb8] sm:$0x3] %vm2042, 0.0
      %2065 = vst.msk [vmem:[#allocation2 + $0xc0] sm:$0xff] %vm1825, 0.0
      %2066 = vst.msk [vmem:[#allocation2 + $0xc8] sm:$0xff] %vm1825, 0.0
      %2067 = vst.msk [vmem:[#allocation2 + $0xd0] sm:$0x3] %vm2042, 0.0
      %2068 = vst.msk [vmem:[#allocation2 + $0xd8] sm:$0xff] %vm1825, 0.0
      %2069 = vst.msk [vmem:[#allocation2 + $0xe0] sm:$0xff] %vm1825, 0.0
      %2070 = vst.msk [vmem:[#allocation2 + $0xe8] sm:$0x3] %vm2042, 0.0
      %2071 = vst.msk [vmem:[#allocation2 + $0xf0] sm:$0xff] %vm1825, 0.0
      %2072 = vst.msk [vmem:[#allocation2 + $0xf8] sm:$0xff] %vm1825, 0.0
      %2073 = vst.msk [vmem:[#allocation2 + $0x100] sm:$0x3] %vm2042, 0.0
      %2074 = vst.msk [vmem:[#allocation2 + $0x108] sm:$0xff] %vm1825, 0.0
      %2075 = vst.msk [vmem:[#allocation2 + $0x110] sm:$0xff] %vm1825, 0.0
      %2076 = vst.msk [vmem:[#allocation2 + $0x118] sm:$0x3] %vm2042, 0.0
      %2077 = vst.msk [vmem:[#allocation2 + $0x120] sm:$0xff] %vm1825, 0.0
      %2078 = vst.msk [vmem:[#allocation2 + $0x128] sm:$0xff] %vm1825, 0.0
      %2079 = vst.msk [vmem:[#allocation2 + $0x130] sm:$0x3] %vm2042, 0.0
      %2080 = vst.msk [vmem:[#allocation2 + $0x138] sm:$0xff] %vm1825, 0.0
      %2081 = vst.msk [vmem:[#allocation2 + $0x140] sm:$0xff] %vm1825, 0.0
      %2082 = vst.msk [vmem:[#allocation2 + $0x148] sm:$0x3] %vm2042, 0.0
      %2083 = vst.msk [vmem:[#allocation2 + $0x150] sm:$0xff] %vm1825, 0.0
      %2084 = vst.msk [vmem:[#allocation2 + $0x158] sm:$0xff] %vm1825, 0.0
      %2085 = vst.msk [vmem:[#allocation2 + $0x160] sm:$0x3] %vm2042, 0.0
      %2086 = vst.msk [vmem:[#allocation2 + $0x168] sm:$0xff] %vm1825, 0.0
      %2087 = vst.msk [vmem:[#allocation2 + $0x170] sm:$0xff] %vm1825, 0.0
      %2088 = vst.msk [vmem:[#allocation2 + $0x178] sm:$0x3] %vm2042, 0.0
      %2089 = vst.msk [vmem:[#allocation2 + $0x180] sm:$0xff] %vm1825, 0.0
      %2090 = vst.msk [vmem:[#allocation2 + $0x188] sm:$0xff] %vm1825, 0.0
      %2091 = vst.msk [vmem:[#allocation2 + $0x190] sm:$0x3] %vm2042, 0.0
      %2092 = vst.msk [vmem:[#allocation2 + $0x198] sm:$0xff] %vm1825, 0.0
      %2093 = vst.msk [vmem:[#allocation2 + $0x1a0] sm:$0xff] %vm1825, 0.0
      %2094 = vst.msk [vmem:[#allocation2 + $0x1a8] sm:$0x3] %vm2042, 0.0
      %v2095 = vmax.f32 %v1961, 0.0
      %v2096 = vmax.f32 %v1963, 0.0
      %v2097 = vmax.f32 %v1966, 0.0
      %v2098 = vmax.f32 %v1968, 0.0
      %v2099 = vmax.f32 %v1971, 0.0
      %v2100 = vmax.f32 %v1973, 0.0
      %v2101 = vmax.f32 %v1976, 0.0
      %v2102 = vmax.f32 %v1978, 0.0
      %v2103 = vmax.f32 %v1981, 0.0
      %v2104 = vmax.f32 %v1983, 0.0
      %v2105 = vmax.f32 %v1986, 0.0
      %v2106 = vmax.f32 %v1988, 0.0
      %v2107 = vmax.f32 %v1991, 0.0
      %v2108 = vmax.f32 %v1993, 0.0
      %v2109 = vmax.f32 %v1996, 0.0
      %v2110 = vmax.f32 %v1998, 0.0
      %v2111 = vmax.f32 %v2001, 0.0
      %v2112 = vmax.f32 %v2003, 0.0
      %v2113 = vmax.f32 %v2006, 0.0
      %v2114 = vmax.f32 %v2008, 0.0
      %v2115 = vmax.f32 %v2011, 0.0
      %v2116 = vmax.f32 %v2013, 0.0
      %v2117 = vmax.f32 %v2016, 0.0
      %v2118 = vmax.f32 %v2018, 0.0
      %v2119 = vmax.f32 %v2021, 0.0
      %v2120 = vmax.f32 %v2023, 0.0
      %v2121 = vmax.f32 %v2026, 0.0
      %v2122 = vmax.f32 %v2028, 0.0
      %v2123 = vmax.f32 %v2031, 0.0
      %v2124 = vmax.f32 %v2033, 0.0
      %v2125 = vmax.f32 %v2036, 0.0
      %v2126 = vmax.f32 %v2038, 0.0
      %s2127 = scalar_lea.vmem [#allocation2], 24
      %2128 = vst.msk [vmem:[%s2127 + $0x1] sm:$0xff] %vm1825, %v2095
      %2129 = vst.msk [vmem:[%s2127 + $0x9] sm:$0xff] %vm1825, %v2096
      %2130 = vst.msk [vmem:[%s2127 + $0x19] sm:$0xff] %vm1825, %v2097
      %2131 = vst.msk [vmem:[%s2127 + $0x21] sm:$0xff] %vm1825, %v2098
      %2132 = vst.msk [vmem:[%s2127 + $0x31] sm:$0xff] %vm1825, %v2099
      %2133 = vst.msk [vmem:[%s2127 + $0x39] sm:$0xff] %vm1825, %v2100
      %2134 = vst.msk [vmem:[%s2127 + $0x49] sm:$0xff] %vm1825, %v2101
      %2135 = vst.msk [vmem:[%s2127 + $0x51] sm:$0xff] %vm1825, %v2102
      %2136 = vst.msk [vmem:[%s2127 + $0x61] sm:$0xff] %vm1825, %v2103
      %2137 = vst.msk [vmem:[%s2127 + $0x69] sm:$0xff] %vm1825, %v2104
      %2138 = vst.msk [vmem:[%s2127 + $0x79] sm:$0xff] %vm1825, %v2105
      %2139 = vst.msk [vmem:[%s2127 + $0x81] sm:$0xff] %vm1825, %v2106
      %2140 = vst.msk [vmem:[%s2127 + $0x91] sm:$0xff] %vm1825, %v2107
      %2141 = vst.msk [vmem:[%s2127 + $0x99] sm:$0xff] %vm1825, %v2108
      %2142 = vst.msk [vmem:[%s2127 + $0xa9] sm:$0xff] %vm1825, %v2109
      %2143 = vst.msk [vmem:[%s2127 + $0xb1] sm:$0xff] %vm1825, %v2110
      %2144 = vst.msk [vmem:[%s2127 + $0xc1] sm:$0xff] %vm1825, %v2111
      %2145 = vst.msk [vmem:[%s2127 + $0xc9] sm:$0xff] %vm1825, %v2112
      %2146 = vst.msk [vmem:[%s2127 + $0xd9] sm:$0xff] %vm1825, %v2113
      %2147 = vst.msk [vmem:[%s2127 + $0xe1] sm:$0xff] %vm1825, %v2114
      %2148 = vst.msk [vmem:[%s2127 + $0xf1] sm:$0xff] %vm1825, %v2115
      %2149 = vst.msk [vmem:[%s2127 + $0xf9] sm:$0xff] %vm1825, %v2116
      %2150 = vst.msk [vmem:[%s2127 + $0x109] sm:$0xff] %vm1825, %v2117
      %2151 = vst.msk [vmem:[%s2127 + $0x111] sm:$0xff] %vm1825, %v2118
      %2152 = vst.msk [vmem:[%s2127 + $0x121] sm:$0xff] %vm1825, %v2119
      %2153 = vst.msk [vmem:[%s2127 + $0x129] sm:$0xff] %vm1825, %v2120
      %2154 = vst.msk [vmem:[%s2127 + $0x139] sm:$0xff] %vm1825, %v2121
      %2155 = vst.msk [vmem:[%s2127 + $0x141] sm:$0xff] %vm1825, %v2122
      %2156 = vst.msk [vmem:[%s2127 + $0x151] sm:$0xff] %vm1825, %v2123
      %2157 = vst.msk [vmem:[%s2127 + $0x159] sm:$0xff] %vm1825, %v2124
      %2158 = vst.msk [vmem:[%s2127 + $0x169] sm:$0xff] %vm1825, %v2125
      %2159 = vst.msk [vmem:[%s2127 + $0x171] sm:$0xff] %vm1825, %v2126
      %v2160 = vld [vmem:[#allocation2] sm:$0xff]
      %v2161 = vld [vmem:[#allocation2 + $0x8] sm:$0xff]
      %v2162 = vld [vmem:[#allocation2 + $0x18] sm:$0xff]
      %v2163 = vld [vmem:[#allocation2 + $0x20] sm:$0xff]
      %v2164 = vld [vmem:[#allocation2 + $0x30] sm:$0xff]
      %v2165 = vld [vmem:[#allocation2 + $0x38] sm:$0xff]
      %v2166 = vld [vmem:[#allocation2 + $0x48] sm:$0xff]
      %v2167 = vld [vmem:[#allocation2 + $0x50] sm:$0xff]
      %v2168 = vld [vmem:[#allocation2 + $0x60] sm:$0xff]
      %v2169 = vld [vmem:[#allocation2 + $0x68] sm:$0xff]
      %v2170 = vld [vmem:[#allocation2 + $0x78] sm:$0xff]
      %v2171 = vld [vmem:[#allocation2 + $0x80] sm:$0xff]
      %v2172 = vld [vmem:[#allocation2 + $0x90] sm:$0xff]
      %v2173 = vld [vmem:[#allocation2 + $0x98] sm:$0xff]
      %v2174 = vld [vmem:[#allocation2 + $0xa8] sm:$0xff]
      %v2175 = vld [vmem:[#allocation2 + $0xb0] sm:$0xff]
      %v2176 = vld [vmem:[#allocation2 + $0xc0] sm:$0xff]
      %v2177 = vld [vmem:[#allocation2 + $0xc8] sm:$0xff]
      %v2178 = vld [vmem:[#allocation2 + $0xd8] sm:$0xff]
      %v2179 = vld [vmem:[#allocation2 + $0xe0] sm:$0xff]
      %v2180 = vld [vmem:[#allocation2 + $0xf0] sm:$0xff]
      %v2181 = vld [vmem:[#allocation2 + $0xf8] sm:$0xff]
      %v2182 = vld [vmem:[#allocation2 + $0x108] sm:$0xff]
      %v2183 = vld [vmem:[#allocation2 + $0x110] sm:$0xff]
      %v2184 = vld [vmem:[#allocation2 + $0x120] sm:$0xff]
      %v2185 = vld [vmem:[#allocation2 + $0x128] sm:$0xff]
      %v2186 = vld [vmem:[#allocation2 + $0x138] sm:$0xff]
      %v2187 = vld [vmem:[#allocation2 + $0x140] sm:$0xff]
      %v2188 = vld [vmem:[#allocation2 + $0x150] sm:$0xff]
      %v2189 = vld [vmem:[#allocation2 + $0x158] sm:$0xff]
      %v2190 = vld [vmem:[#allocation2 + $0x168] sm:$0xff]
      %v2191 = vld [vmem:[#allocation2 + $0x170] sm:$0xff]
      %v2192 = vld [vmem:[#allocation2 + $0x1] sm:$0xff]
      %v2193 = vld [vmem:[#allocation2 + $0x9] sm:$0xff]
      %v2194 = vld [vmem:[#allocation2 + $0x19] sm:$0xff]
      %v2195 = vld [vmem:[#allocation2 + $0x21] sm:$0xff]
      %v2196 = vld [vmem:[#allocation2 + $0x31] sm:$0xff]
      %v2197 = vld [vmem:[#allocation2 + $0x39] sm:$0xff]
      %v2198 = vld [vmem:[#allocation2 + $0x49] sm:$0xff]
      %v2199 = vld [vmem:[#allocation2 + $0x51] sm:$0xff]
      %v2200 = vld [vmem:[#allocation2 + $0x61] sm:$0xff]
      %v2201 = vld [vmem:[#allocation2 + $0x69] sm:$0xff]
      %v2202 = vld [vmem:[#allocation2 + $0x79] sm:$0xff]
      %v2203 = vld [vmem:[#allocation2 + $0x81] sm:$0xff]
      %v2204 = vld [vmem:[#allocation2 + $0x91] sm:$0xff]
      %v2205 = vld [vmem:[#allocation2 + $0x99] sm:$0xff]
      %v2206 = vld [vmem:[#allocation2 + $0xa9] sm:$0xff]
      %v2207 = vld [vmem:[#allocation2 + $0xb1] sm:$0xff]
      %v2208 = vld [vmem:[#allocation2 + $0xc1] sm:$0xff]
      %v2209 = vld [vmem:[#allocation2 + $0xc9] sm:$0xff]
      %v2210 = vld [vmem:[#allocation2 + $0xd9] sm:$0xff]
      %v2211 = vld [vmem:[#allocation2 + $0xe1] sm:$0xff]
      %v2212 = vld [vmem:[#allocation2 + $0xf1] sm:$0xff]
      %v2213 = vld [vmem:[#allocation2 + $0xf9] sm:$0xff]
      %v2214 = vld [vmem:[#allocation2 + $0x109] sm:$0xff]
      %v2215 = vld [vmem:[#allocation2 + $0x111] sm:$0xff]
      %v2216 = vld [vmem:[#allocation2 + $0x121] sm:$0xff]
      %v2217 = vld [vmem:[#allocation2 + $0x129] sm:$0xff]
      %v2218 = vld [vmem:[#allocation2 + $0x139] sm:$0xff]
      %v2219 = vld [vmem:[#allocation2 + $0x141] sm:$0xff]
      %v2220 = vld [vmem:[#allocation2 + $0x151] sm:$0xff]
      %v2221 = vld [vmem:[#allocation2 + $0x159] sm:$0xff]
      %v2222 = vld [vmem:[#allocation2 + $0x169] sm:$0xff]
      %v2223 = vld [vmem:[#allocation2 + $0x171] sm:$0xff]
      %v2224 = vld [vmem:[#allocation2 + $0x2] sm:$0xff]
      %v2225 = vld [vmem:[#allocation2 + $0xa] sm:$0xff]
      %v2226 = vld [vmem:[#allocation2 + $0x1a] sm:$0xff]
      %v2227 = vld [vmem:[#allocation2 + $0x22] sm:$0xff]
      %v2228 = vld [vmem:[#allocation2 + $0x32] sm:$0xff]
      %v2229 = vld [vmem:[#allocation2 + $0x3a] sm:$0xff]
      %v2230 = vld [vmem:[#allocation2 + $0x4a] sm:$0xff]
      %v2231 = vld [vmem:[#allocation2 + $0x52] sm:$0xff]
      %v2232 = vld [vmem:[#allocation2 + $0x62] sm:$0xff]
      %v2233 = vld [vmem:[#allocation2 + $0x6a] sm:$0xff]
      %v2234 = vld [vmem:[#allocation2 + $0x7a] sm:$0xff]
      %v2235 = vld [vmem:[#allocation2 + $0x82] sm:$0xff]
      %v2236 = vld [vmem:[#allocation2 + $0x92] sm:$0xff]
      %v2237 = vld [vmem:[#allocation2 + $0x9a] sm:$0xff]
      %v2238 = vld [vmem:[#allocation2 + $0xaa] sm:$0xff]
      %v2239 = vld [vmem:[#allocation2 + $0xb2] sm:$0xff]
      %v2240 = vld [vmem:[#allocation2 + $0xc2] sm:$0xff]
      %v2241 = vld [vmem:[#allocation2 + $0xca] sm:$0xff]
      %v2242 = vld [vmem:[#allocation2 + $0xda] sm:$0xff]
      %v2243 = vld [vmem:[#allocation2 + $0xe2] sm:$0xff]
      %v2244 = vld [vmem:[#allocation2 + $0xf2] sm:$0xff]
      %v2245 = vld [vmem:[#allocation2 + $0xfa] sm:$0xff]
      %v2246 = vld [vmem:[#allocation2 + $0x10a] sm:$0xff]
      %v2247 = vld [vmem:[#allocation2 + $0x112] sm:$0xff]
      %v2248 = vld [vmem:[#allocation2 + $0x122] sm:$0xff]
      %v2249 = vld [vmem:[#allocation2 + $0x12a] sm:$0xff]
      %v2250 = vld [vmem:[#allocation2 + $0x13a] sm:$0xff]
      %v2251 = vld [vmem:[#allocation2 + $0x142] sm:$0xff]
      %v2252 = vld [vmem:[#allocation2 + $0x152] sm:$0xff]
      %v2253 = vld [vmem:[#allocation2 + $0x15a] sm:$0xff]
      %v2254 = vld [vmem:[#allocation2 + $0x16a] sm:$0xff]
      %v2255 = vld [vmem:[#allocation2 + $0x172] sm:$0xff]
      %v2256 = vld [vmem:[%s2127] sm:$0xff]
      %v2257 = vld [vmem:[%s2127 + $0x8] sm:$0xff]
      %v2258 = vld [vmem:[%s2127 + $0x18] sm:$0xff]
      %v2259 = vld [vmem:[%s2127 + $0x20] sm:$0xff]
      %v2260 = vld [vmem:[%s2127 + $0x30] sm:$0xff]
      %v2261 = vld [vmem:[%s2127 + $0x38] sm:$0xff]
      %v2262 = vld [vmem:[%s2127 + $0x48] sm:$0xff]
      %v2263 = vld [vmem:[%s2127 + $0x50] sm:$0xff]
      %v2264 = vld [vmem:[%s2127 + $0x60] sm:$0xff]
      %v2265 = vld [vmem:[%s2127 + $0x68] sm:$0xff]
      %v2266 = vld [vmem:[%s2127 + $0x78] sm:$0xff]
      %v2267 = vld [vmem:[%s2127 + $0x80] sm:$0xff]
      %v2268 = vld [vmem:[%s2127 + $0x90] sm:$0xff]
      %v2269 = vld [vmem:[%s2127 + $0x98] sm:$0xff]
      %v2270 = vld [vmem:[%s2127 + $0xa8] sm:$0xff]
      %v2271 = vld [vmem:[%s2127 + $0xb0] sm:$0xff]
      %v2272 = vld [vmem:[%s2127 + $0xc0] sm:$0xff]
      %v2273 = vld [vmem:[%s2127 + $0xc8] sm:$0xff]
      %v2274 = vld [vmem:[%s2127 + $0xd8] sm:$0xff]
      %v2275 = vld [vmem:[%s2127 + $0xe0] sm:$0xff]
      %v2276 = vld [vmem:[%s2127 + $0xf0] sm:$0xff]
      %v2277 = vld [vmem:[%s2127 + $0xf8] sm:$0xff]
      %v2278 = vld [vmem:[%s2127 + $0x108] sm:$0xff]
      %v2279 = vld [vmem:[%s2127 + $0x110] sm:$0xff]
      %v2280 = vld [vmem:[%s2127 + $0x120] sm:$0xff]
      %v2281 = vld [vmem:[%s2127 + $0x128] sm:$0xff]
      %v2282 = vld [vmem:[%s2127 + $0x138] sm:$0xff]
      %v2283 = vld [vmem:[%s2127 + $0x140] sm:$0xff]
      %v2284 = vld [vmem:[%s2127 + $0x150] sm:$0xff]
      %v2285 = vld [vmem:[%s2127 + $0x158] sm:$0xff]
      %v2286 = vld [vmem:[%s2127 + $0x168] sm:$0xff]
      %v2287 = vld [vmem:[%s2127 + $0x170] sm:$0xff]
      %v2288 = vld [vmem:[%s2127 + $0x1] sm:$0xff]
      %v2289 = vld [vmem:[%s2127 + $0x9] sm:$0xff]
      %v2290 = vld [vmem:[%s2127 + $0x19] sm:$0xff]
      %v2291 = vld [vmem:[%s2127 + $0x21] sm:$0xff]
      %v2292 = vld [vmem:[%s2127 + $0x31] sm:$0xff]
      %v2293 = vld [vmem:[%s2127 + $0x39] sm:$0xff]
      %v2294 = vld [vmem:[%s2127 + $0x49] sm:$0xff]
      %v2295 = vld [vmem:[%s2127 + $0x51] sm:$0xff]
      %v2296 = vld [vmem:[%s2127 + $0x61] sm:$0xff]
      %v2297 = vld [vmem:[%s2127 + $0x69] sm:$0xff]
      %v2298 = vld [vmem:[%s2127 + $0x79] sm:$0xff]
      %v2299 = vld [vmem:[%s2127 + $0x81] sm:$0xff]
      %v2300 = vld [vmem:[%s2127 + $0x91] sm:$0xff]
      %v2301 = vld [vmem:[%s2127 + $0x99] sm:$0xff]
      %v2302 = vld [vmem:[%s2127 + $0xa9] sm:$0xff]
      %v2303 = vld [vmem:[%s2127 + $0xb1] sm:$0xff]
      %v2304 = vld [vmem:[%s2127 + $0xc1] sm:$0xff]
      %v2305 = vld [vmem:[%s2127 + $0xc9] sm:$0xff]
      %v2306 = vld [vmem:[%s2127 + $0xd9] sm:$0xff]
      %v2307 = vld [vmem:[%s2127 + $0xe1] sm:$0xff]
      %v2308 = vld [vmem:[%s2127 + $0xf1] sm:$0xff]
      %v2309 = vld [vmem:[%s2127 + $0xf9] sm:$0xff]
      %v2310 = vld [vmem:[%s2127 + $0x109] sm:$0xff]
      %v2311 = vld [vmem:[%s2127 + $0x111] sm:$0xff]
      %v2312 = vld [vmem:[%s2127 + $0x121] sm:$0xff]
      %v2313 = vld [vmem:[%s2127 + $0x129] sm:$0xff]
      %v2314 = vld [vmem:[%s2127 + $0x139] sm:$0xff]
      %v2315 = vld [vmem:[%s2127 + $0x141] sm:$0xff]
      %v2316 = vld [vmem:[%s2127 + $0x151] sm:$0xff]
      %v2317 = vld [vmem:[%s2127 + $0x159] sm:$0xff]
      %v2318 = vld [vmem:[%s2127 + $0x169] sm:$0xff]
      %v2319 = vld [vmem:[%s2127 + $0x171] sm:$0xff]
      %v2320 = vld [vmem:[%s2127 + $0x2] sm:$0xff]
      %v2321 = vld [vmem:[%s2127 + $0xa] sm:$0xff]
      %v2322 = vld [vmem:[%s2127 + $0x1a] sm:$0xff]
      %v2323 = vld [vmem:[%s2127 + $0x22] sm:$0xff]
      %v2324 = vld [vmem:[%s2127 + $0x32] sm:$0xff]
      %v2325 = vld [vmem:[%s2127 + $0x3a] sm:$0xff]
      %v2326 = vld [vmem:[%s2127 + $0x4a] sm:$0xff]
      %v2327 = vld [vmem:[%s2127 + $0x52] sm:$0xff]
      %v2328 = vld [vmem:[%s2127 + $0x62] sm:$0xff]
      %v2329 = vld [vmem:[%s2127 + $0x6a] sm:$0xff]
      %v2330 = vld [vmem:[%s2127 + $0x7a] sm:$0xff]
      %v2331 = vld [vmem:[%s2127 + $0x82] sm:$0xff]
      %v2332 = vld [vmem:[%s2127 + $0x92] sm:$0xff]
      %v2333 = vld [vmem:[%s2127 + $0x9a] sm:$0xff]
      %v2334 = vld [vmem:[%s2127 + $0xaa] sm:$0xff]
      %v2335 = vld [vmem:[%s2127 + $0xb2] sm:$0xff]
      %v2336 = vld [vmem:[%s2127 + $0xc2] sm:$0xff]
      %v2337 = vld [vmem:[%s2127 + $0xca] sm:$0xff]
      %v2338 = vld [vmem:[%s2127 + $0xda] sm:$0xff]
      %v2339 = vld [vmem:[%s2127 + $0xe2] sm:$0xff]
      %v2340 = vld [vmem:[%s2127 + $0xf2] sm:$0xff]
      %v2341 = vld [vmem:[%s2127 + $0xfa] sm:$0xff]
      %v2342 = vld [vmem:[%s2127 + $0x10a] sm:$0xff]
      %v2343 = vld [vmem:[%s2127 + $0x112] sm:$0xff]
      %v2344 = vld [vmem:[%s2127 + $0x122] sm:$0xff]
      %v2345 = vld [vmem:[%s2127 + $0x12a] sm:$0xff]
      %v2346 = vld [vmem:[%s2127 + $0x13a] sm:$0xff]
      %v2347 = vld [vmem:[%s2127 + $0x142] sm:$0xff]
      %v2348 = vld [vmem:[%s2127 + $0x152] sm:$0xff]
      %v2349 = vld [vmem:[%s2127 + $0x15a] sm:$0xff]
      %v2350 = vld [vmem:[%s2127 + $0x16a] sm:$0xff]
      %v2351 = vld [vmem:[%s2127 + $0x172] sm:$0xff]
      %s2352 = scalar_lea.vmem [#allocation2], 48
      %v2353 = vld [vmem:[%s2352] sm:$0xff]
      %v2354 = vld [vmem:[%s2352 + $0x8] sm:$0xff]
      %v2355 = vld [vmem:[%s2352 + $0x18] sm:$0xff]
      %v2356 = vld [vmem:[%s2352 + $0x20] sm:$0xff]
      %v2357 = vld [vmem:[%s2352 + $0x30] sm:$0xff]
      %v2358 = vld [vmem:[%s2352 + $0x38] sm:$0xff]
      %v2359 = vld [vmem:[%s2352 + $0x48] sm:$0xff]
      %v2360 = vld [vmem:[%s2352 + $0x50] sm:$0xff]
      %v2361 = vld [vmem:[%s2352 + $0x60] sm:$0xff]
      %v2362 = vld [vmem:[%s2352 + $0x68] sm:$0xff]
      %v2363 = vld [vmem:[%s2352 + $0x78] sm:$0xff]
      %v2364 = vld [vmem:[%s2352 + $0x80] sm:$0xff]
      %v2365 = vld [vmem:[%s2352 + $0x90] sm:$0xff]
      %v2366 = vld [vmem:[%s2352 + $0x98] sm:$0xff]
      %v2367 = vld [vmem:[%s2352 + $0xa8] sm:$0xff]
      %v2368 = vld [vmem:[%s2352 + $0xb0] sm:$0xff]
      %v2369 = vld [vmem:[%s2352 + $0xc0] sm:$0xff]
      %v2370 = vld [vmem:[%s2352 + $0xc8] sm:$0xff]
      %v2371 = vld [vmem:[%s2352 + $0xd8] sm:$0xff]
      %v2372 = vld [vmem:[%s2352 + $0xe0] sm:$0xff]
      %v2373 = vld [vmem:[%s2352 + $0xf0] sm:$0xff]
      %v2374 = vld [vmem:[%s2352 + $0xf8] sm:$0xff]
      %v2375 = vld [vmem:[%s2352 + $0x108] sm:$0xff]
      %v2376 = vld [vmem:[%s2352 + $0x110] sm:$0xff]
      %v2377 = vld [vmem:[%s2352 + $0x120] sm:$0xff]
      %v2378 = vld [vmem:[%s2352 + $0x128] sm:$0xff]
      %v2379 = vld [vmem:[%s2352 + $0x138] sm:$0xff]
      %v2380 = vld [vmem:[%s2352 + $0x140] sm:$0xff]
      %v2381 = vld [vmem:[%s2352 + $0x150] sm:$0xff]
      %v2382 = vld [vmem:[%s2352 + $0x158] sm:$0xff]
      %v2383 = vld [vmem:[%s2352 + $0x168] sm:$0xff]
      %v2384 = vld [vmem:[%s2352 + $0x170] sm:$0xff]
      %v2385 = vld [vmem:[%s2352 + $0x1] sm:$0xff]
      %v2386 = vld [vmem:[%s2352 + $0x9] sm:$0xff]
      %v2387 = vld [vmem:[%s2352 + $0x19] sm:$0xff]
      %v2388 = vld [vmem:[%s2352 + $0x21] sm:$0xff]
      %v2389 = vld [vmem:[%s2352 + $0x31] sm:$0xff]
      %v2390 = vld [vmem:[%s2352 + $0x39] sm:$0xff]
      %v2391 = vld [vmem:[%s2352 + $0x49] sm:$0xff]
      %v2392 = vld [vmem:[%s2352 + $0x51] sm:$0xff]
      %v2393 = vld [vmem:[%s2352 + $0x61] sm:$0xff]
      %v2394 = vld [vmem:[%s2352 + $0x69] sm:$0xff]
      %v2395 = vld [vmem:[%s2352 + $0x79] sm:$0xff]
      %v2396 = vld [vmem:[%s2352 + $0x81] sm:$0xff]
      %v2397 = vld [vmem:[%s2352 + $0x91] sm:$0xff]
      %v2398 = vld [vmem:[%s2352 + $0x99] sm:$0xff]
      %v2399 = vld [vmem:[%s2352 + $0xa9] sm:$0xff]
      %v2400 = vld [vmem:[%s2352 + $0xb1] sm:$0xff]
      %v2401 = vld [vmem:[%s2352 + $0xc1] sm:$0xff]
      %v2402 = vld [vmem:[%s2352 + $0xc9] sm:$0xff]
      %v2403 = vld [vmem:[%s2352 + $0xd9] sm:$0xff]
      %v2404 = vld [vmem:[%s2352 + $0xe1] sm:$0xff]
      %v2405 = vld [vmem:[%s2352 + $0xf1] sm:$0xff]
      %v2406 = vld [vmem:[%s2352 + $0xf9] sm:$0xff]
      %v2407 = vld [vmem:[%s2352 + $0x109] sm:$0xff]
      %v2408 = vld [vmem:[%s2352 + $0x111] sm:$0xff]
      %v2409 = vld [vmem:[%s2352 + $0x121] sm:$0xff]
      %v2410 = vld [vmem:[%s2352 + $0x129] sm:$0xff]
      %v2411 = vld [vmem:[%s2352 + $0x139] sm:$0xff]
      %v2412 = vld [vmem:[%s2352 + $0x141] sm:$0xff]
      %v2413 = vld [vmem:[%s2352 + $0x151] sm:$0xff]
      %v2414 = vld [vmem:[%s2352 + $0x159] sm:$0xff]
      %v2415 = vld [vmem:[%s2352 + $0x169] sm:$0xff]
      %v2416 = vld [vmem:[%s2352 + $0x171] sm:$0xff]
      %v2417 = vld [vmem:[%s2352 + $0x2] sm:$0xff]
      %v2418 = vld [vmem:[%s2352 + $0xa] sm:$0xff]
      %v2419 = vld [vmem:[%s2352 + $0x1a] sm:$0xff]
      %v2420 = vld [vmem:[%s2352 + $0x22] sm:$0xff]
      %v2421 = vld [vmem:[%s2352 + $0x32] sm:$0xff]
      %v2422 = vld [vmem:[%s2352 + $0x3a] sm:$0xff]
      %v2423 = vld [vmem:[%s2352 + $0x4a] sm:$0xff]
      %v2424 = vld [vmem:[%s2352 + $0x52] sm:$0xff]
      %v2425 = vld [vmem:[%s2352 + $0x62] sm:$0xff]
      %v2426 = vld [vmem:[%s2352 + $0x6a] sm:$0xff]
      %v2427 = vld [vmem:[%s2352 + $0x7a] sm:$0xff]
      %v2428 = vld [vmem:[%s2352 + $0x82] sm:$0xff]
      %v2429 = vld [vmem:[%s2352 + $0x92] sm:$0xff]
      %v2430 = vld [vmem:[%s2352 + $0x9a] sm:$0xff]
      %v2431 = vld [vmem:[%s2352 + $0xaa] sm:$0xff]
      %v2432 = vld [vmem:[%s2352 + $0xb2] sm:$0xff]
      %v2433 = vld [vmem:[%s2352 + $0xc2] sm:$0xff]
      %v2434 = vld [vmem:[%s2352 + $0xca] sm:$0xff]
      %v2435 = vld [vmem:[%s2352 + $0xda] sm:$0xff]
      %v2436 = vld [vmem:[%s2352 + $0xe2] sm:$0xff]
      %v2437 = vld [vmem:[%s2352 + $0xf2] sm:$0xff]
      %v2438 = vld [vmem:[%s2352 + $0xfa] sm:$0xff]
      %v2439 = vld [vmem:[%s2352 + $0x10a] sm:$0xff]
      %v2440 = vld [vmem:[%s2352 + $0x112] sm:$0xff]
      %v2441 = vld [vmem:[%s2352 + $0x122] sm:$0xff]
      %v2442 = vld [vmem:[%s2352 + $0x12a] sm:$0xff]
      %v2443 = vld [vmem:[%s2352 + $0x13a] sm:$0xff]
      %v2444 = vld [vmem:[%s2352 + $0x142] sm:$0xff]
      %v2445 = vld [vmem:[%s2352 + $0x152] sm:$0xff]
      %v2446 = vld [vmem:[%s2352 + $0x15a] sm:$0xff]
      %v2447 = vld [vmem:[%s2352 + $0x16a] sm:$0xff]
      %v2448 = vld [vmem:[%s2352 + $0x172] sm:$0xff]
      %2481 = vrot.lane.b32.xlu0 %v2192, 32
      %v2482 = vpop.permute.xlu0 %2481
      %2483 = vrot.lane.b32.xlu0 %v2193, 32
      %v2484 = vpop.permute.xlu0 %2483
      %2485 = vrot.lane.b32.xlu0 %v2194, 32
      %v2486 = vpop.permute.xlu0 %2485
      %2487 = vrot.lane.b32.xlu0 %v2195, 32
      %v2488 = vpop.permute.xlu0 %2487
      %2489 = vrot.lane.b32.xlu0 %v2196, 32
      %v2490 = vpop.permute.xlu0 %2489
      %2491 = vrot.lane.b32.xlu0 %v2197, 32
      %v2492 = vpop.permute.xlu0 %2491
      %2493 = vrot.lane.b32.xlu0 %v2198, 32
      %v2494 = vpop.permute.xlu0 %2493
      %2495 = vrot.lane.b32.xlu0 %v2199, 32
      %v2496 = vpop.permute.xlu0 %2495
      %2497 = vrot.lane.b32.xlu0 %v2200, 32
      %v2498 = vpop.permute.xlu0 %2497
      %2499 = vrot.lane.b32.xlu0 %v2201, 32
      %v2500 = vpop.permute.xlu0 %2499
      %2501 = vrot.lane.b32.xlu0 %v2202, 32
      %v2502 = vpop.permute.xlu0 %2501
      %2503 = vrot.lane.b32.xlu0 %v2203, 32
      %v2504 = vpop.permute.xlu0 %2503
      %2505 = vrot.lane.b32.xlu0 %v2204, 32
      %v2506 = vpop.permute.xlu0 %2505
      %2507 = vrot.lane.b32.xlu0 %v2205, 32
      %v2508 = vpop.permute.xlu0 %2507
      %2509 = vrot.lane.b32.xlu0 %v2206, 32
      %v2510 = vpop.permute.xlu0 %2509
      %2511 = vrot.lane.b32.xlu0 %v2207, 32
      %v2512 = vpop.permute.xlu0 %2511
      %2513 = vrot.lane.b32.xlu0 %v2208, 32
      %v2514 = vpop.permute.xlu0 %2513
      %2515 = vrot.lane.b32.xlu0 %v2209, 32
      %v2516 = vpop.permute.xlu0 %2515
      %2517 = vrot.lane.b32.xlu0 %v2210, 32
      %v2518 = vpop.permute.xlu0 %2517
      %2519 = vrot.lane.b32.xlu0 %v2211, 32
      %v2520 = vpop.permute.xlu0 %2519
      %2521 = vrot.lane.b32.xlu0 %v2212, 32
      %v2522 = vpop.permute.xlu0 %2521
      %2523 = vrot.lane.b32.xlu0 %v2213, 32
      %v2524 = vpop.permute.xlu0 %2523
      %2525 = vrot.lane.b32.xlu0 %v2214, 32
      %v2526 = vpop.permute.xlu0 %2525
      %2527 = vrot.lane.b32.xlu0 %v2215, 32
      %v2528 = vpop.permute.xlu0 %2527
      %2529 = vrot.lane.b32.xlu0 %v2216, 32
      %v2530 = vpop.permute.xlu0 %2529
      %2531 = vrot.lane.b32.xlu0 %v2217, 32
      %v2532 = vpop.permute.xlu0 %2531
      %2533 = vrot.lane.b32.xlu0 %v2218, 32
      %v2534 = vpop.permute.xlu0 %2533
      %2535 = vrot.lane.b32.xlu0 %v2219, 32
      %v2536 = vpop.permute.xlu0 %2535
      %2537 = vrot.lane.b32.xlu0 %v2220, 32
      %v2538 = vpop.permute.xlu0 %2537
      %2539 = vrot.lane.b32.xlu0 %v2221, 32
      %v2540 = vpop.permute.xlu0 %2539
      %2541 = vrot.lane.b32.xlu0 %v2222, 32
      %v2542 = vpop.permute.xlu0 %2541
      %2543 = vrot.lane.b32.xlu0 %v2223, 32
      %v2544 = vpop.permute.xlu0 %2543
      %2609 = vrot.lane.b32.xlu0 %v2224, 64
      %v2610 = vpop.permute.xlu0 %2609
      %2611 = vrot.lane.b32.xlu0 %v2225, 64
      %v2612 = vpop.permute.xlu0 %2611
      %2613 = vrot.lane.b32.xlu0 %v2226, 64
      %v2614 = vpop.permute.xlu0 %2613
      %2615 = vrot.lane.b32.xlu0 %v2227, 64
      %v2616 = vpop.permute.xlu0 %2615
      %2617 = vrot.lane.b32.xlu0 %v2228, 64
      %v2618 = vpop.permute.xlu0 %2617
      %2619 = vrot.lane.b32.xlu0 %v2229, 64
      %v2620 = vpop.permute.xlu0 %2619
      %2621 = vrot.lane.b32.xlu0 %v2230, 64
      %v2622 = vpop.permute.xlu0 %2621
      %2623 = vrot.lane.b32.xlu0 %v2231, 64
      %v2624 = vpop.permute.xlu0 %2623
      %2625 = vrot.lane.b32.xlu0 %v2232, 64
      %v2626 = vpop.permute.xlu0 %2625
      %2627 = vrot.lane.b32.xlu0 %v2233, 64
      %v2628 = vpop.permute.xlu0 %2627
      %2629 = vrot.lane.b32.xlu0 %v2234, 64
      %v2630 = vpop.permute.xlu0 %2629
      %2631 = vrot.lane.b32.xlu0 %v2235, 64
      %v2632 = vpop.permute.xlu0 %2631
      %2633 = vrot.lane.b32.xlu0 %v2236, 64
      %v2634 = vpop.permute.xlu0 %2633
      %2635 = vrot.lane.b32.xlu0 %v2237, 64
      %v2636 = vpop.permute.xlu0 %2635
      %2637 = vrot.lane.b32.xlu0 %v2238, 64
      %v2638 = vpop.permute.xlu0 %2637
      %2639 = vrot.lane.b32.xlu0 %v2239, 64
      %v2640 = vpop.permute.xlu0 %2639
      %2641 = vrot.lane.b32.xlu0 %v2240, 64
      %v2642 = vpop.permute.xlu0 %2641
      %2643 = vrot.lane.b32.xlu0 %v2241, 64
      %v2644 = vpop.permute.xlu0 %2643
      %2645 = vrot.lane.b32.xlu0 %v2242, 64
      %v2646 = vpop.permute.xlu0 %2645
      %2647 = vrot.lane.b32.xlu0 %v2243, 64
      %v2648 = vpop.permute.xlu0 %2647
      %2649 = vrot.lane.b32.xlu0 %v2244, 64
      %v2650 = vpop.permute.xlu0 %2649
      %2651 = vrot.lane.b32.xlu0 %v2245, 64
      %v2652 = vpop.permute.xlu0 %2651
      %2653 = vrot.lane.b32.xlu0 %v2246, 64
      %v2654 = vpop.permute.xlu0 %2653
      %2655 = vrot.lane.b32.xlu0 %v2247, 64
      %v2656 = vpop.permute.xlu0 %2655
      %2657 = vrot.lane.b32.xlu0 %v2248, 64
      %v2658 = vpop.permute.xlu0 %2657
      %2659 = vrot.lane.b32.xlu0 %v2249, 64
      %v2660 = vpop.permute.xlu0 %2659
      %2661 = vrot.lane.b32.xlu0 %v2250, 64
      %v2662 = vpop.permute.xlu0 %2661
      %2663 = vrot.lane.b32.xlu0 %v2251, 64
      %v2664 = vpop.permute.xlu0 %2663
      %2665 = vrot.lane.b32.xlu0 %v2252, 64
      %v2666 = vpop.permute.xlu0 %2665
      %2667 = vrot.lane.b32.xlu0 %v2253, 64
      %v2668 = vpop.permute.xlu0 %2667
      %2669 = vrot.lane.b32.xlu0 %v2254, 64
      %v2670 = vpop.permute.xlu0 %2669
      %2671 = vrot.lane.b32.xlu0 %v2255, 64
      %v2672 = vpop.permute.xlu0 %2671
      %2737 = vrot.lane.b32.xlu0 %v2256, 96
      %v2738 = vpop.permute.xlu0 %2737
      %2739 = vrot.lane.b32.xlu0 %v2257, 96
      %v2740 = vpop.permute.xlu0 %2739
      %2741 = vrot.lane.b32.xlu0 %v2258, 96
      %v2742 = vpop.permute.xlu0 %2741
      %2743 = vrot.lane.b32.xlu0 %v2259, 96
      %v2744 = vpop.permute.xlu0 %2743
      %2745 = vrot.lane.b32.xlu0 %v2260, 96
      %v2746 = vpop.permute.xlu0 %2745
      %2747 = vrot.lane.b32.xlu0 %v2261, 96
      %v2748 = vpop.permute.xlu0 %2747
      %2749 = vrot.lane.b32.xlu0 %v2262, 96
      %v2750 = vpop.permute.xlu0 %2749
      %2751 = vrot.lane.b32.xlu0 %v2263, 96
      %v2752 = vpop.permute.xlu0 %2751
      %2753 = vrot.lane.b32.xlu0 %v2264, 96
      %v2754 = vpop.permute.xlu0 %2753
      %2755 = vrot.lane.b32.xlu0 %v2265, 96
      %v2756 = vpop.permute.xlu0 %2755
      %2757 = vrot.lane.b32.xlu0 %v2266, 96
      %v2758 = vpop.permute.xlu0 %2757
      %2759 = vrot.lane.b32.xlu0 %v2267, 96
      %v2760 = vpop.permute.xlu0 %2759
      %2761 = vrot.lane.b32.xlu0 %v2268, 96
      %v2762 = vpop.permute.xlu0 %2761
      %2763 = vrot.lane.b32.xlu0 %v2269, 96
      %v2764 = vpop.permute.xlu0 %2763
      %2765 = vrot.lane.b32.xlu0 %v2270, 96
      %v2766 = vpop.permute.xlu0 %2765
      %2767 = vrot.lane.b32.xlu0 %v2271, 96
      %v2768 = vpop.permute.xlu0 %2767
      %2769 = vrot.lane.b32.xlu0 %v2272, 96
      %v2770 = vpop.permute.xlu0 %2769
      %2771 = vrot.lane.b32.xlu0 %v2273, 96
      %v2772 = vpop.permute.xlu0 %2771
      %2773 = vrot.lane.b32.xlu0 %v2274, 96
      %v2774 = vpop.permute.xlu0 %2773
      %2775 = vrot.lane.b32.xlu0 %v2275, 96
      %v2776 = vpop.permute.xlu0 %2775
      %2777 = vrot.lane.b32.xlu0 %v2276, 96
      %v2778 = vpop.permute.xlu0 %2777
      %2779 = vrot.lane.b32.xlu0 %v2277, 96
      %v2780 = vpop.permute.xlu0 %2779
      %2781 = vrot.lane.b32.xlu0 %v2278, 96
      %v2782 = vpop.permute.xlu0 %2781
      %2783 = vrot.lane.b32.xlu0 %v2279, 96
      %v2784 = vpop.permute.xlu0 %2783
      %2785 = vrot.lane.b32.xlu0 %v2280, 96
      %v2786 = vpop.permute.xlu0 %2785
      %2787 = vrot.lane.b32.xlu0 %v2281, 96
      %v2788 = vpop.permute.xlu0 %2787
      %2789 = vrot.lane.b32.xlu0 %v2282, 96
      %v2790 = vpop.permute.xlu0 %2789
      %2791 = vrot.lane.b32.xlu0 %v2283, 96
      %v2792 = vpop.permute.xlu0 %2791
      %2793 = vrot.lane.b32.xlu0 %v2284, 96
      %v2794 = vpop.permute.xlu0 %2793
      %2795 = vrot.lane.b32.xlu0 %v2285, 96
      %v2796 = vpop.permute.xlu0 %2795
      %2797 = vrot.lane.b32.xlu0 %v2286, 96
      %v2798 = vpop.permute.xlu0 %2797
      %2799 = vrot.lane.b32.xlu0 %v2287, 96
      %v2800 = vpop.permute.xlu0 %2799
      %2865 = vrot.lane.b32.xlu0 %v2320, 32
      %v2866 = vpop.permute.xlu0 %2865
      %2867 = vrot.lane.b32.xlu0 %v2321, 32
      %v2868 = vpop.permute.xlu0 %2867
      %2869 = vrot.lane.b32.xlu0 %v2322, 32
      %v2870 = vpop.permute.xlu0 %2869
      %2871 = vrot.lane.b32.xlu0 %v2323, 32
      %v2872 = vpop.permute.xlu0 %2871
      %2873 = vrot.lane.b32.xlu0 %v2324, 32
      %v2874 = vpop.permute.xlu0 %2873
      %2875 = vrot.lane.b32.xlu0 %v2325, 32
      %v2876 = vpop.permute.xlu0 %2875
      %2877 = vrot.lane.b32.xlu0 %v2326, 32
      %v2878 = vpop.permute.xlu0 %2877
      %2879 = vrot.lane.b32.xlu0 %v2327, 32
      %v2880 = vpop.permute.xlu0 %2879
      %2881 = vrot.lane.b32.xlu0 %v2328, 32
      %v2882 = vpop.permute.xlu0 %2881
      %2883 = vrot.lane.b32.xlu0 %v2329, 32
      %v2884 = vpop.permute.xlu0 %2883
      %2885 = vrot.lane.b32.xlu0 %v2330, 32
      %v2886 = vpop.permute.xlu0 %2885
      %2887 = vrot.lane.b32.xlu0 %v2331, 32
      %v2888 = vpop.permute.xlu0 %2887
      %2889 = vrot.lane.b32.xlu0 %v2332, 32
      %v2890 = vpop.permute.xlu0 %2889
      %2891 = vrot.lane.b32.xlu0 %v2333, 32
      %v2892 = vpop.permute.xlu0 %2891
      %2893 = vrot.lane.b32.xlu0 %v2334, 32
      %v2894 = vpop.permute.xlu0 %2893
      %2895 = vrot.lane.b32.xlu0 %v2335, 32
      %v2896 = vpop.permute.xlu0 %2895
      %2897 = vrot.lane.b32.xlu0 %v2336, 32
      %v2898 = vpop.permute.xlu0 %2897
      %2899 = vrot.lane.b32.xlu0 %v2337, 32
      %v2900 = vpop.permute.xlu0 %2899
      %2901 = vrot.lane.b32.xlu0 %v2338, 32
      %v2902 = vpop.permute.xlu0 %2901
      %2903 = vrot.lane.b32.xlu0 %v2339, 32
      %v2904 = vpop.permute.xlu0 %2903
      %2905 = vrot.lane.b32.xlu0 %v2340, 32
      %v2906 = vpop.permute.xlu0 %2905
      %2907 = vrot.lane.b32.xlu0 %v2341, 32
      %v2908 = vpop.permute.xlu0 %2907
      %2909 = vrot.lane.b32.xlu0 %v2342, 32
      %v2910 = vpop.permute.xlu0 %2909
      %2911 = vrot.lane.b32.xlu0 %v2343, 32
      %v2912 = vpop.permute.xlu0 %2911
      %2913 = vrot.lane.b32.xlu0 %v2344, 32
      %v2914 = vpop.permute.xlu0 %2913
      %2915 = vrot.lane.b32.xlu0 %v2345, 32
      %v2916 = vpop.permute.xlu0 %2915
      %2917 = vrot.lane.b32.xlu0 %v2346, 32
      %v2918 = vpop.permute.xlu0 %2917
      %2919 = vrot.lane.b32.xlu0 %v2347, 32
      %v2920 = vpop.permute.xlu0 %2919
      %2921 = vrot.lane.b32.xlu0 %v2348, 32
      %v2922 = vpop.permute.xlu0 %2921
      %2923 = vrot.lane.b32.xlu0 %v2349, 32
      %v2924 = vpop.permute.xlu0 %2923
      %2925 = vrot.lane.b32.xlu0 %v2350, 32
      %v2926 = vpop.permute.xlu0 %2925
      %2927 = vrot.lane.b32.xlu0 %v2351, 32
      %v2928 = vpop.permute.xlu0 %2927
      %2993 = vrot.lane.b32.xlu0 %v2353, 64
      %v2994 = vpop.permute.xlu0 %2993
      %2995 = vrot.lane.b32.xlu0 %v2354, 64
      %v2996 = vpop.permute.xlu0 %2995
      %2997 = vrot.lane.b32.xlu0 %v2355, 64
      %v2998 = vpop.permute.xlu0 %2997
      %2999 = vrot.lane.b32.xlu0 %v2356, 64
      %v3000 = vpop.permute.xlu0 %2999
      %3001 = vrot.lane.b32.xlu0 %v2357, 64
      %v3002 = vpop.permute.xlu0 %3001
      %3003 = vrot.lane.b32.xlu0 %v2358, 64
      %v3004 = vpop.permute.xlu0 %3003
      %3005 = vrot.lane.b32.xlu0 %v2359, 64
      %v3006 = vpop.permute.xlu0 %3005
      %3007 = vrot.lane.b32.xlu0 %v2360, 64
      %v3008 = vpop.permute.xlu0 %3007
      %3009 = vrot.lane.b32.xlu0 %v2361, 64
      %v3010 = vpop.permute.xlu0 %3009
      %3011 = vrot.lane.b32.xlu0 %v2362, 64
      %v3012 = vpop.permute.xlu0 %3011
      %3013 = vrot.lane.b32.xlu0 %v2363, 64
      %v3014 = vpop.permute.xlu0 %3013
      %3015 = vrot.lane.b32.xlu0 %v2364, 64
      %v3016 = vpop.permute.xlu0 %3015
      %3017 = vrot.lane.b32.xlu0 %v2365, 64
      %v3018 = vpop.permute.xlu0 %3017
      %3019 = vrot.lane.b32.xlu0 %v2366, 64
      %v3020 = vpop.permute.xlu0 %3019
      %3021 = vrot.lane.b32.xlu0 %v2367, 64
      %v3022 = vpop.permute.xlu0 %3021
      %3023 = vrot.lane.b32.xlu0 %v2368, 64
      %v3024 = vpop.permute.xlu0 %3023
      %3025 = vrot.lane.b32.xlu0 %v2369, 64
      %v3026 = vpop.permute.xlu0 %3025
      %3027 = vrot.lane.b32.xlu0 %v2370, 64
      %v3028 = vpop.permute.xlu0 %3027
      %3029 = vrot.lane.b32.xlu0 %v2371, 64
      %v3030 = vpop.permute.xlu0 %3029
      %3031 = vrot.lane.b32.xlu0 %v2372, 64
      %v3032 = vpop.permute.xlu0 %3031
      %3033 = vrot.lane.b32.xlu0 %v2373, 64
      %v3034 = vpop.permute.xlu0 %3033
      %3035 = vrot.lane.b32.xlu0 %v2374, 64
      %v3036 = vpop.permute.xlu0 %3035
      %3037 = vrot.lane.b32.xlu0 %v2375, 64
      %v3038 = vpop.permute.xlu0 %3037
      %3039 = vrot.lane.b32.xlu0 %v2376, 64
      %v3040 = vpop.permute.xlu0 %3039
      %3041 = vrot.lane.b32.xlu0 %v2377, 64
      %v3042 = vpop.permute.xlu0 %3041
      %3043 = vrot.lane.b32.xlu0 %v2378, 64
      %v3044 = vpop.permute.xlu0 %3043
      %3045 = vrot.lane.b32.xlu0 %v2379, 64
      %v3046 = vpop.permute.xlu0 %3045
      %3047 = vrot.lane.b32.xlu0 %v2380, 64
      %v3048 = vpop.permute.xlu0 %3047
      %3049 = vrot.lane.b32.xlu0 %v2381, 64
      %v3050 = vpop.permute.xlu0 %3049
      %3051 = vrot.lane.b32.xlu0 %v2382, 64
      %v3052 = vpop.permute.xlu0 %3051
      %3053 = vrot.lane.b32.xlu0 %v2383, 64
      %v3054 = vpop.permute.xlu0 %3053
      %3055 = vrot.lane.b32.xlu0 %v2384, 64
      %v3056 = vpop.permute.xlu0 %3055
      %3121 = vrot.lane.b32.xlu0 %v2385, 96
      %v3122 = vpop.permute.xlu0 %3121
      %3123 = vrot.lane.b32.xlu0 %v2386, 96
      %v3124 = vpop.permute.xlu0 %3123
      %3125 = vrot.lane.b32.xlu0 %v2387, 96
      %v3126 = vpop.permute.xlu0 %3125
      %3127 = vrot.lane.b32.xlu0 %v2388, 96
      %v3128 = vpop.permute.xlu0 %3127
      %3129 = vrot.lane.b32.xlu0 %v2389, 96
      %v3130 = vpop.permute.xlu0 %3129
      %3131 = vrot.lane.b32.xlu0 %v2390, 96
      %v3132 = vpop.permute.xlu0 %3131
      %3133 = vrot.lane.b32.xlu0 %v2391, 96
      %v3134 = vpop.permute.xlu0 %3133
      %3135 = vrot.lane.b32.xlu0 %v2392, 96
      %v3136 = vpop.permute.xlu0 %3135
      %3137 = vrot.lane.b32.xlu0 %v2393, 96
      %v3138 = vpop.permute.xlu0 %3137
      %3139 = vrot.lane.b32.xlu0 %v2394, 96
      %v3140 = vpop.permute.xlu0 %3139
      %3141 = vrot.lane.b32.xlu0 %v2395, 96
      %v3142 = vpop.permute.xlu0 %3141
      %3143 = vrot.lane.b32.xlu0 %v2396, 96
      %v3144 = vpop.permute.xlu0 %3143
      %3145 = vrot.lane.b32.xlu0 %v2397, 96
      %v3146 = vpop.permute.xlu0 %3145
      %3147 = vrot.lane.b32.xlu0 %v2398, 96
      %v3148 = vpop.permute.xlu0 %3147
      %3149 = vrot.lane.b32.xlu0 %v2399, 96
      %v3150 = vpop.permute.xlu0 %3149
      %3151 = vrot.lane.b32.xlu0 %v2400, 96
      %v3152 = vpop.permute.xlu0 %3151
      %3153 = vrot.lane.b32.xlu0 %v2401, 96
      %v3154 = vpop.permute.xlu0 %3153
      %3155 = vrot.lane.b32.xlu0 %v2402, 96
      %v3156 = vpop.permute.xlu0 %3155
      %3157 = vrot.lane.b32.xlu0 %v2403, 96
      %v3158 = vpop.permute.xlu0 %3157
      %3159 = vrot.lane.b32.xlu0 %v2404, 96
      %v3160 = vpop.permute.xlu0 %3159
      %3161 = vrot.lane.b32.xlu0 %v2405, 96
      %v3162 = vpop.permute.xlu0 %3161
      %3163 = vrot.lane.b32.xlu0 %v2406, 96
      %v3164 = vpop.permute.xlu0 %3163
      %3165 = vrot.lane.b32.xlu0 %v2407, 96
      %v3166 = vpop.permute.xlu0 %3165
      %3167 = vrot.lane.b32.xlu0 %v2408, 96
      %v3168 = vpop.permute.xlu0 %3167
      %3169 = vrot.lane.b32.xlu0 %v2409, 96
      %v3170 = vpop.permute.xlu0 %3169
      %3171 = vrot.lane.b32.xlu0 %v2410, 96
      %v3172 = vpop.permute.xlu0 %3171
      %3173 = vrot.lane.b32.xlu0 %v2411, 96
      %v3174 = vpop.permute.xlu0 %3173
      %3175 = vrot.lane.b32.xlu0 %v2412, 96
      %v3176 = vpop.permute.xlu0 %3175
      %3177 = vrot.lane.b32.xlu0 %v2413, 96
      %v3178 = vpop.permute.xlu0 %3177
      %3179 = vrot.lane.b32.xlu0 %v2414, 96
      %v3180 = vpop.permute.xlu0 %3179
      %3181 = vrot.lane.b32.xlu0 %v2415, 96
      %v3182 = vpop.permute.xlu0 %3181
      %3183 = vrot.lane.b32.xlu0 %v2416, 96
      %v3184 = vpop.permute.xlu0 %3183
      %v3217 = vsel %vm1825, %v2160, %v2482
      %v3218 = vsel %vm1825, %v2161, %v2484
      %v3219 = vsel %vm1825, %v2162, %v2486
      %v3220 = vsel %vm1825, %v2163, %v2488
      %v3221 = vsel %vm1825, %v2164, %v2490
      %v3222 = vsel %vm1825, %v2165, %v2492
      %v3223 = vsel %vm1825, %v2166, %v2494
      %v3224 = vsel %vm1825, %v2167, %v2496
      %v3225 = vsel %vm1825, %v2168, %v2498
      %v3226 = vsel %vm1825, %v2169, %v2500
      %v3227 = vsel %vm1825, %v2170, %v2502
      %v3228 = vsel %vm1825, %v2171, %v2504
      %v3229 = vsel %vm1825, %v2172, %v2506
      %v3230 = vsel %vm1825, %v2173, %v2508
      %v3231 = vsel %vm1825, %v2174, %v2510
      %v3232 = vsel %vm1825, %v2175, %v2512
      %v3233 = vsel %vm1825, %v2176, %v2514
      %v3234 = vsel %vm1825, %v2177, %v2516
      %v3235 = vsel %vm1825, %v2178, %v2518
      %v3236 = vsel %vm1825, %v2179, %v2520
      %v3237 = vsel %vm1825, %v2180, %v2522
      %v3238 = vsel %vm1825, %v2181, %v2524
      %v3239 = vsel %vm1825, %v2182, %v2526
      %v3240 = vsel %vm1825, %v2183, %v2528
      %v3241 = vsel %vm1825, %v2184, %v2530
      %v3242 = vsel %vm1825, %v2185, %v2532
      %v3243 = vsel %vm1825, %v2186, %v2534
      %v3244 = vsel %vm1825, %v2187, %v2536
      %v3245 = vsel %vm1825, %v2188, %v2538
      %v3246 = vsel %vm1825, %v2189, %v2540
      %v3247 = vsel %vm1825, %v2190, %v2542
      %v3248 = vsel %vm1825, %v2191, %v2544
      %vm3249 = vcmask 523264
      %v3250 = vsel %vm3249, %v3217, %v2610
      %v3251 = vsel %vm3249, %v3218, %v2612
      %v3252 = vsel %vm3249, %v3219, %v2614
      %v3253 = vsel %vm3249, %v3220, %v2616
      %v3254 = vsel %vm3249, %v3221, %v2618
      %v3255 = vsel %vm3249, %v3222, %v2620
      %v3256 = vsel %vm3249, %v3223, %v2622
      %v3257 = vsel %vm3249, %v3224, %v2624
      %v3258 = vsel %vm3249, %v3225, %v2626
      %v3259 = vsel %vm3249, %v3226, %v2628
      %v3260 = vsel %vm3249, %v3227, %v2630
      %v3261 = vsel %vm3249, %v3228, %v2632
      %v3262 = vsel %vm3249, %v3229, %v2634
      %v3263 = vsel %vm3249, %v3230, %v2636
      %v3264 = vsel %vm3249, %v3231, %v2638
      %v3265 = vsel %vm3249, %v3232, %v2640
      %v3266 = vsel %vm3249, %v3233, %v2642
      %v3267 = vsel %vm3249, %v3234, %v2644
      %v3268 = vsel %vm3249, %v3235, %v2646
      %v3269 = vsel %vm3249, %v3236, %v2648
      %v3270 = vsel %vm3249, %v3237, %v2650
      %v3271 = vsel %vm3249, %v3238, %v2652
      %v3272 = vsel %vm3249, %v3239, %v2654
      %v3273 = vsel %vm3249, %v3240, %v2656
      %v3274 = vsel %vm3249, %v3241, %v2658
      %v3275 = vsel %vm3249, %v3242, %v2660
      %v3276 = vsel %vm3249, %v3243, %v2662
      %v3277 = vsel %vm3249, %v3244, %v2664
      %v3278 = vsel %vm3249, %v3245, %v2666
      %v3279 = vsel %vm3249, %v3246, %v2668
      %v3280 = vsel %vm3249, %v3247, %v2670
      %v3281 = vsel %vm3249, %v3248, %v2672
      %vm3282 = vcmask 785408
      %v3283 = vsel %vm3282, %v3250, %v2738
      %v3284 = vsel %vm3282, %v3251, %v2740
      %v3285 = vsel %vm3282, %v3252, %v2742
      %v3286 = vsel %vm3282, %v3253, %v2744
      %v3287 = vsel %vm3282, %v3254, %v2746
      %v3288 = vsel %vm3282, %v3255, %v2748
      %v3289 = vsel %vm3282, %v3256, %v2750
      %v3290 = vsel %vm3282, %v3257, %v2752
      %v3291 = vsel %vm3282, %v3258, %v2754
      %v3292 = vsel %vm3282, %v3259, %v2756
      %v3293 = vsel %vm3282, %v3260, %v2758
      %v3294 = vsel %vm3282, %v3261, %v2760
      %v3295 = vsel %vm3282, %v3262, %v2762
      %v3296 = vsel %vm3282, %v3263, %v2764
      %v3297 = vsel %vm3282, %v3264, %v2766
      %v3298 = vsel %vm3282, %v3265, %v2768
      %v3299 = vsel %vm3282, %v3266, %v2770
      %v3300 = vsel %vm3282, %v3267, %v2772
      %v3301 = vsel %vm3282, %v3268, %v2774
      %v3302 = vsel %vm3282, %v3269, %v2776
      %v3303 = vsel %vm3282, %v3270, %v2778
      %v3304 = vsel %vm3282, %v3271, %v2780
      %v3305 = vsel %vm3282, %v3272, %v2782
      %v3306 = vsel %vm3282, %v3273, %v2784
      %v3307 = vsel %vm3282, %v3274, %v2786
      %v3308 = vsel %vm3282, %v3275, %v2788
      %v3309 = vsel %vm3282, %v3276, %v2790
      %v3310 = vsel %vm3282, %v3277, %v2792
      %v3311 = vsel %vm3282, %v3278, %v2794
      %v3312 = vsel %vm3282, %v3279, %v2796
      %v3313 = vsel %vm3282, %v3280, %v2798
      %v3314 = vsel %vm3282, %v3281, %v2800
      %v3315 = vsel %vm1825, %v2288, %v2866
      %v3316 = vsel %vm1825, %v2289, %v2868
      %v3317 = vsel %vm1825, %v2290, %v2870
      %v3318 = vsel %vm1825, %v2291, %v2872
      %v3319 = vsel %vm1825, %v2292, %v2874
      %v3320 = vsel %vm1825, %v2293, %v2876
      %v3321 = vsel %vm1825, %v2294, %v2878
      %v3322 = vsel %vm1825, %v2295, %v2880
      %v3323 = vsel %vm1825, %v2296, %v2882
      %v3324 = vsel %vm1825, %v2297, %v2884
      %v3325 = vsel %vm1825, %v2298, %v2886
      %v3326 = vsel %vm1825, %v2299, %v2888
      %v3327 = vsel %vm1825, %v2300, %v2890
      %v3328 = vsel %vm1825, %v2301, %v2892
      %v3329 = vsel %vm1825, %v2302, %v2894
      %v3330 = vsel %vm1825, %v2303, %v2896
      %v3331 = vsel %vm1825, %v2304, %v2898
      %v3332 = vsel %vm1825, %v2305, %v2900
      %v3333 = vsel %vm1825, %v2306, %v2902
      %v3334 = vsel %vm1825, %v2307, %v2904
      %v3335 = vsel %vm1825, %v2308, %v2906
      %v3336 = vsel %vm1825, %v2309, %v2908
      %v3337 = vsel %vm1825, %v2310, %v2910
      %v3338 = vsel %vm1825, %v2311, %v2912
      %v3339 = vsel %vm1825, %v2312, %v2914
      %v3340 = vsel %vm1825, %v2313, %v2916
      %v3341 = vsel %vm1825, %v2314, %v2918
      %v3342 = vsel %vm1825, %v2315, %v2920
      %v3343 = vsel %vm1825, %v2316, %v2922
      %v3344 = vsel %vm1825, %v2317, %v2924
      %v3345 = vsel %vm1825, %v2318, %v2926
      %v3346 = vsel %vm1825, %v2319, %v2928
      %v3347 = vsel %vm3249, %v3315, %v2994
      %v3348 = vsel %vm3249, %v3316, %v2996
      %v3349 = vsel %vm3249, %v3317, %v2998
      %v3350 = vsel %vm3249, %v3318, %v3000
      %v3351 = vsel %vm3249, %v3319, %v3002
      %v3352 = vsel %vm3249, %v3320, %v3004
      %v3353 = vsel %vm3249, %v3321, %v3006
      %v3354 = vsel %vm3249, %v3322, %v3008
      %v3355 = vsel %vm3249, %v3323, %v3010
      %v3356 = vsel %vm3249, %v3324, %v3012
      %v3357 = vsel %vm3249, %v3325, %v3014
      %v3358 = vsel %vm3249, %v3326, %v3016
      %v3359 = vsel %vm3249, %v3327, %v3018
      %v3360 = vsel %vm3249, %v3328, %v3020
      %v3361 = vsel %vm3249, %v3329, %v3022
      %v3362 = vsel %vm3249, %v3330, %v3024
      %v3363 = vsel %vm3249, %v3331, %v3026
      %v3364 = vsel %vm3249, %v3332, %v3028
      %v3365 = vsel %vm3249, %v3333, %v3030
      %v3366 = vsel %vm3249, %v3334, %v3032
      %v3367 = vsel %vm3249, %v3335, %v3034
      %v3368 = vsel %vm3249, %v3336, %v3036
      %v3369 = vsel %vm3249, %v3337, %v3038
      %v3370 = vsel %vm3249, %v3338, %v3040
      %v3371 = vsel %vm3249, %v3339, %v3042
      %v3372 = vsel %vm3249, %v3340, %v3044
      %v3373 = vsel %vm3249, %v3341, %v3046
      %v3374 = vsel %vm3249, %v3342, %v3048
      %v3375 = vsel %vm3249, %v3343, %v3050
      %v3376 = vsel %vm3249, %v3344, %v3052
      %v3377 = vsel %vm3249, %v3345, %v3054
      %v3378 = vsel %vm3249, %v3346, %v3056
      %v3379 = vsel %vm3282, %v3347, %v3122
      %v3380 = vsel %vm3282, %v3348, %v3124
      %v3381 = vsel %vm3282, %v3349, %v3126
      %v3382 = vsel %vm3282, %v3350, %v3128
      %v3383 = vsel %vm3282, %v3351, %v3130
      %v3384 = vsel %vm3282, %v3352, %v3132
      %v3385 = vsel %vm3282, %v3353, %v3134
      %v3386 = vsel %vm3282, %v3354, %v3136
      %v3387 = vsel %vm3282, %v3355, %v3138
      %v3388 = vsel %vm3282, %v3356, %v3140
      %v3389 = vsel %vm3282, %v3357, %v3142
      %v3390 = vsel %vm3282, %v3358, %v3144
      %v3391 = vsel %vm3282, %v3359, %v3146
      %v3392 = vsel %vm3282, %v3360, %v3148
      %v3393 = vsel %vm3282, %v3361, %v3150
      %v3394 = vsel %vm3282, %v3362, %v3152
      %v3395 = vsel %vm3282, %v3363, %v3154
      %v3396 = vsel %vm3282, %v3364, %v3156
      %v3397 = vsel %vm3282, %v3365, %v3158
      %v3398 = vsel %vm3282, %v3366, %v3160
      %v3399 = vsel %vm3282, %v3367, %v3162
      %v3400 = vsel %vm3282, %v3368, %v3164
      %v3401 = vsel %vm3282, %v3369, %v3166
      %v3402 = vsel %vm3282, %v3370, %v3168
      %v3403 = vsel %vm3282, %v3371, %v3170
      %v3404 = vsel %vm3282, %v3372, %v3172
      %v3405 = vsel %vm3282, %v3373, %v3174
      %v3406 = vsel %vm3282, %v3374, %v3176
      %v3407 = vsel %vm3282, %v3375, %v3178
      %v3408 = vsel %vm3282, %v3376, %v3180
      %v3409 = vsel %vm3282, %v3377, %v3182
      %v3410 = vsel %vm3282, %v3378, %v3184
      %v3411 = vpack.c.bf16 %v3284, %v3283
      %v3412 = vpack.c.bf16 %v3380, %v3379
      %v3413 = vpack.c.bf16 %v2418, %v2417
      %v3414 = vpack.c.bf16 %v3286, %v3285
      %v3415 = vpack.c.bf16 %v3382, %v3381
      %v3416 = vpack.c.bf16 %v2420, %v2419
      %v3417 = vpack.c.bf16 %v3288, %v3287
      %v3418 = vpack.c.bf16 %v3384, %v3383
      %v3419 = vpack.c.bf16 %v2422, %v2421
      %v3420 = vpack.c.bf16 %v3290, %v3289
      %v3421 = vpack.c.bf16 %v3386, %v3385
      %v3422 = vpack.c.bf16 %v2424, %v2423
      %v3423 = vpack.c.bf16 %v3292, %v3291
      %v3424 = vpack.c.bf16 %v3388, %v3387
      %v3425 = vpack.c.bf16 %v2426, %v2425
      %v3426 = vpack.c.bf16 %v3294, %v3293
      %v3427 = vpack.c.bf16 %v3390, %v3389
      %v3428 = vpack.c.bf16 %v2428, %v2427
      %v3429 = vpack.c.bf16 %v3296, %v3295
      %v3430 = vpack.c.bf16 %v3392, %v3391
      %v3431 = vpack.c.bf16 %v2430, %v2429
      %v3432 = vpack.c.bf16 %v3298, %v3297
      %v3433 = vpack.c.bf16 %v3394, %v3393
      %v3434 = vpack.c.bf16 %v2432, %v2431
      %v3435 = vpack.c.bf16 %v3300, %v3299
      %v3436 = vpack.c.bf16 %v3396, %v3395
      %v3437 = vpack.c.bf16 %v2434, %v2433
      %v3438 = vpack.c.bf16 %v3302, %v3301
      %v3439 = vpack.c.bf16 %v3398, %v3397
      %v3440 = vpack.c.bf16 %v2436, %v2435
      %v3441 = vpack.c.bf16 %v3304, %v3303
      %v3442 = vpack.c.bf16 %v3400, %v3399
      %v3443 = vpack.c.bf16 %v2438, %v2437
      %v3444 = vpack.c.bf16 %v3306, %v3305
      %v3445 = vpack.c.bf16 %v3402, %v3401
      %v3446 = vpack.c.bf16 %v2440, %v2439
      %v3447 = vpack.c.bf16 %v3308, %v3307
      %v3448 = vpack.c.bf16 %v3404, %v3403
      %v3449 = vpack.c.bf16 %v2442, %v2441
      %v3450 = vpack.c.bf16 %v3310, %v3309
      %v3451 = vpack.c.bf16 %v3406, %v3405
      %v3452 = vpack.c.bf16 %v2444, %v2443
      %v3453 = vpack.c.bf16 %v3312, %v3311
      %v3454 = vpack.c.bf16 %v3408, %v3407
      %v3455 = vpack.c.bf16 %v2446, %v2445
      %v3456 = vpack.c.bf16 %v3314, %v3313
      %v3457 = vpack.c.bf16 %v3410, %v3409
      %v3458 = vpack.c.bf16 %v2448, %v2447
      %v3459 = vld [vmem:[%s3] sm:$0xf]
      %v3460 = vld [vmem:[%s3 + $0x4] sm:$0xf]
      %v3461 = vld [vmem:[%s3 + $0x8] sm:$0xf]
      %v3462 = vld [vmem:[%s3 + $0xc] sm:$0xf]
      %v3463 = vld [vmem:[%s3 + $0x10] sm:$0xf]
      %v3464 = vld [vmem:[%s3 + $0x14] sm:$0xf]
      %v3465 = vld [vmem:[%s3 + $0x18] sm:$0xf]
      %v3466 = vld [vmem:[%s3 + $0x1c] sm:$0xf]
      %v3467 = vld [vmem:[%s3 + $0x20] sm:$0xf]
      %v3468 = vld [vmem:[%s3 + $0x24] sm:$0xf]
      %v3469 = vld [vmem:[%s3 + $0x28] sm:$0xf]
      %v3470 = vld [vmem:[%s3 + $0x2c] sm:$0xf]
      %v3471 = vld [vmem:[%s3 + $0x30] sm:$0xf]
      %v3472 = vld [vmem:[%s3 + $0x34] sm:$0xf]
      %v3473 = vld [vmem:[%s3 + $0x38] sm:$0xf]
      %v3474 = vld [vmem:[%s3 + $0x3c] sm:$0xf]
      %v3475 = vld [vmem:[%s3 + $0x40] sm:$0xf]
      %v3476 = vld [vmem:[%s3 + $0x44] sm:$0xf]
      %v3477 = vld [vmem:[%s3 + $0x48] sm:$0xf]
      %v3478 = vld [vmem:[%s3 + $0x4c] sm:$0xf]
      %v3479 = vld [vmem:[%s3 + $0x50] sm:$0xf]
      %v3480 = vld [vmem:[%s3 + $0x54] sm:$0xf]
      %v3481 = vld [vmem:[%s3 + $0x58] sm:$0xf]
      %v3482 = vld [vmem:[%s3 + $0x5c] sm:$0xf]
      %v3483 = vld [vmem:[%s3 + $0x60] sm:$0xf]
      %v3484 = vld [vmem:[%s3 + $0x64] sm:$0xf]
      %v3485 = vld [vmem:[%s3 + $0x68] sm:$0xf]
      %v3486 = vld [vmem:[%s3 + $0x6c] sm:$0xf]
      %v3487 = vld [vmem:[%s3 + $0x70] sm:$0xf]
      %v3488 = vld [vmem:[%s3 + $0x74] sm:$0xf]
      %v3489 = vld [vmem:[%s3 + $0x78] sm:$0xf]
      %v3490 = vld [vmem:[%s3 + $0x7c] sm:$0xf]
      %v3491 = vld [vmem:[%s3 + $0x80] sm:$0xf]
      %v3492 = vld [vmem:[%s3 + $0x84] sm:$0xf]
      %v3493 = vld [vmem:[%s3 + $0x88] sm:$0xf]
      %v3494 = vld [vmem:[%s3 + $0x8c] sm:$0xf]
      %v3495 = vld [vmem:[%s4] sm:$0x1]
      %v3497 = vperm.slane %v3495, 0
      %v3535 = vunpack.c.l.b16 %v3459
      %v3536 = vunpack.c.l.b16 %v3460
      %v3537 = vunpack.c.l.b16 %v3461
      %v3538 = vunpack.c.l.b16 %v3462
      %v3539 = vunpack.c.l.b16 %v3463
      %v3540 = vunpack.c.l.b16 %v3464
      %v3541 = vunpack.c.l.b16 %v3465
      %v3542 = vunpack.c.l.b16 %v3466
      %v3543 = vunpack.c.l.b16 %v3467
      %v3544 = vunpack.c.l.b16 %v3468
      %v3545 = vunpack.c.l.b16 %v3469
      %v3546 = vunpack.c.l.b16 %v3470
      %v3547 = vunpack.c.l.b16 %v3471
      %v3548 = vunpack.c.l.b16 %v3472
      %v3549 = vunpack.c.l.b16 %v3473
      %v3550 = vunpack.c.l.b16 %v3474
      %v3551 = vunpack.c.l.b16 %v3475
      %v3552 = vunpack.c.l.b16 %v3476
      %v3553 = vunpack.c.l.b16 %v3477
      %v3554 = vunpack.c.l.b16 %v3478
      %v3555 = vunpack.c.l.b16 %v3479
      %v3556 = vunpack.c.l.b16 %v3480
      %v3557 = vunpack.c.l.b16 %v3481
      %v3558 = vunpack.c.l.b16 %v3482
      %v3559 = vunpack.c.l.b16 %v3483
      %v3560 = vunpack.c.l.b16 %v3484
      %v3561 = vunpack.c.l.b16 %v3485
      %v3562 = vunpack.c.l.b16 %v3486
      %v3563 = vunpack.c.l.b16 %v3487
      %v3564 = vunpack.c.l.b16 %v3488
      %v3565 = vunpack.c.l.b16 %v3489
      %v3566 = vunpack.c.l.b16 %v3490
      %v3567 = vunpack.c.l.b16 %v3491
      %v3568 = vunpack.c.l.b16 %v3492
      %v3569 = vunpack.c.l.b16 %v3493
      %v3570 = vunpack.c.l.b16 %v3494
      %v3571 = vpack.c.b16 %v3536, %v3535
      %v3572 = vpack.c.b16 %v3538, %v3537
      %v3573 = vpack.c.b16 %v3540, %v3539
      %v3574 = vpack.c.b16 %v3542, %v3541
      %v3575 = vpack.c.b16 %v3544, %v3543
      %v3576 = vpack.c.b16 %v3546, %v3545
      %v3577 = vpack.c.b16 %v3548, %v3547
      %v3578 = vpack.c.b16 %v3550, %v3549
      %v3579 = vpack.c.b16 %v3552, %v3551
      %v3580 = vpack.c.b16 %v3554, %v3553
      %v3581 = vpack.c.b16 %v3556, %v3555
      %v3582 = vpack.c.b16 %v3558, %v3557
      %v3583 = vpack.c.b16 %v3560, %v3559
      %v3584 = vpack.c.b16 %v3562, %v3561
      %v3585 = vpack.c.b16 %v3564, %v3563
      %v3586 = vpack.c.b16 %v3566, %v3565
      %v3587 = vpack.c.b16 %v3568, %v3567
      %v3588 = vpack.c.b16 %v3570, %v3569
      %v3608 = vsel %vm1825, %v3413, 0
      %v3611 = vsel %vm1825, %v3416, 0
      %v3614 = vsel %vm1825, %v3419, 0
      %v3617 = vsel %vm1825, %v3422, 0
      %v3620 = vsel %vm1825, %v3425, 0
      %v3623 = vsel %vm1825, %v3428, 0
      %v3626 = vsel %vm1825, %v3431, 0
      %v3629 = vsel %vm1825, %v3434, 0
      %v3632 = vsel %vm1825, %v3437, 0
      %v3635 = vsel %vm1825, %v3440, 0
      %v3638 = vsel %vm1825, %v3443, 0
      %v3641 = vsel %vm1825, %v3446, 0
      %v3644 = vsel %vm1825, %v3449, 0
      %v3647 = vsel %vm1825, %v3452, 0
      %v3650 = vsel %vm1825, %v3455, 0
      %v3653 = vsel %vm1825, %v3458, 0
      %3655 = vmatpush.bf16.msra.mxu0 %v3578
      %3656 = vmatpush.bf16.msra.mxu0 %v3577
      %3657 = vmatpush.bf16.msra.mxu0 %v3576
      %3658 = vmatpush.bf16.msra.mxu0 %v3575
      %3659 = vmatpush.bf16.msra.mxu0 %v3574
      %3660 = vmatpush.bf16.msra.mxu0 %v3573
      %3661 = vmatpush.bf16.msra.mxu0 %v3572
      %3662 = vmatpush.bf16.msra.mxu0 %v3571
      %3663 = vmatmul.bf16.gmra.mxu0 %v3411
      %v3664 = vpop.f32.mrf.mxu0
      %v3665 = vadd.f32 %v3497, %v3664
      %v3666 = vpop.f32.mrf.mxu0
      %v3667 = vadd.f32 %v3497, %v3666
      %3668 = vmatmul.bf16.gmra.mxu0 %v3414
      %v3669 = vpop.f32.mrf.mxu0
      %v3670 = vadd.f32 %v3497, %v3669
      %v3671 = vpop.f32.mrf.mxu0
      %v3672 = vadd.f32 %v3497, %v3671
      %3673 = vmatmul.bf16.gmra.mxu0 %v3417
      %v3674 = vpop.f32.mrf.mxu0
      %v3675 = vadd.f32 %v3497, %v3674
      %v3676 = vpop.f32.mrf.mxu0
      %v3677 = vadd.f32 %v3497, %v3676
      %3678 = vmatmul.bf16.gmra.mxu0 %v3420
      %v3679 = vpop.f32.mrf.mxu0
      %v3680 = vadd.f32 %v3497, %v3679
      %v3681 = vpop.f32.mrf.mxu0
      %v3682 = vadd.f32 %v3497, %v3681
      %3683 = vmatmul.bf16.gmra.mxu0 %v3423
      %v3684 = vpop.f32.mrf.mxu0
      %v3685 = vadd.f32 %v3497, %v3684
      %v3686 = vpop.f32.mrf.mxu0
      %v3687 = vadd.f32 %v3497, %v3686
      %3688 = vmatmul.bf16.gmra.mxu0 %v3426
      %v3689 = vpop.f32.mrf.mxu0
      %v3690 = vadd.f32 %v3497, %v3689
      %v3691 = vpop.f32.mrf.mxu0
      %v3692 = vadd.f32 %v3497, %v3691
      %3693 = vmatmul.bf16.gmra.mxu0 %v3429
      %v3694 = vpop.f32.mrf.mxu0
      %v3695 = vadd.f32 %v3497, %v3694
      %v3696 = vpop.f32.mrf.mxu0
      %v3697 = vadd.f32 %v3497, %v3696
      %3698 = vmatmul.bf16.gmra.mxu0 %v3432
      %v3699 = vpop.f32.mrf.mxu0
      %v3700 = vadd.f32 %v3497, %v3699
      %v3701 = vpop.f32.mrf.mxu0
      %v3702 = vadd.f32 %v3497, %v3701
      %3703 = vmatmul.bf16.gmra.mxu0 %v3435
      %v3704 = vpop.f32.mrf.mxu0
      %v3705 = vadd.f32 %v3497, %v3704
      %v3706 = vpop.f32.mrf.mxu0
      %v3707 = vadd.f32 %v3497, %v3706
      %3708 = vmatmul.bf16.gmra.mxu0 %v3438
      %v3709 = vpop.f32.mrf.mxu0
      %v3710 = vadd.f32 %v3497, %v3709
      %v3711 = vpop.f32.mrf.mxu0
      %v3712 = vadd.f32 %v3497, %v3711
      %3713 = vmatmul.bf16.gmra.mxu0 %v3441
      %v3714 = vpop.f32.mrf.mxu0
      %v3715 = vadd.f32 %v3497, %v3714
      %v3716 = vpop.f32.mrf.mxu0
      %v3717 = vadd.f32 %v3497, %v3716
      %3718 = vmatmul.bf16.gmra.mxu0 %v3444
      %v3719 = vpop.f32.mrf.mxu0
      %v3720 = vadd.f32 %v3497, %v3719
      %v3721 = vpop.f32.mrf.mxu0
      %v3722 = vadd.f32 %v3497, %v3721
      %3723 = vmatmul.bf16.gmra.mxu0 %v3447
      %v3724 = vpop.f32.mrf.mxu0
      %v3725 = vadd.f32 %v3497, %v3724
      %v3726 = vpop.f32.mrf.mxu0
      %v3727 = vadd.f32 %v3497, %v3726
      %3728 = vmatmul.bf16.gmra.mxu0 %v3450
      %v3729 = vpop.f32.mrf.mxu0
      %v3730 = vadd.f32 %v3497, %v3729
      %v3731 = vpop.f32.mrf.mxu0
      %v3732 = vadd.f32 %v3497, %v3731
      %3733 = vmatmul.bf16.gmra.mxu0 %v3453
      %v3734 = vpop.f32.mrf.mxu0
      %v3735 = vadd.f32 %v3497, %v3734
      %v3736 = vpop.f32.mrf.mxu0
      %v3737 = vadd.f32 %v3497, %v3736
      %3738 = vmatmul.bf16.gmra.mxu0 %v3456
      %v3739 = vpop.f32.mrf.mxu0
      %v3740 = vadd.f32 %v3497, %v3739
      %v3741 = vpop.f32.mrf.mxu0
      %v3742 = vadd.f32 %v3497, %v3741
      %3743 = vdwg.mxu0
      %3744 = vmatpush.bf16.msra.mxu0 %v3586
      %3745 = vmatpush.bf16.msra.mxu0 %v3585
      %3746 = vmatpush.bf16.msra.mxu0 %v3584
      %3747 = vmatpush.bf16.msra.mxu0 %v3583
      %3748 = vmatpush.bf16.msra.mxu0 %v3582
      %3749 = vmatpush.bf16.msra.mxu0 %v3581
      %3750 = vmatpush.bf16.msra.mxu0 %v3580
      %3751 = vmatpush.bf16.msra.mxu0 %v3579
      %3752 = vmatmul.bf16.gmra.mxu0 %v3412
      %v3753 = vpop.f32.mrf.mxu0
      %v3754 = vadd.f32 %v3665, %v3753
      %v3755 = vpop.f32.mrf.mxu0
      %v3756 = vadd.f32 %v3667, %v3755
      %3757 = vmatmul.bf16.gmra.mxu0 %v3415
      %v3758 = vpop.f32.mrf.mxu0
      %v3759 = vadd.f32 %v3670, %v3758
      %v3760 = vpop.f32.mrf.mxu0
      %v3761 = vadd.f32 %v3672, %v3760
      %3762 = vmatmul.bf16.gmra.mxu0 %v3418
      %v3763 = vpop.f32.mrf.mxu0
      %v3764 = vadd.f32 %v3675, %v3763
      %v3765 = vpop.f32.mrf.mxu0
      %v3766 = vadd.f32 %v3677, %v3765
      %3767 = vmatmul.bf16.gmra.mxu0 %v3421
      %v3768 = vpop.f32.mrf.mxu0
      %v3769 = vadd.f32 %v3680, %v3768
      %v3770 = vpop.f32.mrf.mxu0
      %v3771 = vadd.f32 %v3682, %v3770
      %3772 = vmatmul.bf16.gmra.mxu0 %v3424
      %v3773 = vpop.f32.mrf.mxu0
      %v3774 = vadd.f32 %v3685, %v3773
      %v3775 = vpop.f32.mrf.mxu0
      %v3776 = vadd.f32 %v3687, %v3775
      %3777 = vmatmul.bf16.gmra.mxu0 %v3427
      %v3778 = vpop.f32.mrf.mxu0
      %v3779 = vadd.f32 %v3690, %v3778
      %v3780 = vpop.f32.mrf.mxu0
      %v3781 = vadd.f32 %v3692, %v3780
      %3782 = vmatmul.bf16.gmra.mxu0 %v3430
      %v3783 = vpop.f32.mrf.mxu0
      %v3784 = vadd.f32 %v3695, %v3783
      %v3785 = vpop.f32.mrf.mxu0
      %v3786 = vadd.f32 %v3697, %v3785
      %3787 = vmatmul.bf16.gmra.mxu0 %v3433
      %v3788 = vpop.f32.mrf.mxu0
      %v3789 = vadd.f32 %v3700, %v3788
      %v3790 = vpop.f32.mrf.mxu0
      %v3791 = vadd.f32 %v3702, %v3790
      %3792 = vmatmul.bf16.gmra.mxu0 %v3436
      %v3793 = vpop.f32.mrf.mxu0
      %v3794 = vadd.f32 %v3705, %v3793
      %v3795 = vpop.f32.mrf.mxu0
      %v3796 = vadd.f32 %v3707, %v3795
      %3797 = vmatmul.bf16.gmra.mxu0 %v3439
      %v3798 = vpop.f32.mrf.mxu0
      %v3799 = vadd.f32 %v3710, %v3798
      %v3800 = vpop.f32.mrf.mxu0
      %v3801 = vadd.f32 %v3712, %v3800
      %3802 = vmatmul.bf16.gmra.mxu0 %v3442
      %v3803 = vpop.f32.mrf.mxu0
      %v3804 = vadd.f32 %v3715, %v3803
      %v3805 = vpop.f32.mrf.mxu0
      %v3806 = vadd.f32 %v3717, %v3805
      %3807 = vmatmul.bf16.gmra.mxu0 %v3445
      %v3808 = vpop.f32.mrf.mxu0
      %v3809 = vadd.f32 %v3720, %v3808
      %v3810 = vpop.f32.mrf.mxu0
      %v3811 = vadd.f32 %v3722, %v3810
      %3812 = vmatmul.bf16.gmra.mxu0 %v3448
      %v3813 = vpop.f32.mrf.mxu0
      %v3814 = vadd.f32 %v3725, %v3813
      %v3815 = vpop.f32.mrf.mxu0
      %v3816 = vadd.f32 %v3727, %v3815
      %3817 = vmatmul.bf16.gmra.mxu0 %v3451
      %v3818 = vpop.f32.mrf.mxu0
      %v3819 = vadd.f32 %v3730, %v3818
      %v3820 = vpop.f32.mrf.mxu0
      %v3821 = vadd.f32 %v3732, %v3820
      %3822 = vmatmul.bf16.gmra.mxu0 %v3454
      %v3823 = vpop.f32.mrf.mxu0
      %v3824 = vadd.f32 %v3735, %v3823
      %v3825 = vpop.f32.mrf.mxu0
      %v3826 = vadd.f32 %v3737, %v3825
      %3827 = vmatmul.bf16.gmra.mxu0 %v3457
      %v3828 = vpop.f32.mrf.mxu0
      %v3829 = vadd.f32 %v3740, %v3828
      %v3830 = vpop.f32.mrf.mxu0
      %v3831 = vadd.f32 %v3742, %v3830
      %3832 = vdwg.mxu0
      %3833 = vmatpush.bf16.msra.mxu0 0
      %3834 = vmatpush.bf16.msra.mxu0 0
      %3835 = vmatpush.bf16.msra.mxu0 0
      %3836 = vmatpush.bf16.msra.mxu0 0
      %3837 = vmatpush.bf16.msra.mxu0 0
      %3838 = vmatpush.bf16.msra.mxu0 0
      %3839 = vmatpush.bf16.msra.mxu0 %v3588
      %3840 = vmatpush.bf16.msra.mxu0 %v3587
      %3841 = vmatmul.bf16.gmra.mxu0 %v3608
      %v3842 = vpop.f32.mrf.mxu0
      %v3843 = vadd.f32 %v3754, %v3842
      %v3844 = vpop.f32.mrf.mxu0
      %v3845 = vadd.f32 %v3756, %v3844
      %3846 = vmatmul.bf16.gmra.mxu0 %v3611
      %v3847 = vpop.f32.mrf.mxu0
      %v3848 = vadd.f32 %v3759, %v3847
      %v3849 = vpop.f32.mrf.mxu0
      %v3850 = vadd.f32 %v3761, %v3849
      %3851 = vmatmul.bf16.gmra.mxu0 %v3614
      %v3852 = vpop.f32.mrf.mxu0
      %v3853 = vadd.f32 %v3764, %v3852
      %v3854 = vpop.f32.mrf.mxu0
      %v3855 = vadd.f32 %v3766, %v3854
      %3856 = vmatmul.bf16.gmra.mxu0 %v3617
      %v3857 = vpop.f32.mrf.mxu0
      %v3858 = vadd.f32 %v3769, %v3857
      %v3859 = vpop.f32.mrf.mxu0
      %v3860 = vadd.f32 %v3771, %v3859
      %3861 = vmatmul.bf16.gmra.mxu0 %v3620
      %v3862 = vpop.f32.mrf.mxu0
      %v3863 = vadd.f32 %v3774, %v3862
      %v3864 = vpop.f32.mrf.mxu0
      %v3865 = vadd.f32 %v3776, %v3864
      %3866 = vmatmul.bf16.gmra.mxu0 %v3623
      %v3867 = vpop.f32.mrf.mxu0
      %v3868 = vadd.f32 %v3779, %v3867
      %v3869 = vpop.f32.mrf.mxu0
      %v3870 = vadd.f32 %v3781, %v3869
      %3871 = vmatmul.bf16.gmra.mxu0 %v3626
      %v3872 = vpop.f32.mrf.mxu0
      %v3873 = vadd.f32 %v3784, %v3872
      %v3874 = vpop.f32.mrf.mxu0
      %v3875 = vadd.f32 %v3786, %v3874
      %3876 = vmatmul.bf16.gmra.mxu0 %v3629
      %v3877 = vpop.f32.mrf.mxu0
      %v3878 = vadd.f32 %v3789, %v3877
      %v3879 = vpop.f32.mrf.mxu0
      %v3880 = vadd.f32 %v3791, %v3879
      %3881 = vmatmul.bf16.gmra.mxu0 %v3632
      %v3882 = vpop.f32.mrf.mxu0
      %v3883 = vadd.f32 %v3794, %v3882
      %v3884 = vpop.f32.mrf.mxu0
      %v3885 = vadd.f32 %v3796, %v3884
      %3886 = vmatmul.bf16.gmra.mxu0 %v3635
      %v3887 = vpop.f32.mrf.mxu0
      %v3888 = vadd.f32 %v3799, %v3887
      %v3889 = vpop.f32.mrf.mxu0
      %v3890 = vadd.f32 %v3801, %v3889
      %3891 = vmatmul.bf16.gmra.mxu0 %v3638
      %v3892 = vpop.f32.mrf.mxu0
      %v3893 = vadd.f32 %v3804, %v3892
      %v3894 = vpop.f32.mrf.mxu0
      %v3895 = vadd.f32 %v3806, %v3894
      %3896 = vmatmul.bf16.gmra.mxu0 %v3641
      %v3897 = vpop.f32.mrf.mxu0
      %v3898 = vadd.f32 %v3809, %v3897
      %v3899 = vpop.f32.mrf.mxu0
      %v3900 = vadd.f32 %v3811, %v3899
      %3901 = vmatmul.bf16.gmra.mxu0 %v3644
      %v3902 = vpop.f32.mrf.mxu0
      %v3903 = vadd.f32 %v3814, %v3902
      %v3904 = vpop.f32.mrf.mxu0
      %v3905 = vadd.f32 %v3816, %v3904
      %3906 = vmatmul.bf16.gmra.mxu0 %v3647
      %v3907 = vpop.f32.mrf.mxu0
      %v3908 = vadd.f32 %v3819, %v3907
      %v3909 = vpop.f32.mrf.mxu0
      %v3910 = vadd.f32 %v3821, %v3909
      %3911 = vmatmul.bf16.gmra.mxu0 %v3650
      %v3912 = vpop.f32.mrf.mxu0
      %v3913 = vadd.f32 %v3824, %v3912
      %v3914 = vpop.f32.mrf.mxu0
      %v3915 = vadd.f32 %v3826, %v3914
      %3916 = vmatmul.bf16.gmra.mxu0 %v3653
      %v3917 = vpop.f32.mrf.mxu0
      %v3918 = vadd.f32 %v3829, %v3917
      %v3919 = vpop.f32.mrf.mxu0
      %v3920 = vadd.f32 %v3831, %v3919
      %3921 = vdwg.mxu0
      %v3922 = vmax.f32 %v3843, 0.0
      %v3923 = vmax.f32 %v3845, 0.0
      %v3924 = vmax.f32 %v3848, 0.0
      %v3925 = vmax.f32 %v3850, 0.0
      %v3926 = vmax.f32 %v3853, 0.0
      %v3927 = vmax.f32 %v3855, 0.0
      %v3928 = vmax.f32 %v3858, 0.0
      %v3929 = vmax.f32 %v3860, 0.0
      %v3930 = vmax.f32 %v3863, 0.0
      %v3931 = vmax.f32 %v3865, 0.0
      %v3932 = vmax.f32 %v3868, 0.0
      %v3933 = vmax.f32 %v3870, 0.0
      %v3934 = vmax.f32 %v3873, 0.0
      %v3935 = vmax.f32 %v3875, 0.0
      %v3936 = vmax.f32 %v3878, 0.0
      %v3937 = vmax.f32 %v3880, 0.0
      %v3938 = vmax.f32 %v3883, 0.0
      %v3939 = vmax.f32 %v3885, 0.0
      %v3940 = vmax.f32 %v3888, 0.0
      %v3941 = vmax.f32 %v3890, 0.0
      %v3942 = vmax.f32 %v3893, 0.0
      %v3943 = vmax.f32 %v3895, 0.0
      %v3944 = vmax.f32 %v3898, 0.0
      %v3945 = vmax.f32 %v3900, 0.0
      %v3946 = vmax.f32 %v3903, 0.0
      %v3947 = vmax.f32 %v3905, 0.0
      %v3948 = vmax.f32 %v3908, 0.0
      %v3949 = vmax.f32 %v3910, 0.0
      %v3950 = vmax.f32 %v3913, 0.0
      %v3951 = vmax.f32 %v3915, 0.0
      %v3952 = vmax.f32 %v3918, 0.0
      %v3953 = vmax.f32 %v3920, 0.0
      %v3954 = vpack.c.bf16 %v3923, %v3922
      %v3955 = vpack.c.bf16 %v3925, %v3924
      %v3956 = vpack.c.bf16 %v3927, %v3926
      %v3957 = vpack.c.bf16 %v3929, %v3928
      %v3958 = vpack.c.bf16 %v3931, %v3930
      %v3959 = vpack.c.bf16 %v3933, %v3932
      %v3960 = vpack.c.bf16 %v3935, %v3934
      %v3961 = vpack.c.bf16 %v3937, %v3936
      %v3962 = vpack.c.bf16 %v3939, %v3938
      %v3963 = vpack.c.bf16 %v3941, %v3940
      %v3964 = vpack.c.bf16 %v3943, %v3942
      %v3965 = vpack.c.bf16 %v3945, %v3944
      %v3966 = vpack.c.bf16 %v3947, %v3946
      %v3967 = vpack.c.bf16 %v3949, %v3948
      %v3968 = vpack.c.bf16 %v3951, %v3950
      %v3969 = vpack.c.bf16 %v3953, %v3952
      %v3970 = vld [vmem:[%s5] sm:$0xf]
      %v3971 = vld [vmem:[%s6] sm:$0x1]
      %v3973 = vperm.slane %v3971, 0
      %v3976 = vsel %vm1627, %v3954, 0
      %v3979 = vsel %vm1627, %v3955, 0
      %v3982 = vsel %vm1627, %v3956, 0
      %v3985 = vsel %vm1627, %v3957, 0
      %v3988 = vsel %vm1627, %v3958, 0
      %v3991 = vsel %vm1627, %v3959, 0
      %v3994 = vsel %vm1627, %v3960, 0
      %v3997 = vsel %vm1627, %v3961, 0
      %v4000 = vsel %vm1627, %v3962, 0
      %v4003 = vsel %vm1627, %v3963, 0
      %v4006 = vsel %vm1627, %v3964, 0
      %v4009 = vsel %vm1627, %v3965, 0
      %v4012 = vsel %vm1627, %v3966, 0
      %v4015 = vsel %vm1627, %v3967, 0
      %v4018 = vsel %vm1627, %v3968, 0
      %v4021 = vsel %vm1627, %v3969, 0
      %vm4023 = vcmask 1043456
      %v4025 = vsel %vm4023, %v3970, 0
      %4027 = vmatpush.bf16.msra.mxu0 0
      %4028 = vmatpush.bf16.msra.mxu0 0
      %4029 = vmatpush.bf16.msra.mxu0 0
      %4030 = vmatpush.bf16.msra.mxu0 0
      %4031 = vmatpush.bf16.msra.mxu0 0
      %4032 = vmatpush.bf16.msra.mxu0 0
      %4033 = vmatpush.bf16.msra.mxu0 0
      %4034 = vmatpush.bf16.msra.mxu0 %v4025
      %4035 = vmatmul.bf16.gmra.mxu0 %v3976
      %v4036 = vpop.f32.mrf.mxu0
      %v4037 = vadd.f32 %v3973, %v4036
      %v4038 = vpop.f32.mrf.mxu0
      %v4039 = vadd.f32 %v3973, %v4038
      %4040 = vmatmul.bf16.gmra.mxu0 %v3979
      %v4041 = vpop.f32.mrf.mxu0
      %v4042 = vadd.f32 %v3973, %v4041
      %v4043 = vpop.f32.mrf.mxu0
      %v4044 = vadd.f32 %v3973, %v4043
      %4045 = vmatmul.bf16.gmra.mxu0 %v3982
      %v4046 = vpop.f32.mrf.mxu0
      %v4047 = vadd.f32 %v3973, %v4046
      %v4048 = vpop.f32.mrf.mxu0
      %v4049 = vadd.f32 %v3973, %v4048
      %4050 = vmatmul.bf16.gmra.mxu0 %v3985
      %v4051 = vpop.f32.mrf.mxu0
      %v4052 = vadd.f32 %v3973, %v4051
      %v4053 = vpop.f32.mrf.mxu0
      %v4054 = vadd.f32 %v3973, %v4053
      %4055 = vmatmul.bf16.gmra.mxu0 %v3988
      %v4056 = vpop.f32.mrf.mxu0
      %v4057 = vadd.f32 %v3973, %v4056
      %v4058 = vpop.f32.mrf.mxu0
      %v4059 = vadd.f32 %v3973, %v4058
      %4060 = vmatmul.bf16.gmra.mxu0 %v3991
      %v4061 = vpop.f32.mrf.mxu0
      %v4062 = vadd.f32 %v3973, %v4061
      %v4063 = vpop.f32.mrf.mxu0
      %v4064 = vadd.f32 %v3973, %v4063
      %4065 = vmatmul.bf16.gmra.mxu0 %v3994
      %v4066 = vpop.f32.mrf.mxu0
      %v4067 = vadd.f32 %v3973, %v4066
      %v4068 = vpop.f32.mrf.mxu0
      %v4069 = vadd.f32 %v3973, %v4068
      %4070 = vmatmul.bf16.gmra.mxu0 %v3997
      %v4071 = vpop.f32.mrf.mxu0
      %v4072 = vadd.f32 %v3973, %v4071
      %v4073 = vpop.f32.mrf.mxu0
      %v4074 = vadd.f32 %v3973, %v4073
      %4075 = vmatmul.bf16.gmra.mxu0 %v4000
      %v4076 = vpop.f32.mrf.mxu0
      %v4077 = vadd.f32 %v3973, %v4076
      %v4078 = vpop.f32.mrf.mxu0
      %v4079 = vadd.f32 %v3973, %v4078
      %4080 = vmatmul.bf16.gmra.mxu0 %v4003
      %v4081 = vpop.f32.mrf.mxu0
      %v4082 = vadd.f32 %v3973, %v4081
      %v4083 = vpop.f32.mrf.mxu0
      %v4084 = vadd.f32 %v3973, %v4083
      %4085 = vmatmul.bf16.gmra.mxu0 %v4006
      %v4086 = vpop.f32.mrf.mxu0
      %v4087 = vadd.f32 %v3973, %v4086
      %v4088 = vpop.f32.mrf.mxu0
      %v4089 = vadd.f32 %v3973, %v4088
      %4090 = vmatmul.bf16.gmra.mxu0 %v4009
      %v4091 = vpop.f32.mrf.mxu0
      %v4092 = vadd.f32 %v3973, %v4091
      %v4093 = vpop.f32.mrf.mxu0
      %v4094 = vadd.f32 %v3973, %v4093
      %4095 = vmatmul.bf16.gmra.mxu0 %v4012
      %v4096 = vpop.f32.mrf.mxu0
      %v4097 = vadd.f32 %v3973, %v4096
      %v4098 = vpop.f32.mrf.mxu0
      %v4099 = vadd.f32 %v3973, %v4098
      %4100 = vmatmul.bf16.gmra.mxu0 %v4015
      %v4101 = vpop.f32.mrf.mxu0
      %v4102 = vadd.f32 %v3973, %v4101
      %v4103 = vpop.f32.mrf.mxu0
      %v4104 = vadd.f32 %v3973, %v4103
      %4105 = vmatmul.bf16.gmra.mxu0 %v4018
      %v4106 = vpop.f32.mrf.mxu0
      %v4107 = vadd.f32 %v3973, %v4106
      %v4108 = vpop.f32.mrf.mxu0
      %v4109 = vadd.f32 %v3973, %v4108
      %4110 = vmatmul.bf16.gmra.mxu0 %v4021
      %v4111 = vpop.f32.mrf.mxu0
      %v4112 = vadd.f32 %v3973, %v4111
      %v4113 = vpop.f32.mrf.mxu0
      %v4114 = vadd.f32 %v3973, %v4113
      %4115 = vdwg.mxu0
      %v4116 = vadd.f32 %v2095, %v4037
      %v4117 = vadd.f32 %v2096, %v4039
      %v4118 = vadd.f32 %v2097, %v4042
      %v4119 = vadd.f32 %v2098, %v4044
      %v4120 = vadd.f32 %v2099, %v4047
      %v4121 = vadd.f32 %v2100, %v4049
      %v4122 = vadd.f32 %v2101, %v4052
      %v4123 = vadd.f32 %v2102, %v4054
      %v4124 = vadd.f32 %v2103, %v4057
      %v4125 = vadd.f32 %v2104, %v4059
      %v4126 = vadd.f32 %v2105, %v4062
      %v4127 = vadd.f32 %v2106, %v4064
      %v4128 = vadd.f32 %v2107, %v4067
      %v4129 = vadd.f32 %v2108, %v4069
      %v4130 = vadd.f32 %v2109, %v4072
      %v4131 = vadd.f32 %v2110, %v4074
      %v4132 = vadd.f32 %v2111, %v4077
      %v4133 = vadd.f32 %v2112, %v4079
      %v4134 = vadd.f32 %v2113, %v4082
      %v4135 = vadd.f32 %v2114, %v4084
      %v4136 = vadd.f32 %v2115, %v4087
      %v4137 = vadd.f32 %v2116, %v4089
      %v4138 = vadd.f32 %v2117, %v4092
      %v4139 = vadd.f32 %v2118, %v4094
      %v4140 = vadd.f32 %v2119, %v4097
      %v4141 = vadd.f32 %v2120, %v4099
      %v4142 = vadd.f32 %v2121, %v4102
      %v4143 = vadd.f32 %v2122, %v4104
      %v4144 = vadd.f32 %v2123, %v4107
      %v4145 = vadd.f32 %v2124, %v4109
      %v4146 = vadd.f32 %v2125, %v4112
      %v4147 = vadd.f32 %v2126, %v4114
      %v4148 = vmax.f32 %v4116, 0.0
      %v4149 = vmax.f32 %v4117, 0.0
      %v4150 = vmax.f32 %v4118, 0.0
      %v4151 = vmax.f32 %v4119, 0.0
      %v4152 = vmax.f32 %v4120, 0.0
      %v4153 = vmax.f32 %v4121, 0.0
      %v4154 = vmax.f32 %v4122, 0.0
      %v4155 = vmax.f32 %v4123, 0.0
      %v4156 = vmax.f32 %v4124, 0.0
      %v4157 = vmax.f32 %v4125, 0.0
      %v4158 = vmax.f32 %v4126, 0.0
      %v4159 = vmax.f32 %v4127, 0.0
      %v4160 = vmax.f32 %v4128, 0.0
      %v4161 = vmax.f32 %v4129, 0.0
      %v4162 = vmax.f32 %v4130, 0.0
      %v4163 = vmax.f32 %v4131, 0.0
      %v4164 = vmax.f32 %v4132, 0.0
      %v4165 = vmax.f32 %v4133, 0.0
      %v4166 = vmax.f32 %v4134, 0.0
      %v4167 = vmax.f32 %v4135, 0.0
      %v4168 = vmax.f32 %v4136, 0.0
      %v4169 = vmax.f32 %v4137, 0.0
      %v4170 = vmax.f32 %v4138, 0.0
      %v4171 = vmax.f32 %v4139, 0.0
      %v4172 = vmax.f32 %v4140, 0.0
      %v4173 = vmax.f32 %v4141, 0.0
      %v4174 = vmax.f32 %v4142, 0.0
      %v4175 = vmax.f32 %v4143, 0.0
      %v4176 = vmax.f32 %v4144, 0.0
      %v4177 = vmax.f32 %v4145, 0.0
      %v4178 = vmax.f32 %v4146, 0.0
      %v4179 = vmax.f32 %v4147, 0.0
      %4180 = vst.msk [vmem:[%s2127 + $0x1] sm:$0xff] %vm1825, %v4148
      %4181 = vst.msk [vmem:[%s2127 + $0x9] sm:$0xff] %vm1825, %v4149
      %4182 = vst.msk [vmem:[%s2127 + $0x19] sm:$0xff] %vm1825, %v4150
      %4183 = vst.msk [vmem:[%s2127 + $0x21] sm:$0xff] %vm1825, %v4151
      %4184 = vst.msk [vmem:[%s2127 + $0x31] sm:$0xff] %vm1825, %v4152
      %4185 = vst.msk [vmem:[%s2127 + $0x39] sm:$0xff] %vm1825, %v4153
      %4186 = vst.msk [vmem:[%s2127 + $0x49] sm:$0xff] %vm1825, %v4154
      %4187 = vst.msk [vmem:[%s2127 + $0x51] sm:$0xff] %vm1825, %v4155
      %4188 = vst.msk [vmem:[%s2127 + $0x61] sm:$0xff] %vm1825, %v4156
      %4189 = vst.msk [vmem:[%s2127 + $0x69] sm:$0xff] %vm1825, %v4157
      %4190 = vst.msk [vmem:[%s2127 + $0x79] sm:$0xff] %vm1825, %v4158
      %4191 = vst.msk [vmem:[%s2127 + $0x81] sm:$0xff] %vm1825, %v4159
      %4192 = vst.msk [vmem:[%s2127 + $0x91] sm:$0xff] %vm1825, %v4160
      %4193 = vst.msk [vmem:[%s2127 + $0x99] sm:$0xff] %vm1825, %v4161
      %4194 = vst.msk [vmem:[%s2127 + $0xa9] sm:$0xff] %vm1825, %v4162
      %4195 = vst.msk [vmem:[%s2127 + $0xb1] sm:$0xff] %vm1825, %v4163
      %4196 = vst.msk [vmem:[%s2127 + $0xc1] sm:$0xff] %vm1825, %v4164
      %4197 = vst.msk [vmem:[%s2127 + $0xc9] sm:$0xff] %vm1825, %v4165
      %4198 = vst.msk [vmem:[%s2127 + $0xd9] sm:$0xff] %vm1825, %v4166
      %4199 = vst.msk [vmem:[%s2127 + $0xe1] sm:$0xff] %vm1825, %v4167
      %4200 = vst.msk [vmem:[%s2127 + $0xf1] sm:$0xff] %vm1825, %v4168
      %4201 = vst.msk [vmem:[%s2127 + $0xf9] sm:$0xff] %vm1825, %v4169
      %4202 = vst.msk [vmem:[%s2127 + $0x109] sm:$0xff] %vm1825, %v4170
      %4203 = vst.msk [vmem:[%s2127 + $0x111] sm:$0xff] %vm1825, %v4171
      %4204 = vst.msk [vmem:[%s2127 + $0x121] sm:$0xff] %vm1825, %v4172
      %4205 = vst.msk [vmem:[%s2127 + $0x129] sm:$0xff] %vm1825, %v4173
      %4206 = vst.msk [vmem:[%s2127 + $0x139] sm:$0xff] %vm1825, %v4174
      %4207 = vst.msk [vmem:[%s2127 + $0x141] sm:$0xff] %vm1825, %v4175
      %4208 = vst.msk [vmem:[%s2127 + $0x151] sm:$0xff] %vm1825, %v4176
      %4209 = vst.msk [vmem:[%s2127 + $0x159] sm:$0xff] %vm1825, %v4177
      %4210 = vst.msk [vmem:[%s2127 + $0x169] sm:$0xff] %vm1825, %v4178
      %4211 = vst.msk [vmem:[%s2127 + $0x171] sm:$0xff] %vm1825, %v4179
      %v4212 = vld [vmem:[#allocation2] sm:$0xff]
      %v4213 = vld [vmem:[#allocation2 + $0x8] sm:$0xff]
      %v4214 = vld [vmem:[#allocation2 + $0x18] sm:$0xff]
      %v4215 = vld [vmem:[#allocation2 + $0x20] sm:$0xff]
      %v4216 = vld [vmem:[#allocation2 + $0x30] sm:$0xff]
      %v4217 = vld [vmem:[#allocation2 + $0x38] sm:$0xff]
      %v4218 = vld [vmem:[#allocation2 + $0x48] sm:$0xff]
      %v4219 = vld [vmem:[#allocation2 + $0x50] sm:$0xff]
      %v4220 = vld [vmem:[#allocation2 + $0x60] sm:$0xff]
      %v4221 = vld [vmem:[#allocation2 + $0x68] sm:$0xff]
      %v4222 = vld [vmem:[#allocation2 + $0x78] sm:$0xff]
      %v4223 = vld [vmem:[#allocation2 + $0x80] sm:$0xff]
      %v4224 = vld [vmem:[#allocation2 + $0x90] sm:$0xff]
      %v4225 = vld [vmem:[#allocation2 + $0x98] sm:$0xff]
      %v4226 = vld [vmem:[#allocation2 + $0xa8] sm:$0xff]
      %v4227 = vld [vmem:[#allocation2 + $0xb0] sm:$0xff]
      %v4228 = vld [vmem:[#allocation2 + $0xc0] sm:$0xff]
      %v4229 = vld [vmem:[#allocation2 + $0xc8] sm:$0xff]
      %v4230 = vld [vmem:[#allocation2 + $0xd8] sm:$0xff]
      %v4231 = vld [vmem:[#allocation2 + $0xe0] sm:$0xff]
      %v4232 = vld [vmem:[#allocation2 + $0xf0] sm:$0xff]
      %v4233 = vld [vmem:[#allocation2 + $0xf8] sm:$0xff]
      %v4234 = vld [vmem:[#allocation2 + $0x108] sm:$0xff]
      %v4235 = vld [vmem:[#allocation2 + $0x110] sm:$0xff]
      %v4236 = vld [vmem:[#allocation2 + $0x120] sm:$0xff]
      %v4237 = vld [vmem:[#allocation2 + $0x128] sm:$0xff]
      %v4238 = vld [vmem:[#allocation2 + $0x138] sm:$0xff]
      %v4239 = vld [vmem:[#allocation2 + $0x140] sm:$0xff]
      %v4240 = vld [vmem:[#allocation2 + $0x150] sm:$0xff]
      %v4241 = vld [vmem:[#allocation2 + $0x158] sm:$0xff]
      %v4242 = vld [vmem:[#allocation2 + $0x168] sm:$0xff]
      %v4243 = vld [vmem:[#allocation2 + $0x170] sm:$0xff]
      %v4244 = vld [vmem:[#allocation2 + $0x1] sm:$0xff]
      %v4245 = vld [vmem:[#allocation2 + $0x9] sm:$0xff]
      %v4246 = vld [vmem:[#allocation2 + $0x19] sm:$0xff]
      %v4247 = vld [vmem:[#allocation2 + $0x21] sm:$0xff]
      %v4248 = vld [vmem:[#allocation2 + $0x31] sm:$0xff]
      %v4249 = vld [vmem:[#allocation2 + $0x39] sm:$0xff]
      %v4250 = vld [vmem:[#allocation2 + $0x49] sm:$0xff]
      %v4251 = vld [vmem:[#allocation2 + $0x51] sm:$0xff]
      %v4252 = vld [vmem:[#allocation2 + $0x61] sm:$0xff]
      %v4253 = vld [vmem:[#allocation2 + $0x69] sm:$0xff]
      %v4254 = vld [vmem:[#allocation2 + $0x79] sm:$0xff]
      %v4255 = vld [vmem:[#allocation2 + $0x81] sm:$0xff]
      %v4256 = vld [vmem:[#allocation2 + $0x91] sm:$0xff]
      %v4257 = vld [vmem:[#allocation2 + $0x99] sm:$0xff]
      %v4258 = vld [vmem:[#allocation2 + $0xa9] sm:$0xff]
      %v4259 = vld [vmem:[#allocation2 + $0xb1] sm:$0xff]
      %v4260 = vld [vmem:[#allocation2 + $0xc1] sm:$0xff]
      %v4261 = vld [vmem:[#allocation2 + $0xc9] sm:$0xff]
      %v4262 = vld [vmem:[#allocation2 + $0xd9] sm:$0xff]
      %v4263 = vld [vmem:[#allocation2 + $0xe1] sm:$0xff]
      %v4264 = vld [vmem:[#allocation2 + $0xf1] sm:$0xff]
      %v4265 = vld [vmem:[#allocation2 + $0xf9] sm:$0xff]
      %v4266 = vld [vmem:[#allocation2 + $0x109] sm:$0xff]
      %v4267 = vld [vmem:[#allocation2 + $0x111] sm:$0xff]
      %v4268 = vld [vmem:[#allocation2 + $0x121] sm:$0xff]
      %v4269 = vld [vmem:[#allocation2 + $0x129] sm:$0xff]
      %v4270 = vld [vmem:[#allocation2 + $0x139] sm:$0xff]
      %v4271 = vld [vmem:[#allocation2 + $0x141] sm:$0xff]
      %v4272 = vld [vmem:[#allocation2 + $0x151] sm:$0xff]
      %v4273 = vld [vmem:[#allocation2 + $0x159] sm:$0xff]
      %v4274 = vld [vmem:[#allocation2 + $0x169] sm:$0xff]
      %v4275 = vld [vmem:[#allocation2 + $0x171] sm:$0xff]
      %v4276 = vld [vmem:[#allocation2 + $0x2] sm:$0xff]
      %v4277 = vld [vmem:[#allocation2 + $0xa] sm:$0xff]
      %v4278 = vld [vmem:[#allocation2 + $0x1a] sm:$0xff]
      %v4279 = vld [vmem:[#allocation2 + $0x22] sm:$0xff]
      %v4280 = vld [vmem:[#allocation2 + $0x32] sm:$0xff]
      %v4281 = vld [vmem:[#allocation2 + $0x3a] sm:$0xff]
      %v4282 = vld [vmem:[#allocation2 + $0x4a] sm:$0xff]
      %v4283 = vld [vmem:[#allocation2 + $0x52] sm:$0xff]
      %v4284 = vld [vmem:[#allocation2 + $0x62] sm:$0xff]
      %v4285 = vld [vmem:[#allocation2 + $0x6a] sm:$0xff]
      %v4286 = vld [vmem:[#allocation2 + $0x7a] sm:$0xff]
      %v4287 = vld [vmem:[#allocation2 + $0x82] sm:$0xff]
      %v4288 = vld [vmem:[#allocation2 + $0x92] sm:$0xff]
      %v4289 = vld [vmem:[#allocation2 + $0x9a] sm:$0xff]
      %v4290 = vld [vmem:[#allocation2 + $0xaa] sm:$0xff]
      %v4291 = vld [vmem:[#allocation2 + $0xb2] sm:$0xff]
      %v4292 = vld [vmem:[#allocation2 + $0xc2] sm:$0xff]
      %v4293 = vld [vmem:[#allocation2 + $0xca] sm:$0xff]
      %v4294 = vld [vmem:[#allocation2 + $0xda] sm:$0xff]
      %v4295 = vld [vmem:[#allocation2 + $0xe2] sm:$0xff]
      %v4296 = vld [vmem:[#allocation2 + $0xf2] sm:$0xff]
      %v4297 = vld [vmem:[#allocation2 + $0xfa] sm:$0xff]
      %v4298 = vld [vmem:[#allocation2 + $0x10a] sm:$0xff]
      %v4299 = vld [vmem:[#allocation2 + $0x112] sm:$0xff]
      %v4300 = vld [vmem:[#allocation2 + $0x122] sm:$0xff]
      %v4301 = vld [vmem:[#allocation2 + $0x12a] sm:$0xff]
      %v4302 = vld [vmem:[#allocation2 + $0x13a] sm:$0xff]
      %v4303 = vld [vmem:[#allocation2 + $0x142] sm:$0xff]
      %v4304 = vld [vmem:[#allocation2 + $0x152] sm:$0xff]
      %v4305 = vld [vmem:[#allocation2 + $0x15a] sm:$0xff]
      %v4306 = vld [vmem:[#allocation2 + $0x16a] sm:$0xff]
      %v4307 = vld [vmem:[#allocation2 + $0x172] sm:$0xff]
      %v4308 = vld [vmem:[%s2127] sm:$0xff]
      %v4309 = vld [vmem:[%s2127 + $0x8] sm:$0xff]
      %v4310 = vld [vmem:[%s2127 + $0x18] sm:$0xff]
      %v4311 = vld [vmem:[%s2127 + $0x20] sm:$0xff]
      %v4312 = vld [vmem:[%s2127 + $0x30] sm:$0xff]
      %v4313 = vld [vmem:[%s2127 + $0x38] sm:$0xff]
      %v4314 = vld [vmem:[%s2127 + $0x48] sm:$0xff]
      %v4315 = vld [vmem:[%s2127 + $0x50] sm:$0xff]
      %v4316 = vld [vmem:[%s2127 + $0x60] sm:$0xff]
      %v4317 = vld [vmem:[%s2127 + $0x68] sm:$0xff]
      %v4318 = vld [vmem:[%s2127 + $0x78] sm:$0xff]
      %v4319 = vld [vmem:[%s2127 + $0x80] sm:$0xff]
      %v4320 = vld [vmem:[%s2127 + $0x90] sm:$0xff]
      %v4321 = vld [vmem:[%s2127 + $0x98] sm:$0xff]
      %v4322 = vld [vmem:[%s2127 + $0xa8] sm:$0xff]
      %v4323 = vld [vmem:[%s2127 + $0xb0] sm:$0xff]
      %v4324 = vld [vmem:[%s2127 + $0xc0] sm:$0xff]
      %v4325 = vld [vmem:[%s2127 + $0xc8] sm:$0xff]
      %v4326 = vld [vmem:[%s2127 + $0xd8] sm:$0xff]
      %v4327 = vld [vmem:[%s2127 + $0xe0] sm:$0xff]
      %v4328 = vld [vmem:[%s2127 + $0xf0] sm:$0xff]
      %v4329 = vld [vmem:[%s2127 + $0xf8] sm:$0xff]
      %v4330 = vld [vmem:[%s2127 + $0x108] sm:$0xff]
      %v4331 = vld [vmem:[%s2127 + $0x110] sm:$0xff]
      %v4332 = vld [vmem:[%s2127 + $0x120] sm:$0xff]
      %v4333 = vld [vmem:[%s2127 + $0x128] sm:$0xff]
      %v4334 = vld [vmem:[%s2127 + $0x138] sm:$0xff]
      %v4335 = vld [vmem:[%s2127 + $0x140] sm:$0xff]
      %v4336 = vld [vmem:[%s2127 + $0x150] sm:$0xff]
      %v4337 = vld [vmem:[%s2127 + $0x158] sm:$0xff]
      %v4338 = vld [vmem:[%s2127 + $0x168] sm:$0xff]
      %v4339 = vld [vmem:[%s2127 + $0x170] sm:$0xff]
      %v4340 = vld [vmem:[%s2127 + $0x1] sm:$0xff]
      %v4341 = vld [vmem:[%s2127 + $0x9] sm:$0xff]
      %v4342 = vld [vmem:[%s2127 + $0x19] sm:$0xff]
      %v4343 = vld [vmem:[%s2127 + $0x21] sm:$0xff]
      %v4344 = vld [vmem:[%s2127 + $0x31] sm:$0xff]
      %v4345 = vld [vmem:[%s2127 + $0x39] sm:$0xff]
      %v4346 = vld [vmem:[%s2127 + $0x49] sm:$0xff]
      %v4347 = vld [vmem:[%s2127 + $0x51] sm:$0xff]
      %v4348 = vld [vmem:[%s2127 + $0x61] sm:$0xff]
      %v4349 = vld [vmem:[%s2127 + $0x69] sm:$0xff]
      %v4350 = vld [vmem:[%s2127 + $0x79] sm:$0xff]
      %v4351 = vld [vmem:[%s2127 + $0x81] sm:$0xff]
      %v4352 = vld [vmem:[%s2127 + $0x91] sm:$0xff]
      %v4353 = vld [vmem:[%s2127 + $0x99] sm:$0xff]
      %v4354 = vld [vmem:[%s2127 + $0xa9] sm:$0xff]
      %v4355 = vld [vmem:[%s2127 + $0xb1] sm:$0xff]
      %v4356 = vld [vmem:[%s2127 + $0xc1] sm:$0xff]
      %v4357 = vld [vmem:[%s2127 + $0xc9] sm:$0xff]
      %v4358 = vld [vmem:[%s2127 + $0xd9] sm:$0xff]
      %v4359 = vld [vmem:[%s2127 + $0xe1] sm:$0xff]
      %v4360 = vld [vmem:[%s2127 + $0xf1] sm:$0xff]
      %v4361 = vld [vmem:[%s2127 + $0xf9] sm:$0xff]
      %v4362 = vld [vmem:[%s2127 + $0x109] sm:$0xff]
      %v4363 = vld [vmem:[%s2127 + $0x111] sm:$0xff]
      %v4364 = vld [vmem:[%s2127 + $0x121] sm:$0xff]
      %v4365 = vld [vmem:[%s2127 + $0x129] sm:$0xff]
      %v4366 = vld [vmem:[%s2127 + $0x139] sm:$0xff]
      %v4367 = vld [vmem:[%s2127 + $0x141] sm:$0xff]
      %v4368 = vld [vmem:[%s2127 + $0x151] sm:$0xff]
      %v4369 = vld [vmem:[%s2127 + $0x159] sm:$0xff]
      %v4370 = vld [vmem:[%s2127 + $0x169] sm:$0xff]
      %v4371 = vld [vmem:[%s2127 + $0x171] sm:$0xff]
      %v4372 = vld [vmem:[%s2127 + $0x2] sm:$0xff]
      %v4373 = vld [vmem:[%s2127 + $0xa] sm:$0xff]
      %v4374 = vld [vmem:[%s2127 + $0x1a] sm:$0xff]
      %v4375 = vld [vmem:[%s2127 + $0x22] sm:$0xff]
      %v4376 = vld [vmem:[%s2127 + $0x32] sm:$0xff]
      %v4377 = vld [vmem:[%s2127 + $0x3a] sm:$0xff]
      %v4378 = vld [vmem:[%s2127 + $0x4a] sm:$0xff]
      %v4379 = vld [vmem:[%s2127 + $0x52] sm:$0xff]
      %v4380 = vld [vmem:[%s2127 + $0x62] sm:$0xff]
      %v4381 = vld [vmem:[%s2127 + $0x6a] sm:$0xff]
      %v4382 = vld [vmem:[%s2127 + $0x7a] sm:$0xff]
      %v4383 = vld [vmem:[%s2127 + $0x82] sm:$0xff]
      %v4384 = vld [vmem:[%s2127 + $0x92] sm:$0xff]
      %v4385 = vld [vmem:[%s2127 + $0x9a] sm:$0xff]
      %v4386 = vld [vmem:[%s2127 + $0xaa] sm:$0xff]
      %v4387 = vld [vmem:[%s2127 + $0xb2] sm:$0xff]
      %v4388 = vld [vmem:[%s2127 + $0xc2] sm:$0xff]
      %v4389 = vld [vmem:[%s2127 + $0xca] sm:$0xff]
      %v4390 = vld [vmem:[%s2127 + $0xda] sm:$0xff]
      %v4391 = vld [vmem:[%s2127 + $0xe2] sm:$0xff]
      %v4392 = vld [vmem:[%s2127 + $0xf2] sm:$0xff]
      %v4393 = vld [vmem:[%s2127 + $0xfa] sm:$0xff]
      %v4394 = vld [vmem:[%s2127 + $0x10a] sm:$0xff]
      %v4395 = vld [vmem:[%s2127 + $0x112] sm:$0xff]
      %v4396 = vld [vmem:[%s2127 + $0x122] sm:$0xff]
      %v4397 = vld [vmem:[%s2127 + $0x12a] sm:$0xff]
      %v4398 = vld [vmem:[%s2127 + $0x13a] sm:$0xff]
      %v4399 = vld [vmem:[%s2127 + $0x142] sm:$0xff]
      %v4400 = vld [vmem:[%s2127 + $0x152] sm:$0xff]
      %v4401 = vld [vmem:[%s2127 + $0x15a] sm:$0xff]
      %v4402 = vld [vmem:[%s2127 + $0x16a] sm:$0xff]
      %v4403 = vld [vmem:[%s2127 + $0x172] sm:$0xff]
      %v4404 = vld [vmem:[%s2352] sm:$0xff]
      %v4405 = vld [vmem:[%s2352 + $0x8] sm:$0xff]
      %v4406 = vld [vmem:[%s2352 + $0x18] sm:$0xff]
      %v4407 = vld [vmem:[%s2352 + $0x20] sm:$0xff]
      %v4408 = vld [vmem:[%s2352 + $0x30] sm:$0xff]
      %v4409 = vld [vmem:[%s2352 + $0x38] sm:$0xff]
      %v4410 = vld [vmem:[%s2352 + $0x48] sm:$0xff]
      %v4411 = vld [vmem:[%s2352 + $0x50] sm:$0xff]
      %v4412 = vld [vmem:[%s2352 + $0x60] sm:$0xff]
      %v4413 = vld [vmem:[%s2352 + $0x68] sm:$0xff]
      %v4414 = vld [vmem:[%s2352 + $0x78] sm:$0xff]
      %v4415 = vld [vmem:[%s2352 + $0x80] sm:$0xff]
      %v4416 = vld [vmem:[%s2352 + $0x90] sm:$0xff]
      %v4417 = vld [vmem:[%s2352 + $0x98] sm:$0xff]
      %v4418 = vld [vmem:[%s2352 + $0xa8] sm:$0xff]
      %v4419 = vld [vmem:[%s2352 + $0xb0] sm:$0xff]
      %v4420 = vld [vmem:[%s2352 + $0xc0] sm:$0xff]
      %v4421 = vld [vmem:[%s2352 + $0xc8] sm:$0xff]
      %v4422 = vld [vmem:[%s2352 + $0xd8] sm:$0xff]
      %v4423 = vld [vmem:[%s2352 + $0xe0] sm:$0xff]
      %v4424 = vld [vmem:[%s2352 + $0xf0] sm:$0xff]
      %v4425 = vld [vmem:[%s2352 + $0xf8] sm:$0xff]
      %v4426 = vld [vmem:[%s2352 + $0x108] sm:$0xff]
      %v4427 = vld [vmem:[%s2352 + $0x110] sm:$0xff]
      %v4428 = vld [vmem:[%s2352 + $0x120] sm:$0xff]
      %v4429 = vld [vmem:[%s2352 + $0x128] sm:$0xff]
      %v4430 = vld [vmem:[%s2352 + $0x138] sm:$0xff]
      %v4431 = vld [vmem:[%s2352 + $0x140] sm:$0xff]
      %v4432 = vld [vmem:[%s2352 + $0x150] sm:$0xff]
      %v4433 = vld [vmem:[%s2352 + $0x158] sm:$0xff]
      %v4434 = vld [vmem:[%s2352 + $0x168] sm:$0xff]
      %v4435 = vld [vmem:[%s2352 + $0x170] sm:$0xff]
      %v4436 = vld [vmem:[%s2352 + $0x1] sm:$0xff]
      %v4437 = vld [vmem:[%s2352 + $0x9] sm:$0xff]
      %v4438 = vld [vmem:[%s2352 + $0x19] sm:$0xff]
      %v4439 = vld [vmem:[%s2352 + $0x21] sm:$0xff]
      %v4440 = vld [vmem:[%s2352 + $0x31] sm:$0xff]
      %v4441 = vld [vmem:[%s2352 + $0x39] sm:$0xff]
      %v4442 = vld [vmem:[%s2352 + $0x49] sm:$0xff]
      %v4443 = vld [vmem:[%s2352 + $0x51] sm:$0xff]
      %v4444 = vld [vmem:[%s2352 + $0x61] sm:$0xff]
      %v4445 = vld [vmem:[%s2352 + $0x69] sm:$0xff]
      %v4446 = vld [vmem:[%s2352 + $0x79] sm:$0xff]
      %v4447 = vld [vmem:[%s2352 + $0x81] sm:$0xff]
      %v4448 = vld [vmem:[%s2352 + $0x91] sm:$0xff]
      %v4449 = vld [vmem:[%s2352 + $0x99] sm:$0xff]
      %v4450 = vld [vmem:[%s2352 + $0xa9] sm:$0xff]
      %v4451 = vld [vmem:[%s2352 + $0xb1] sm:$0xff]
      %v4452 = vld [vmem:[%s2352 + $0xc1] sm:$0xff]
      %v4453 = vld [vmem:[%s2352 + $0xc9] sm:$0xff]
      %v4454 = vld [vmem:[%s2352 + $0xd9] sm:$0xff]
      %v4455 = vld [vmem:[%s2352 + $0xe1] sm:$0xff]
      %v4456 = vld [vmem:[%s2352 + $0xf1] sm:$0xff]
      %v4457 = vld [vmem:[%s2352 + $0xf9] sm:$0xff]
      %v4458 = vld [vmem:[%s2352 + $0x109] sm:$0xff]
      %v4459 = vld [vmem:[%s2352 + $0x111] sm:$0xff]
      %v4460 = vld [vmem:[%s2352 + $0x121] sm:$0xff]
      %v4461 = vld [vmem:[%s2352 + $0x129] sm:$0xff]
      %v4462 = vld [vmem:[%s2352 + $0x139] sm:$0xff]
      %v4463 = vld [vmem:[%s2352 + $0x141] sm:$0xff]
      %v4464 = vld [vmem:[%s2352 + $0x151] sm:$0xff]
      %v4465 = vld [vmem:[%s2352 + $0x159] sm:$0xff]
      %v4466 = vld [vmem:[%s2352 + $0x169] sm:$0xff]
      %v4467 = vld [vmem:[%s2352 + $0x171] sm:$0xff]
      %v4468 = vld [vmem:[%s2352 + $0x2] sm:$0xff]
      %v4469 = vld [vmem:[%s2352 + $0xa] sm:$0xff]
      %v4470 = vld [vmem:[%s2352 + $0x1a] sm:$0xff]
      %v4471 = vld [vmem:[%s2352 + $0x22] sm:$0xff]
      %v4472 = vld [vmem:[%s2352 + $0x32] sm:$0xff]
      %v4473 = vld [vmem:[%s2352 + $0x3a] sm:$0xff]
      %v4474 = vld [vmem:[%s2352 + $0x4a] sm:$0xff]
      %v4475 = vld [vmem:[%s2352 + $0x52] sm:$0xff]
      %v4476 = vld [vmem:[%s2352 + $0x62] sm:$0xff]
      %v4477 = vld [vmem:[%s2352 + $0x6a] sm:$0xff]
      %v4478 = vld [vmem:[%s2352 + $0x7a] sm:$0xff]
      %v4479 = vld [vmem:[%s2352 + $0x82] sm:$0xff]
      %v4480 = vld [vmem:[%s2352 + $0x92] sm:$0xff]
      %v4481 = vld [vmem:[%s2352 + $0x9a] sm:$0xff]
      %v4482 = vld [vmem:[%s2352 + $0xaa] sm:$0xff]
      %v4483 = vld [vmem:[%s2352 + $0xb2] sm:$0xff]
      %v4484 = vld [vmem:[%s2352 + $0xc2] sm:$0xff]
      %v4485 = vld [vmem:[%s2352 + $0xca] sm:$0xff]
      %v4486 = vld [vmem:[%s2352 + $0xda] sm:$0xff]
      %v4487 = vld [vmem:[%s2352 + $0xe2] sm:$0xff]
      %v4488 = vld [vmem:[%s2352 + $0xf2] sm:$0xff]
      %v4489 = vld [vmem:[%s2352 + $0xfa] sm:$0xff]
      %v4490 = vld [vmem:[%s2352 + $0x10a] sm:$0xff]
      %v4491 = vld [vmem:[%s2352 + $0x112] sm:$0xff]
      %v4492 = vld [vmem:[%s2352 + $0x122] sm:$0xff]
      %v4493 = vld [vmem:[%s2352 + $0x12a] sm:$0xff]
      %v4494 = vld [vmem:[%s2352 + $0x13a] sm:$0xff]
      %v4495 = vld [vmem:[%s2352 + $0x142] sm:$0xff]
      %v4496 = vld [vmem:[%s2352 + $0x152] sm:$0xff]
      %v4497 = vld [vmem:[%s2352 + $0x15a] sm:$0xff]
      %v4498 = vld [vmem:[%s2352 + $0x16a] sm:$0xff]
      %v4499 = vld [vmem:[%s2352 + $0x172] sm:$0xff]
      %4532 = vrot.lane.b32.xlu0 %v4244, 32
      %v4533 = vpop.permute.xlu0 %4532
      %4534 = vrot.lane.b32.xlu0 %v4245, 32
      %v4535 = vpop.permute.xlu0 %4534
      %4536 = vrot.lane.b32.xlu0 %v4246, 32
      %v4537 = vpop.permute.xlu0 %4536
      %4538 = vrot.lane.b32.xlu0 %v4247, 32
      %v4539 = vpop.permute.xlu0 %4538
      %4540 = vrot.lane.b32.xlu0 %v4248, 32
      %v4541 = vpop.permute.xlu0 %4540
      %4542 = vrot.lane.b32.xlu0 %v4249, 32
      %v4543 = vpop.permute.xlu0 %4542
      %4544 = vrot.lane.b32.xlu0 %v4250, 32
      %v4545 = vpop.permute.xlu0 %4544
      %4546 = vrot.lane.b32.xlu0 %v4251, 32
      %v4547 = vpop.permute.xlu0 %4546
      %4548 = vrot.lane.b32.xlu0 %v4252, 32
      %v4549 = vpop.permute.xlu0 %4548
      %4550 = vrot.lane.b32.xlu0 %v4253, 32
      %v4551 = vpop.permute.xlu0 %4550
      %4552 = vrot.lane.b32.xlu0 %v4254, 32
      %v4553 = vpop.permute.xlu0 %4552
      %4554 = vrot.lane.b32.xlu0 %v4255, 32
      %v4555 = vpop.permute.xlu0 %4554
      %4556 = vrot.lane.b32.xlu0 %v4256, 32
      %v4557 = vpop.permute.xlu0 %4556
      %4558 = vrot.lane.b32.xlu0 %v4257, 32
      %v4559 = vpop.permute.xlu0 %4558
      %4560 = vrot.lane.b32.xlu0 %v4258, 32
      %v4561 = vpop.permute.xlu0 %4560
      %4562 = vrot.lane.b32.xlu0 %v4259, 32
      %v4563 = vpop.permute.xlu0 %4562
      %4564 = vrot.lane.b32.xlu0 %v4260, 32
      %v4565 = vpop.permute.xlu0 %4564
      %4566 = vrot.lane.b32.xlu0 %v4261, 32
      %v4567 = vpop.permute.xlu0 %4566
      %4568 = vrot.lane.b32.xlu0 %v4262, 32
      %v4569 = vpop.permute.xlu0 %4568
      %4570 = vrot.lane.b32.xlu0 %v4263, 32
      %v4571 = vpop.permute.xlu0 %4570
      %4572 = vrot.lane.b32.xlu0 %v4264, 32
      %v4573 = vpop.permute.xlu0 %4572
      %4574 = vrot.lane.b32.xlu0 %v4265, 32
      %v4575 = vpop.permute.xlu0 %4574
      %4576 = vrot.lane.b32.xlu0 %v4266, 32
      %v4577 = vpop.permute.xlu0 %4576
      %4578 = vrot.lane.b32.xlu0 %v4267, 32
      %v4579 = vpop.permute.xlu0 %4578
      %4580 = vrot.lane.b32.xlu0 %v4268, 32
      %v4581 = vpop.permute.xlu0 %4580
      %4582 = vrot.lane.b32.xlu0 %v4269, 32
      %v4583 = vpop.permute.xlu0 %4582
      %4584 = vrot.lane.b32.xlu0 %v4270, 32
      %v4585 = vpop.permute.xlu0 %4584
      %4586 = vrot.lane.b32.xlu0 %v4271, 32
      %v4587 = vpop.permute.xlu0 %4586
      %4588 = vrot.lane.b32.xlu0 %v4272, 32
      %v4589 = vpop.permute.xlu0 %4588
      %4590 = vrot.lane.b32.xlu0 %v4273, 32
      %v4591 = vpop.permute.xlu0 %4590
      %4592 = vrot.lane.b32.xlu0 %v4274, 32
      %v4593 = vpop.permute.xlu0 %4592
      %4594 = vrot.lane.b32.xlu0 %v4275, 32
      %v4595 = vpop.permute.xlu0 %4594
      %4660 = vrot.lane.b32.xlu0 %v4276, 64
      %v4661 = vpop.permute.xlu0 %4660
      %4662 = vrot.lane.b32.xlu0 %v4277, 64
      %v4663 = vpop.permute.xlu0 %4662
      %4664 = vrot.lane.b32.xlu0 %v4278, 64
      %v4665 = vpop.permute.xlu0 %4664
      %4666 = vrot.lane.b32.xlu0 %v4279, 64
      %v4667 = vpop.permute.xlu0 %4666
      %4668 = vrot.lane.b32.xlu0 %v4280, 64
      %v4669 = vpop.permute.xlu0 %4668
      %4670 = vrot.lane.b32.xlu0 %v4281, 64
      %v4671 = vpop.permute.xlu0 %4670
      %4672 = vrot.lane.b32.xlu0 %v4282, 64
      %v4673 = vpop.permute.xlu0 %4672
      %4674 = vrot.lane.b32.xlu0 %v4283, 64
      %v4675 = vpop.permute.xlu0 %4674
      %4676 = vrot.lane.b32.xlu0 %v4284, 64
      %v4677 = vpop.permute.xlu0 %4676
      %4678 = vrot.lane.b32.xlu0 %v4285, 64
      %v4679 = vpop.permute.xlu0 %4678
      %4680 = vrot.lane.b32.xlu0 %v4286, 64
      %v4681 = vpop.permute.xlu0 %4680
      %4682 = vrot.lane.b32.xlu0 %v4287, 64
      %v4683 = vpop.permute.xlu0 %4682
      %4684 = vrot.lane.b32.xlu0 %v4288, 64
      %v4685 = vpop.permute.xlu0 %4684
      %4686 = vrot.lane.b32.xlu0 %v4289, 64
      %v4687 = vpop.permute.xlu0 %4686
      %4688 = vrot.lane.b32.xlu0 %v4290, 64
      %v4689 = vpop.permute.xlu0 %4688
      %4690 = vrot.lane.b32.xlu0 %v4291, 64
      %v4691 = vpop.permute.xlu0 %4690
      %4692 = vrot.lane.b32.xlu0 %v4292, 64
      %v4693 = vpop.permute.xlu0 %4692
      %4694 = vrot.lane.b32.xlu0 %v4293, 64
      %v4695 = vpop.permute.xlu0 %4694
      %4696 = vrot.lane.b32.xlu0 %v4294, 64
      %v4697 = vpop.permute.xlu0 %4696
      %4698 = vrot.lane.b32.xlu0 %v4295, 64
      %v4699 = vpop.permute.xlu0 %4698
      %4700 = vrot.lane.b32.xlu0 %v4296, 64
      %v4701 = vpop.permute.xlu0 %4700
      %4702 = vrot.lane.b32.xlu0 %v4297, 64
      %v4703 = vpop.permute.xlu0 %4702
      %4704 = vrot.lane.b32.xlu0 %v4298, 64
      %v4705 = vpop.permute.xlu0 %4704
      %4706 = vrot.lane.b32.xlu0 %v4299, 64
      %v4707 = vpop.permute.xlu0 %4706
      %4708 = vrot.lane.b32.xlu0 %v4300, 64
      %v4709 = vpop.permute.xlu0 %4708
      %4710 = vrot.lane.b32.xlu0 %v4301, 64
      %v4711 = vpop.permute.xlu0 %4710
      %4712 = vrot.lane.b32.xlu0 %v4302, 64
      %v4713 = vpop.permute.xlu0 %4712
      %4714 = vrot.lane.b32.xlu0 %v4303, 64
      %v4715 = vpop.permute.xlu0 %4714
      %4716 = vrot.lane.b32.xlu0 %v4304, 64
      %v4717 = vpop.permute.xlu0 %4716
      %4718 = vrot.lane.b32.xlu0 %v4305, 64
      %v4719 = vpop.permute.xlu0 %4718
      %4720 = vrot.lane.b32.xlu0 %v4306, 64
      %v4721 = vpop.permute.xlu0 %4720
      %4722 = vrot.lane.b32.xlu0 %v4307, 64
      %v4723 = vpop.permute.xlu0 %4722
      %4788 = vrot.lane.b32.xlu0 %v4308, 96
      %v4789 = vpop.permute.xlu0 %4788
      %4790 = vrot.lane.b32.xlu0 %v4309, 96
      %v4791 = vpop.permute.xlu0 %4790
      %4792 = vrot.lane.b32.xlu0 %v4310, 96
      %v4793 = vpop.permute.xlu0 %4792
      %4794 = vrot.lane.b32.xlu0 %v4311, 96
      %v4795 = vpop.permute.xlu0 %4794
      %4796 = vrot.lane.b32.xlu0 %v4312, 96
      %v4797 = vpop.permute.xlu0 %4796
      %4798 = vrot.lane.b32.xlu0 %v4313, 96
      %v4799 = vpop.permute.xlu0 %4798
      %4800 = vrot.lane.b32.xlu0 %v4314, 96
      %v4801 = vpop.permute.xlu0 %4800
      %4802 = vrot.lane.b32.xlu0 %v4315, 96
      %v4803 = vpop.permute.xlu0 %4802
      %4804 = vrot.lane.b32.xlu0 %v4316, 96
      %v4805 = vpop.permute.xlu0 %4804
      %4806 = vrot.lane.b32.xlu0 %v4317, 96
      %v4807 = vpop.permute.xlu0 %4806
      %4808 = vrot.lane.b32.xlu0 %v4318, 96
      %v4809 = vpop.permute.xlu0 %4808
      %4810 = vrot.lane.b32.xlu0 %v4319, 96
      %v4811 = vpop.permute.xlu0 %4810
      %4812 = vrot.lane.b32.xlu0 %v4320, 96
      %v4813 = vpop.permute.xlu0 %4812
      %4814 = vrot.lane.b32.xlu0 %v4321, 96
      %v4815 = vpop.permute.xlu0 %4814
      %4816 = vrot.lane.b32.xlu0 %v4322, 96
      %v4817 = vpop.permute.xlu0 %4816
      %4818 = vrot.lane.b32.xlu0 %v4323, 96
      %v4819 = vpop.permute.xlu0 %4818
      %4820 = vrot.lane.b32.xlu0 %v4324, 96
      %v4821 = vpop.permute.xlu0 %4820
      %4822 = vrot.lane.b32.xlu0 %v4325, 96
      %v4823 = vpop.permute.xlu0 %4822
      %4824 = vrot.lane.b32.xlu0 %v4326, 96
      %v4825 = vpop.permute.xlu0 %4824
      %4826 = vrot.lane.b32.xlu0 %v4327, 96
      %v4827 = vpop.permute.xlu0 %4826
      %4828 = vrot.lane.b32.xlu0 %v4328, 96
      %v4829 = vpop.permute.xlu0 %4828
      %4830 = vrot.lane.b32.xlu0 %v4329, 96
      %v4831 = vpop.permute.xlu0 %4830
      %4832 = vrot.lane.b32.xlu0 %v4330, 96
      %v4833 = vpop.permute.xlu0 %4832
      %4834 = vrot.lane.b32.xlu0 %v4331, 96
      %v4835 = vpop.permute.xlu0 %4834
      %4836 = vrot.lane.b32.xlu0 %v4332, 96
      %v4837 = vpop.permute.xlu0 %4836
      %4838 = vrot.lane.b32.xlu0 %v4333, 96
      %v4839 = vpop.permute.xlu0 %4838
      %4840 = vrot.lane.b32.xlu0 %v4334, 96
      %v4841 = vpop.permute.xlu0 %4840
      %4842 = vrot.lane.b32.xlu0 %v4335, 96
      %v4843 = vpop.permute.xlu0 %4842
      %4844 = vrot.lane.b32.xlu0 %v4336, 96
      %v4845 = vpop.permute.xlu0 %4844
      %4846 = vrot.lane.b32.xlu0 %v4337, 96
      %v4847 = vpop.permute.xlu0 %4846
      %4848 = vrot.lane.b32.xlu0 %v4338, 96
      %v4849 = vpop.permute.xlu0 %4848
      %4850 = vrot.lane.b32.xlu0 %v4339, 96
      %v4851 = vpop.permute.xlu0 %4850
      %4916 = vrot.lane.b32.xlu0 %v4372, 32
      %v4917 = vpop.permute.xlu0 %4916
      %4918 = vrot.lane.b32.xlu0 %v4373, 32
      %v4919 = vpop.permute.xlu0 %4918
      %4920 = vrot.lane.b32.xlu0 %v4374, 32
      %v4921 = vpop.permute.xlu0 %4920
      %4922 = vrot.lane.b32.xlu0 %v4375, 32
      %v4923 = vpop.permute.xlu0 %4922
      %4924 = vrot.lane.b32.xlu0 %v4376, 32
      %v4925 = vpop.permute.xlu0 %4924
      %4926 = vrot.lane.b32.xlu0 %v4377, 32
      %v4927 = vpop.permute.xlu0 %4926
      %4928 = vrot.lane.b32.xlu0 %v4378, 32
      %v4929 = vpop.permute.xlu0 %4928
      %4930 = vrot.lane.b32.xlu0 %v4379, 32
      %v4931 = vpop.permute.xlu0 %4930
      %4932 = vrot.lane.b32.xlu0 %v4380, 32
      %v4933 = vpop.permute.xlu0 %4932
      %4934 = vrot.lane.b32.xlu0 %v4381, 32
      %v4935 = vpop.permute.xlu0 %4934
      %4936 = vrot.lane.b32.xlu0 %v4382, 32
      %v4937 = vpop.permute.xlu0 %4936
      %4938 = vrot.lane.b32.xlu0 %v4383, 32
      %v4939 = vpop.permute.xlu0 %4938
      %4940 = vrot.lane.b32.xlu0 %v4384, 32
      %v4941 = vpop.permute.xlu0 %4940
      %4942 = vrot.lane.b32.xlu0 %v4385, 32
      %v4943 = vpop.permute.xlu0 %4942
      %4944 = vrot.lane.b32.xlu0 %v4386, 32
      %v4945 = vpop.permute.xlu0 %4944
      %4946 = vrot.lane.b32.xlu0 %v4387, 32
      %v4947 = vpop.permute.xlu0 %4946
      %4948 = vrot.lane.b32.xlu0 %v4388, 32
      %v4949 = vpop.permute.xlu0 %4948
      %4950 = vrot.lane.b32.xlu0 %v4389, 32
      %v4951 = vpop.permute.xlu0 %4950
      %4952 = vrot.lane.b32.xlu0 %v4390, 32
      %v4953 = vpop.permute.xlu0 %4952
      %4954 = vrot.lane.b32.xlu0 %v4391, 32
      %v4955 = vpop.permute.xlu0 %4954
      %4956 = vrot.lane.b32.xlu0 %v4392, 32
      %v4957 = vpop.permute.xlu0 %4956
      %4958 = vrot.lane.b32.xlu0 %v4393, 32
      %v4959 = vpop.permute.xlu0 %4958
      %4960 = vrot.lane.b32.xlu0 %v4394, 32
      %v4961 = vpop.permute.xlu0 %4960
      %4962 = vrot.lane.b32.xlu0 %v4395, 32
      %v4963 = vpop.permute.xlu0 %4962
      %4964 = vrot.lane.b32.xlu0 %v4396, 32
      %v4965 = vpop.permute.xlu0 %4964
      %4966 = vrot.lane.b32.xlu0 %v4397, 32
      %v4967 = vpop.permute.xlu0 %4966
      %4968 = vrot.lane.b32.xlu0 %v4398, 32
      %v4969 = vpop.permute.xlu0 %4968
      %4970 = vrot.lane.b32.xlu0 %v4399, 32
      %v4971 = vpop.permute.xlu0 %4970
      %4972 = vrot.lane.b32.xlu0 %v4400, 32
      %v4973 = vpop.permute.xlu0 %4972
      %4974 = vrot.lane.b32.xlu0 %v4401, 32
      %v4975 = vpop.permute.xlu0 %4974
      %4976 = vrot.lane.b32.xlu0 %v4402, 32
      %v4977 = vpop.permute.xlu0 %4976
      %4978 = vrot.lane.b32.xlu0 %v4403, 32
      %v4979 = vpop.permute.xlu0 %4978
      %5044 = vrot.lane.b32.xlu0 %v4404, 64
      %v5045 = vpop.permute.xlu0 %5044
      %5046 = vrot.lane.b32.xlu0 %v4405, 64
      %v5047 = vpop.permute.xlu0 %5046
      %5048 = vrot.lane.b32.xlu0 %v4406, 64
      %v5049 = vpop.permute.xlu0 %5048
      %5050 = vrot.lane.b32.xlu0 %v4407, 64
      %v5051 = vpop.permute.xlu0 %5050
      %5052 = vrot.lane.b32.xlu0 %v4408, 64
      %v5053 = vpop.permute.xlu0 %5052
      %5054 = vrot.lane.b32.xlu0 %v4409, 64
      %v5055 = vpop.permute.xlu0 %5054
      %5056 = vrot.lane.b32.xlu0 %v4410, 64
      %v5057 = vpop.permute.xlu0 %5056
      %5058 = vrot.lane.b32.xlu0 %v4411, 64
      %v5059 = vpop.permute.xlu0 %5058
      %5060 = vrot.lane.b32.xlu0 %v4412, 64
      %v5061 = vpop.permute.xlu0 %5060
      %5062 = vrot.lane.b32.xlu0 %v4413, 64
      %v5063 = vpop.permute.xlu0 %5062
      %5064 = vrot.lane.b32.xlu0 %v4414, 64
      %v5065 = vpop.permute.xlu0 %5064
      %5066 = vrot.lane.b32.xlu0 %v4415, 64
      %v5067 = vpop.permute.xlu0 %5066
      %5068 = vrot.lane.b32.xlu0 %v4416, 64
      %v5069 = vpop.permute.xlu0 %5068
      %5070 = vrot.lane.b32.xlu0 %v4417, 64
      %v5071 = vpop.permute.xlu0 %5070
      %5072 = vrot.lane.b32.xlu0 %v4418, 64
      %v5073 = vpop.permute.xlu0 %5072
      %5074 = vrot.lane.b32.xlu0 %v4419, 64
      %v5075 = vpop.permute.xlu0 %5074
      %5076 = vrot.lane.b32.xlu0 %v4420, 64
      %v5077 = vpop.permute.xlu0 %5076
      %5078 = vrot.lane.b32.xlu0 %v4421, 64
      %v5079 = vpop.permute.xlu0 %5078
      %5080 = vrot.lane.b32.xlu0 %v4422, 64
      %v5081 = vpop.permute.xlu0 %5080
      %5082 = vrot.lane.b32.xlu0 %v4423, 64
      %v5083 = vpop.permute.xlu0 %5082
      %5084 = vrot.lane.b32.xlu0 %v4424, 64
      %v5085 = vpop.permute.xlu0 %5084
      %5086 = vrot.lane.b32.xlu0 %v4425, 64
      %v5087 = vpop.permute.xlu0 %5086
      %5088 = vrot.lane.b32.xlu0 %v4426, 64
      %v5089 = vpop.permute.xlu0 %5088
      %5090 = vrot.lane.b32.xlu0 %v4427, 64
      %v5091 = vpop.permute.xlu0 %5090
      %5092 = vrot.lane.b32.xlu0 %v4428, 64
      %v5093 = vpop.permute.xlu0 %5092
      %5094 = vrot.lane.b32.xlu0 %v4429, 64
      %v5095 = vpop.permute.xlu0 %5094
      %5096 = vrot.lane.b32.xlu0 %v4430, 64
      %v5097 = vpop.permute.xlu0 %5096
      %5098 = vrot.lane.b32.xlu0 %v4431, 64
      %v5099 = vpop.permute.xlu0 %5098
      %5100 = vrot.lane.b32.xlu0 %v4432, 64
      %v5101 = vpop.permute.xlu0 %5100
      %5102 = vrot.lane.b32.xlu0 %v4433, 64
      %v5103 = vpop.permute.xlu0 %5102
      %5104 = vrot.lane.b32.xlu0 %v4434, 64
      %v5105 = vpop.permute.xlu0 %5104
      %5106 = vrot.lane.b32.xlu0 %v4435, 64
      %v5107 = vpop.permute.xlu0 %5106
      %5172 = vrot.lane.b32.xlu0 %v4436, 96
      %v5173 = vpop.permute.xlu0 %5172
      %5174 = vrot.lane.b32.xlu0 %v4437, 96
      %v5175 = vpop.permute.xlu0 %5174
      %5176 = vrot.lane.b32.xlu0 %v4438, 96
      %v5177 = vpop.permute.xlu0 %5176
      %5178 = vrot.lane.b32.xlu0 %v4439, 96
      %v5179 = vpop.permute.xlu0 %5178
      %5180 = vrot.lane.b32.xlu0 %v4440, 96
      %v5181 = vpop.permute.xlu0 %5180
      %5182 = vrot.lane.b32.xlu0 %v4441, 96
      %v5183 = vpop.permute.xlu0 %5182
      %5184 = vrot.lane.b32.xlu0 %v4442, 96
      %v5185 = vpop.permute.xlu0 %5184
      %5186 = vrot.lane.b32.xlu0 %v4443, 96
      %v5187 = vpop.permute.xlu0 %5186
      %5188 = vrot.lane.b32.xlu0 %v4444, 96
      %v5189 = vpop.permute.xlu0 %5188
      %5190 = vrot.lane.b32.xlu0 %v4445, 96
      %v5191 = vpop.permute.xlu0 %5190
      %5192 = vrot.lane.b32.xlu0 %v4446, 96
      %v5193 = vpop.permute.xlu0 %5192
      %5194 = vrot.lane.b32.xlu0 %v4447, 96
      %v5195 = vpop.permute.xlu0 %5194
      %5196 = vrot.lane.b32.xlu0 %v4448, 96
      %v5197 = vpop.permute.xlu0 %5196
      %5198 = vrot.lane.b32.xlu0 %v4449, 96
      %v5199 = vpop.permute.xlu0 %5198
      %5200 = vrot.lane.b32.xlu0 %v4450, 96
      %v5201 = vpop.permute.xlu0 %5200
      %5202 = vrot.lane.b32.xlu0 %v4451, 96
      %v5203 = vpop.permute.xlu0 %5202
      %5204 = vrot.lane.b32.xlu0 %v4452, 96
      %v5205 = vpop.permute.xlu0 %5204
      %5206 = vrot.lane.b32.xlu0 %v4453, 96
      %v5207 = vpop.permute.xlu0 %5206
      %5208 = vrot.lane.b32.xlu0 %v4454, 96
      %v5209 = vpop.permute.xlu0 %5208
      %5210 = vrot.lane.b32.xlu0 %v4455, 96
      %v5211 = vpop.permute.xlu0 %5210
      %5212 = vrot.lane.b32.xlu0 %v4456, 96
      %v5213 = vpop.permute.xlu0 %5212
      %5214 = vrot.lane.b32.xlu0 %v4457, 96
      %v5215 = vpop.permute.xlu0 %5214
      %5216 = vrot.lane.b32.xlu0 %v4458, 96
      %v5217 = vpop.permute.xlu0 %5216
      %5218 = vrot.lane.b32.xlu0 %v4459, 96
      %v5219 = vpop.permute.xlu0 %5218
      %5220 = vrot.lane.b32.xlu0 %v4460, 96
      %v5221 = vpop.permute.xlu0 %5220
      %5222 = vrot.lane.b32.xlu0 %v4461, 96
      %v5223 = vpop.permute.xlu0 %5222
      %5224 = vrot.lane.b32.xlu0 %v4462, 96
      %v5225 = vpop.permute.xlu0 %5224
      %5226 = vrot.lane.b32.xlu0 %v4463, 96
      %v5227 = vpop.permute.xlu0 %5226
      %5228 = vrot.lane.b32.xlu0 %v4464, 96
      %v5229 = vpop.permute.xlu0 %5228
      %5230 = vrot.lane.b32.xlu0 %v4465, 96
      %v5231 = vpop.permute.xlu0 %5230
      %5232 = vrot.lane.b32.xlu0 %v4466, 96
      %v5233 = vpop.permute.xlu0 %5232
      %5234 = vrot.lane.b32.xlu0 %v4467, 96
      %v5235 = vpop.permute.xlu0 %5234
      %v5268 = vsel %vm1825, %v4212, %v4533
      %v5269 = vsel %vm1825, %v4213, %v4535
      %v5270 = vsel %vm1825, %v4214, %v4537
      %v5271 = vsel %vm1825, %v4215, %v4539
      %v5272 = vsel %vm1825, %v4216, %v4541
      %v5273 = vsel %vm1825, %v4217, %v4543
      %v5274 = vsel %vm1825, %v4218, %v4545
      %v5275 = vsel %vm1825, %v4219, %v4547
      %v5276 = vsel %vm1825, %v4220, %v4549
      %v5277 = vsel %vm1825, %v4221, %v4551
      %v5278 = vsel %vm1825, %v4222, %v4553
      %v5279 = vsel %vm1825, %v4223, %v4555
      %v5280 = vsel %vm1825, %v4224, %v4557
      %v5281 = vsel %vm1825, %v4225, %v4559
      %v5282 = vsel %vm1825, %v4226, %v4561
      %v5283 = vsel %vm1825, %v4227, %v4563
      %v5284 = vsel %vm1825, %v4228, %v4565
      %v5285 = vsel %vm1825, %v4229, %v4567
      %v5286 = vsel %vm1825, %v4230, %v4569
      %v5287 = vsel %vm1825, %v4231, %v4571
      %v5288 = vsel %vm1825, %v4232, %v4573
      %v5289 = vsel %vm1825, %v4233, %v4575
      %v5290 = vsel %vm1825, %v4234, %v4577
      %v5291 = vsel %vm1825, %v4235, %v4579
      %v5292 = vsel %vm1825, %v4236, %v4581
      %v5293 = vsel %vm1825, %v4237, %v4583
      %v5294 = vsel %vm1825, %v4238, %v4585
      %v5295 = vsel %vm1825, %v4239, %v4587
      %v5296 = vsel %vm1825, %v4240, %v4589
      %v5297 = vsel %vm1825, %v4241, %v4591
      %v5298 = vsel %vm1825, %v4242, %v4593
      %v5299 = vsel %vm1825, %v4243, %v4595
      %v5300 = vsel %vm3249, %v5268, %v4661
      %v5301 = vsel %vm3249, %v5269, %v4663
      %v5302 = vsel %vm3249, %v5270, %v4665
      %v5303 = vsel %vm3249, %v5271, %v4667
      %v5304 = vsel %vm3249, %v5272, %v4669
      %v5305 = vsel %vm3249, %v5273, %v4671
      %v5306 = vsel %vm3249, %v5274, %v4673
      %v5307 = vsel %vm3249, %v5275, %v4675
      %v5308 = vsel %vm3249, %v5276, %v4677
      %v5309 = vsel %vm3249, %v5277, %v4679
      %v5310 = vsel %vm3249, %v5278, %v4681
      %v5311 = vsel %vm3249, %v5279, %v4683
      %v5312 = vsel %vm3249, %v5280, %v4685
      %v5313 = vsel %vm3249, %v5281, %v4687
      %v5314 = vsel %vm3249, %v5282, %v4689
      %v5315 = vsel %vm3249, %v5283, %v4691
      %v5316 = vsel %vm3249, %v5284, %v4693
      %v5317 = vsel %vm3249, %v5285, %v4695
      %v5318 = vsel %vm3249, %v5286, %v4697
      %v5319 = vsel %vm3249, %v5287, %v4699
      %v5320 = vsel %vm3249, %v5288, %v4701
      %v5321 = vsel %vm3249, %v5289, %v4703
      %v5322 = vsel %vm3249, %v5290, %v4705
      %v5323 = vsel %vm3249, %v5291, %v4707
      %v5324 = vsel %vm3249, %v5292, %v4709
      %v5325 = vsel %vm3249, %v5293, %v4711
      %v5326 = vsel %vm3249, %v5294, %v4713
      %v5327 = vsel %vm3249, %v5295, %v4715
      %v5328 = vsel %vm3249, %v5296, %v4717
      %v5329 = vsel %vm3249, %v5297, %v4719
      %v5330 = vsel %vm3249, %v5298, %v4721
      %v5331 = vsel %vm3249, %v5299, %v4723
      %v5332 = vsel %vm3282, %v5300, %v4789
      %v5333 = vsel %vm3282, %v5301, %v4791
      %v5334 = vsel %vm3282, %v5302, %v4793
      %v5335 = vsel %vm3282, %v5303, %v4795
      %v5336 = vsel %vm3282, %v5304, %v4797
      %v5337 = vsel %vm3282, %v5305, %v4799
      %v5338 = vsel %vm3282, %v5306, %v4801
      %v5339 = vsel %vm3282, %v5307, %v4803
      %v5340 = vsel %vm3282, %v5308, %v4805
      %v5341 = vsel %vm3282, %v5309, %v4807
      %v5342 = vsel %vm3282, %v5310, %v4809
      %v5343 = vsel %vm3282, %v5311, %v4811
      %v5344 = vsel %vm3282, %v5312, %v4813
      %v5345 = vsel %vm3282, %v5313, %v4815
      %v5346 = vsel %vm3282, %v5314, %v4817
      %v5347 = vsel %vm3282, %v5315, %v4819
      %v5348 = vsel %vm3282, %v5316, %v4821
      %v5349 = vsel %vm3282, %v5317, %v4823
      %v5350 = vsel %vm3282, %v5318, %v4825
      %v5351 = vsel %vm3282, %v5319, %v4827
      %v5352 = vsel %vm3282, %v5320, %v4829
      %v5353 = vsel %vm3282, %v5321, %v4831
      %v5354 = vsel %vm3282, %v5322, %v4833
      %v5355 = vsel %vm3282, %v5323, %v4835
      %v5356 = vsel %vm3282, %v5324, %v4837
      %v5357 = vsel %vm3282, %v5325, %v4839
      %v5358 = vsel %vm3282, %v5326, %v4841
      %v5359 = vsel %vm3282, %v5327, %v4843
      %v5360 = vsel %vm3282, %v5328, %v4845
      %v5361 = vsel %vm3282, %v5329, %v4847
      %v5362 = vsel %vm3282, %v5330, %v4849
      %v5363 = vsel %vm3282, %v5331, %v4851
      %v5364 = vsel %vm1825, %v4340, %v4917
      %v5365 = vsel %vm1825, %v4341, %v4919
      %v5366 = vsel %vm1825, %v4342, %v4921
      %v5367 = vsel %vm1825, %v4343, %v4923
      %v5368 = vsel %vm1825, %v4344, %v4925
      %v5369 = vsel %vm1825, %v4345, %v4927
      %v5370 = vsel %vm1825, %v4346, %v4929
      %v5371 = vsel %vm1825, %v4347, %v4931
      %v5372 = vsel %vm1825, %v4348, %v4933
      %v5373 = vsel %vm1825, %v4349, %v4935
      %v5374 = vsel %vm1825, %v4350, %v4937
      %v5375 = vsel %vm1825, %v4351, %v4939
      %v5376 = vsel %vm1825, %v4352, %v4941
      %v5377 = vsel %vm1825, %v4353, %v4943
      %v5378 = vsel %vm1825, %v4354, %v4945
      %v5379 = vsel %vm1825, %v4355, %v4947
      %v5380 = vsel %vm1825, %v4356, %v4949
      %v5381 = vsel %vm1825, %v4357, %v4951
      %v5382 = vsel %vm1825, %v4358, %v4953
      %v5383 = vsel %vm1825, %v4359, %v4955
      %v5384 = vsel %vm1825, %v4360, %v4957
      %v5385 = vsel %vm1825, %v4361, %v4959
      %v5386 = vsel %vm1825, %v4362, %v4961
      %v5387 = vsel %vm1825, %v4363, %v4963
      %v5388 = vsel %vm1825, %v4364, %v4965
      %v5389 = vsel %vm1825, %v4365, %v4967
      %v5390 = vsel %vm1825, %v4366, %v4969
      %v5391 = vsel %vm1825, %v4367, %v4971
      %v5392 = vsel %vm1825, %v4368, %v4973
      %v5393 = vsel %vm1825, %v4369, %v4975
      %v5394 = vsel %vm1825, %v4370, %v4977
      %v5395 = vsel %vm1825, %v4371, %v4979
      %v5396 = vsel %vm3249, %v5364, %v5045
      %v5397 = vsel %vm3249, %v5365, %v5047
      %v5398 = vsel %vm3249, %v5366, %v5049
      %v5399 = vsel %vm3249, %v5367, %v5051
      %v5400 = vsel %vm3249, %v5368, %v5053
      %v5401 = vsel %vm3249, %v5369, %v5055
      %v5402 = vsel %vm3249, %v5370, %v5057
      %v5403 = vsel %vm3249, %v5371, %v5059
      %v5404 = vsel %vm3249, %v5372, %v5061
      %v5405 = vsel %vm3249, %v5373, %v5063
      %v5406 = vsel %vm3249, %v5374, %v5065
      %v5407 = vsel %vm3249, %v5375, %v5067
      %v5408 = vsel %vm3249, %v5376, %v5069
      %v5409 = vsel %vm3249, %v5377, %v5071
      %v5410 = vsel %vm3249, %v5378, %v5073
      %v5411 = vsel %vm3249, %v5379, %v5075
      %v5412 = vsel %vm3249, %v5380, %v5077
      %v5413 = vsel %vm3249, %v5381, %v5079
      %v5414 = vsel %vm3249, %v5382, %v5081
      %v5415 = vsel %vm3249, %v5383, %v5083
      %v5416 = vsel %vm3249, %v5384, %v5085
      %v5417 = vsel %vm3249, %v5385, %v5087
      %v5418 = vsel %vm3249, %v5386, %v5089
      %v5419 = vsel %vm3249, %v5387, %v5091
      %v5420 = vsel %vm3249, %v5388, %v5093
      %v5421 = vsel %vm3249, %v5389, %v5095
      %v5422 = vsel %vm3249, %v5390, %v5097
      %v5423 = vsel %vm3249, %v5391, %v5099
      %v5424 = vsel %vm3249, %v5392, %v5101
      %v5425 = vsel %vm3249, %v5393, %v5103
      %v5426 = vsel %vm3249, %v5394, %v5105
      %v5427 = vsel %vm3249, %v5395, %v5107
      %v5428 = vsel %vm3282, %v5396, %v5173
      %v5429 = vsel %vm3282, %v5397, %v5175
      %v5430 = vsel %vm3282, %v5398, %v5177
      %v5431 = vsel %vm3282, %v5399, %v5179
      %v5432 = vsel %vm3282, %v5400, %v5181
      %v5433 = vsel %vm3282, %v5401, %v5183
      %v5434 = vsel %vm3282, %v5402, %v5185
      %v5435 = vsel %vm3282, %v5403, %v5187
      %v5436 = vsel %vm3282, %v5404, %v5189
      %v5437 = vsel %vm3282, %v5405, %v5191
      %v5438 = vsel %vm3282, %v5406, %v5193
      %v5439 = vsel %vm3282, %v5407, %v5195
      %v5440 = vsel %vm3282, %v5408, %v5197
      %v5441 = vsel %vm3282, %v5409, %v5199
      %v5442 = vsel %vm3282, %v5410, %v5201
      %v5443 = vsel %vm3282, %v5411, %v5203
      %v5444 = vsel %vm3282, %v5412, %v5205
      %v5445 = vsel %vm3282, %v5413, %v5207
      %v5446 = vsel %vm3282, %v5414, %v5209
      %v5447 = vsel %vm3282, %v5415, %v5211
      %v5448 = vsel %vm3282, %v5416, %v5213
      %v5449 = vsel %vm3282, %v5417, %v5215
      %v5450 = vsel %vm3282, %v5418, %v5217
      %v5451 = vsel %vm3282, %v5419, %v5219
      %v5452 = vsel %vm3282, %v5420, %v5221
      %v5453 = vsel %vm3282, %v5421, %v5223
      %v5454 = vsel %vm3282, %v5422, %v5225
      %v5455 = vsel %vm3282, %v5423, %v5227
      %v5456 = vsel %vm3282, %v5424, %v5229
      %v5457 = vsel %vm3282, %v5425, %v5231
      %v5458 = vsel %vm3282, %v5426, %v5233
      %v5459 = vsel %vm3282, %v5427, %v5235
      %v5460 = vpack.c.bf16 %v5333, %v5332
      %v5461 = vpack.c.bf16 %v5429, %v5428
      %v5462 = vpack.c.bf16 %v4469, %v4468
      %v5463 = vpack.c.bf16 %v5335, %v5334
      %v5464 = vpack.c.bf16 %v5431, %v5430
      %v5465 = vpack.c.bf16 %v4471, %v4470
      %v5466 = vpack.c.bf16 %v5337, %v5336
      %v5467 = vpack.c.bf16 %v5433, %v5432
      %v5468 = vpack.c.bf16 %v4473, %v4472
      %v5469 = vpack.c.bf16 %v5339, %v5338
      %v5470 = vpack.c.bf16 %v5435, %v5434
      %v5471 = vpack.c.bf16 %v4475, %v4474
      %v5472 = vpack.c.bf16 %v5341, %v5340
      %v5473 = vpack.c.bf16 %v5437, %v5436
      %v5474 = vpack.c.bf16 %v4477, %v4476
      %v5475 = vpack.c.bf16 %v5343, %v5342
      %v5476 = vpack.c.bf16 %v5439, %v5438
      %v5477 = vpack.c.bf16 %v4479, %v4478
      %v5478 = vpack.c.bf16 %v5345, %v5344
      %v5479 = vpack.c.bf16 %v5441, %v5440
      %v5480 = vpack.c.bf16 %v4481, %v4480
      %v5481 = vpack.c.bf16 %v5347, %v5346
      %v5482 = vpack.c.bf16 %v5443, %v5442
      %v5483 = vpack.c.bf16 %v4483, %v4482
      %v5484 = vpack.c.bf16 %v5349, %v5348
      %v5485 = vpack.c.bf16 %v5445, %v5444
      %v5486 = vpack.c.bf16 %v4485, %v4484
      %v5487 = vpack.c.bf16 %v5351, %v5350
      %v5488 = vpack.c.bf16 %v5447, %v5446
      %v5489 = vpack.c.bf16 %v4487, %v4486
      %v5490 = vpack.c.bf16 %v5353, %v5352
      %v5491 = vpack.c.bf16 %v5449, %v5448
      %v5492 = vpack.c.bf16 %v4489, %v4488
      %v5493 = vpack.c.bf16 %v5355, %v5354
      %v5494 = vpack.c.bf16 %v5451, %v5450
      %v5495 = vpack.c.bf16 %v4491, %v4490
      %v5496 = vpack.c.bf16 %v5357, %v5356
      %v5497 = vpack.c.bf16 %v5453, %v5452
      %v5498 = vpack.c.bf16 %v4493, %v4492
      %v5499 = vpack.c.bf16 %v5359, %v5358
      %v5500 = vpack.c.bf16 %v5455, %v5454
      %v5501 = vpack.c.bf16 %v4495, %v4494
      %v5502 = vpack.c.bf16 %v5361, %v5360
      %v5503 = vpack.c.bf16 %v5457, %v5456
      %v5504 = vpack.c.bf16 %v4497, %v4496
      %v5505 = vpack.c.bf16 %v5363, %v5362
      %v5506 = vpack.c.bf16 %v5459, %v5458
      %v5507 = vpack.c.bf16 %v4499, %v4498
      %s5508 = scalar_lea.vmem %s3, 144
      %v5509 = vld [vmem:[%s5508] sm:$0xf]
      %v5510 = vld [vmem:[%s5508 + $0x4] sm:$0xf]
      %v5511 = vld [vmem:[%s5508 + $0x8] sm:$0xf]
      %v5512 = vld [vmem:[%s5508 + $0xc] sm:$0xf]
      %v5513 = vld [vmem:[%s5508 + $0x10] sm:$0xf]
      %v5514 = vld [vmem:[%s5508 + $0x14] sm:$0xf]
      %v5515 = vld [vmem:[%s5508 + $0x18] sm:$0xf]
      %v5516 = vld [vmem:[%s5508 + $0x1c] sm:$0xf]
      %v5517 = vld [vmem:[%s5508 + $0x20] sm:$0xf]
      %v5518 = vld [vmem:[%s5508 + $0x24] sm:$0xf]
      %v5519 = vld [vmem:[%s5508 + $0x28] sm:$0xf]
      %v5520 = vld [vmem:[%s5508 + $0x2c] sm:$0xf]
      %v5521 = vld [vmem:[%s5508 + $0x30] sm:$0xf]
      %v5522 = vld [vmem:[%s5508 + $0x34] sm:$0xf]
      %v5523 = vld [vmem:[%s5508 + $0x38] sm:$0xf]
      %v5524 = vld [vmem:[%s5508 + $0x3c] sm:$0xf]
      %v5525 = vld [vmem:[%s5508 + $0x40] sm:$0xf]
      %v5526 = vld [vmem:[%s5508 + $0x44] sm:$0xf]
      %v5527 = vld [vmem:[%s5508 + $0x48] sm:$0xf]
      %v5528 = vld [vmem:[%s5508 + $0x4c] sm:$0xf]
      %v5529 = vld [vmem:[%s5508 + $0x50] sm:$0xf]
      %v5530 = vld [vmem:[%s5508 + $0x54] sm:$0xf]
      %v5531 = vld [vmem:[%s5508 + $0x58] sm:$0xf]
      %v5532 = vld [vmem:[%s5508 + $0x5c] sm:$0xf]
      %v5533 = vld [vmem:[%s5508 + $0x60] sm:$0xf]
      %v5534 = vld [vmem:[%s5508 + $0x64] sm:$0xf]
      %v5535 = vld [vmem:[%s5508 + $0x68] sm:$0xf]
      %v5536 = vld [vmem:[%s5508 + $0x6c] sm:$0xf]
      %v5537 = vld [vmem:[%s5508 + $0x70] sm:$0xf]
      %v5538 = vld [vmem:[%s5508 + $0x74] sm:$0xf]
      %v5539 = vld [vmem:[%s5508 + $0x78] sm:$0xf]
      %v5540 = vld [vmem:[%s5508 + $0x7c] sm:$0xf]
      %v5541 = vld [vmem:[%s5508 + $0x80] sm:$0xf]
      %v5542 = vld [vmem:[%s5508 + $0x84] sm:$0xf]
      %v5543 = vld [vmem:[%s5508 + $0x88] sm:$0xf]
      %v5544 = vld [vmem:[%s5508 + $0x8c] sm:$0xf]
      %s5545 = scalar_lea.vmem %s4, 1
      %v5546 = vld [vmem:[%s5545] sm:$0x1]
      %v5548 = vperm.slane %v5546, 0
      %v5586 = vunpack.c.l.b16 %v5509
      %v5587 = vunpack.c.l.b16 %v5510
      %v5588 = vunpack.c.l.b16 %v5511
      %v5589 = vunpack.c.l.b16 %v5512
      %v5590 = vunpack.c.l.b16 %v5513
      %v5591 = vunpack.c.l.b16 %v5514
      %v5592 = vunpack.c.l.b16 %v5515
      %v5593 = vunpack.c.l.b16 %v5516
      %v5594 = vunpack.c.l.b16 %v5517
      %v5595 = vunpack.c.l.b16 %v5518
      %v5596 = vunpack.c.l.b16 %v5519
      %v5597 = vunpack.c.l.b16 %v5520
      %v5598 = vunpack.c.l.b16 %v5521
      %v5599 = vunpack.c.l.b16 %v5522
      %v5600 = vunpack.c.l.b16 %v5523
      %v5601 = vunpack.c.l.b16 %v5524
      %v5602 = vunpack.c.l.b16 %v5525
      %v5603 = vunpack.c.l.b16 %v5526
      %v5604 = vunpack.c.l.b16 %v5527
      %v5605 = vunpack.c.l.b16 %v5528
      %v5606 = vunpack.c.l.b16 %v5529
      %v5607 = vunpack.c.l.b16 %v5530
      %v5608 = vunpack.c.l.b16 %v5531
      %v5609 = vunpack.c.l.b16 %v5532
      %v5610 = vunpack.c.l.b16 %v5533
      %v5611 = vunpack.c.l.b16 %v5534
      %v5612 = vunpack.c.l.b16 %v5535
      %v5613 = vunpack.c.l.b16 %v5536
      %v5614 = vunpack.c.l.b16 %v5537
      %v5615 = vunpack.c.l.b16 %v5538
      %v5616 = vunpack.c.l.b16 %v5539
      %v5617 = vunpack.c.l.b16 %v5540
      %v5618 = vunpack.c.l.b16 %v5541
      %v5619 = vunpack.c.l.b16 %v5542
      %v5620 = vunpack.c.l.b16 %v5543
      %v5621 = vunpack.c.l.b16 %v5544
      %v5622 = vpack.c.b16 %v5587, %v5586
      %v5623 = vpack.c.b16 %v5589, %v5588
      %v5624 = vpack.c.b16 %v5591, %v5590
      %v5625 = vpack.c.b16 %v5593, %v5592
      %v5626 = vpack.c.b16 %v5595, %v5594
      %v5627 = vpack.c.b16 %v5597, %v5596
      %v5628 = vpack.c.b16 %v5599, %v5598
      %v5629 = vpack.c.b16 %v5601, %v5600
      %v5630 = vpack.c.b16 %v5603, %v5602
      %v5631 = vpack.c.b16 %v5605, %v5604
      %v5632 = vpack.c.b16 %v5607, %v5606
      %v5633 = vpack.c.b16 %v5609, %v5608
      %v5634 = vpack.c.b16 %v5611, %v5610
      %v5635 = vpack.c.b16 %v5613, %v5612
      %v5636 = vpack.c.b16 %v5615, %v5614
      %v5637 = vpack.c.b16 %v5617, %v5616
      %v5638 = vpack.c.b16 %v5619, %v5618
      %v5639 = vpack.c.b16 %v5621, %v5620
      %v5659 = vsel %vm1825, %v5462, 0
      %v5662 = vsel %vm1825, %v5465, 0
      %v5665 = vsel %vm1825, %v5468, 0
      %v5668 = vsel %vm1825, %v5471, 0
      %v5671 = vsel %vm1825, %v5474, 0
      %v5674 = vsel %vm1825, %v5477, 0
      %v5677 = vsel %vm1825, %v5480, 0
      %v5680 = vsel %vm1825, %v5483, 0
      %v5683 = vsel %vm1825, %v5486, 0
      %v5686 = vsel %vm1825, %v5489, 0
      %v5689 = vsel %vm1825, %v5492, 0
      %v5692 = vsel %vm1825, %v5495, 0
      %v5695 = vsel %vm1825, %v5498, 0
      %v5698 = vsel %vm1825, %v5501, 0
      %v5701 = vsel %vm1825, %v5504, 0
      %v5704 = vsel %vm1825, %v5507, 0
      %5706 = vmatpush.bf16.msra.mxu0 %v5629
      %5707 = vmatpush.bf16.msra.mxu0 %v5628
      %5708 = vmatpush.bf16.msra.mxu0 %v5627
      %5709 = vmatpush.bf16.msra.mxu0 %v5626
      %5710 = vmatpush.bf16.msra.mxu0 %v5625
      %5711 = vmatpush.bf16.msra.mxu0 %v5624
      %5712 = vmatpush.bf16.msra.mxu0 %v5623
      %5713 = vmatpush.bf16.msra.mxu0 %v5622
      %5714 = vmatmul.bf16.gmra.mxu0 %v5460
      %v5715 = vpop.f32.mrf.mxu0
      %v5716 = vadd.f32 %v5548, %v5715
      %v5717 = vpop.f32.mrf.mxu0
      %v5718 = vadd.f32 %v5548, %v5717
      %5719 = vmatmul.bf16.gmra.mxu0 %v5463
      %v5720 = vpop.f32.mrf.mxu0
      %v5721 = vadd.f32 %v5548, %v5720
      %v5722 = vpop.f32.mrf.mxu0
      %v5723 = vadd.f32 %v5548, %v5722
      %5724 = vmatmul.bf16.gmra.mxu0 %v5466
      %v5725 = vpop.f32.mrf.mxu0
      %v5726 = vadd.f32 %v5548, %v5725
      %v5727 = vpop.f32.mrf.mxu0
      %v5728 = vadd.f32 %v5548, %v5727
      %5729 = vmatmul.bf16.gmra.mxu0 %v5469
      %v5730 = vpop.f32.mrf.mxu0
      %v5731 = vadd.f32 %v5548, %v5730
      %v5732 = vpop.f32.mrf.mxu0
      %v5733 = vadd.f32 %v5548, %v5732
      %5734 = vmatmul.bf16.gmra.mxu0 %v5472
      %v5735 = vpop.f32.mrf.mxu0
      %v5736 = vadd.f32 %v5548, %v5735
      %v5737 = vpop.f32.mrf.mxu0
      %v5738 = vadd.f32 %v5548, %v5737
      %5739 = vmatmul.bf16.gmra.mxu0 %v5475
      %v5740 = vpop.f32.mrf.mxu0
      %v5741 = vadd.f32 %v5548, %v5740
      %v5742 = vpop.f32.mrf.mxu0
      %v5743 = vadd.f32 %v5548, %v5742
      %5744 = vmatmul.bf16.gmra.mxu0 %v5478
      %v5745 = vpop.f32.mrf.mxu0
      %v5746 = vadd.f32 %v5548, %v5745
      %v5747 = vpop.f32.mrf.mxu0
      %v5748 = vadd.f32 %v5548, %v5747
      %5749 = vmatmul.bf16.gmra.mxu0 %v5481
      %v5750 = vpop.f32.mrf.mxu0
      %v5751 = vadd.f32 %v5548, %v5750
      %v5752 = vpop.f32.mrf.mxu0
      %v5753 = vadd.f32 %v5548, %v5752
      %5754 = vmatmul.bf16.gmra.mxu0 %v5484
      %v5755 = vpop.f32.mrf.mxu0
      %v5756 = vadd.f32 %v5548, %v5755
      %v5757 = vpop.f32.mrf.mxu0
      %v5758 = vadd.f32 %v5548, %v5757
      %5759 = vmatmul.bf16.gmra.mxu0 %v5487
      %v5760 = vpop.f32.mrf.mxu0
      %v5761 = vadd.f32 %v5548, %v5760
      %v5762 = vpop.f32.mrf.mxu0
      %v5763 = vadd.f32 %v5548, %v5762
      %5764 = vmatmul.bf16.gmra.mxu0 %v5490
      %v5765 = vpop.f32.mrf.mxu0
      %v5766 = vadd.f32 %v5548, %v5765
      %v5767 = vpop.f32.mrf.mxu0
      %v5768 = vadd.f32 %v5548, %v5767
      %5769 = vmatmul.bf16.gmra.mxu0 %v5493
      %v5770 = vpop.f32.mrf.mxu0
      %v5771 = vadd.f32 %v5548, %v5770
      %v5772 = vpop.f32.mrf.mxu0
      %v5773 = vadd.f32 %v5548, %v5772
      %5774 = vmatmul.bf16.gmra.mxu0 %v5496
      %v5775 = vpop.f32.mrf.mxu0
      %v5776 = vadd.f32 %v5548, %v5775
      %v5777 = vpop.f32.mrf.mxu0
      %v5778 = vadd.f32 %v5548, %v5777
      %5779 = vmatmul.bf16.gmra.mxu0 %v5499
      %v5780 = vpop.f32.mrf.mxu0
      %v5781 = vadd.f32 %v5548, %v5780
      %v5782 = vpop.f32.mrf.mxu0
      %v5783 = vadd.f32 %v5548, %v5782
      %5784 = vmatmul.bf16.gmra.mxu0 %v5502
      %v5785 = vpop.f32.mrf.mxu0
      %v5786 = vadd.f32 %v5548, %v5785
      %v5787 = vpop.f32.mrf.mxu0
      %v5788 = vadd.f32 %v5548, %v5787
      %5789 = vmatmul.bf16.gmra.mxu0 %v5505
      %v5790 = vpop.f32.mrf.mxu0
      %v5791 = vadd.f32 %v5548, %v5790
      %v5792 = vpop.f32.mrf.mxu0
      %v5793 = vadd.f32 %v5548, %v5792
      %5794 = vdwg.mxu0
      %5795 = vmatpush.bf16.msra.mxu0 %v5637
      %5796 = vmatpush.bf16.msra.mxu0 %v5636
      %5797 = vmatpush.bf16.msra.mxu0 %v5635
      %5798 = vmatpush.bf16.msra.mxu0 %v5634
      %5799 = vmatpush.bf16.msra.mxu0 %v5633
      %5800 = vmatpush.bf16.msra.mxu0 %v5632
      %5801 = vmatpush.bf16.msra.mxu0 %v5631
      %5802 = vmatpush.bf16.msra.mxu0 %v5630
      %5803 = vmatmul.bf16.gmra.mxu0 %v5461
      %v5804 = vpop.f32.mrf.mxu0
      %v5805 = vadd.f32 %v5716, %v5804
      %v5806 = vpop.f32.mrf.mxu0
      %v5807 = vadd.f32 %v5718, %v5806
      %5808 = vmatmul.bf16.gmra.mxu0 %v5464
      %v5809 = vpop.f32.mrf.mxu0
      %v5810 = vadd.f32 %v5721, %v5809
      %v5811 = vpop.f32.mrf.mxu0
      %v5812 = vadd.f32 %v5723, %v5811
      %5813 = vmatmul.bf16.gmra.mxu0 %v5467
      %v5814 = vpop.f32.mrf.mxu0
      %v5815 = vadd.f32 %v5726, %v5814
      %v5816 = vpop.f32.mrf.mxu0
      %v5817 = vadd.f32 %v5728, %v5816
      %5818 = vmatmul.bf16.gmra.mxu0 %v5470
      %v5819 = vpop.f32.mrf.mxu0
      %v5820 = vadd.f32 %v5731, %v5819
      %v5821 = vpop.f32.mrf.mxu0
      %v5822 = vadd.f32 %v5733, %v5821
      %5823 = vmatmul.bf16.gmra.mxu0 %v5473
      %v5824 = vpop.f32.mrf.mxu0
      %v5825 = vadd.f32 %v5736, %v5824
      %v5826 = vpop.f32.mrf.mxu0
      %v5827 = vadd.f32 %v5738, %v5826
      %5828 = vmatmul.bf16.gmra.mxu0 %v5476
      %v5829 = vpop.f32.mrf.mxu0
      %v5830 = vadd.f32 %v5741, %v5829
      %v5831 = vpop.f32.mrf.mxu0
      %v5832 = vadd.f32 %v5743, %v5831
      %5833 = vmatmul.bf16.gmra.mxu0 %v5479
      %v5834 = vpop.f32.mrf.mxu0
      %v5835 = vadd.f32 %v5746, %v5834
      %v5836 = vpop.f32.mrf.mxu0
      %v5837 = vadd.f32 %v5748, %v5836
      %5838 = vmatmul.bf16.gmra.mxu0 %v5482
      %v5839 = vpop.f32.mrf.mxu0
      %v5840 = vadd.f32 %v5751, %v5839
      %v5841 = vpop.f32.mrf.mxu0
      %v5842 = vadd.f32 %v5753, %v5841
      %5843 = vmatmul.bf16.gmra.mxu0 %v5485
      %v5844 = vpop.f32.mrf.mxu0
      %v5845 = vadd.f32 %v5756, %v5844
      %v5846 = vpop.f32.mrf.mxu0
      %v5847 = vadd.f32 %v5758, %v5846
      %5848 = vmatmul.bf16.gmra.mxu0 %v5488
      %v5849 = vpop.f32.mrf.mxu0
      %v5850 = vadd.f32 %v5761, %v5849
      %v5851 = vpop.f32.mrf.mxu0
      %v5852 = vadd.f32 %v5763, %v5851
      %5853 = vmatmul.bf16.gmra.mxu0 %v5491
      %v5854 = vpop.f32.mrf.mxu0
      %v5855 = vadd.f32 %v5766, %v5854
      %v5856 = vpop.f32.mrf.mxu0
      %v5857 = vadd.f32 %v5768, %v5856
      %5858 = vmatmul.bf16.gmra.mxu0 %v5494
      %v5859 = vpop.f32.mrf.mxu0
      %v5860 = vadd.f32 %v5771, %v5859
      %v5861 = vpop.f32.mrf.mxu0
      %v5862 = vadd.f32 %v5773, %v5861
      %5863 = vmatmul.bf16.gmra.mxu0 %v5497
      %v5864 = vpop.f32.mrf.mxu0
      %v5865 = vadd.f32 %v5776, %v5864
      %v5866 = vpop.f32.mrf.mxu0
      %v5867 = vadd.f32 %v5778, %v5866
      %5868 = vmatmul.bf16.gmra.mxu0 %v5500
      %v5869 = vpop.f32.mrf.mxu0
      %v5870 = vadd.f32 %v5781, %v5869
      %v5871 = vpop.f32.mrf.mxu0
      %v5872 = vadd.f32 %v5783, %v5871
      %5873 = vmatmul.bf16.gmra.mxu0 %v5503
      %v5874 = vpop.f32.mrf.mxu0
      %v5875 = vadd.f32 %v5786, %v5874
      %v5876 = vpop.f32.mrf.mxu0
      %v5877 = vadd.f32 %v5788, %v5876
      %5878 = vmatmul.bf16.gmra.mxu0 %v5506
      %v5879 = vpop.f32.mrf.mxu0
      %v5880 = vadd.f32 %v5791, %v5879
      %v5881 = vpop.f32.mrf.mxu0
      %v5882 = vadd.f32 %v5793, %v5881
      %5883 = vdwg.mxu0
      %5884 = vmatpush.bf16.msra.mxu0 0
      %5885 = vmatpush.bf16.msra.mxu0 0
      %5886 = vmatpush.bf16.msra.mxu0 0
      %5887 = vmatpush.bf16.msra.mxu0 0
      %5888 = vmatpush.bf16.msra.mxu0 0
      %5889 = vmatpush.bf16.msra.mxu0 0
      %5890 = vmatpush.bf16.msra.mxu0 %v5639
      %5891 = vmatpush.bf16.msra.mxu0 %v5638
      %5892 = vmatmul.bf16.gmra.mxu0 %v5659
      %v5893 = vpop.f32.mrf.mxu0
      %v5894 = vadd.f32 %v5805, %v5893
      %v5895 = vpop.f32.mrf.mxu0
      %v5896 = vadd.f32 %v5807, %v5895
      %5897 = vmatmul.bf16.gmra.mxu0 %v5662
      %v5898 = vpop.f32.mrf.mxu0
      %v5899 = vadd.f32 %v5810, %v5898
      %v5900 = vpop.f32.mrf.mxu0
      %v5901 = vadd.f32 %v5812, %v5900
      %5902 = vmatmul.bf16.gmra.mxu0 %v5665
      %v5903 = vpop.f32.mrf.mxu0
      %v5904 = vadd.f32 %v5815, %v5903
      %v5905 = vpop.f32.mrf.mxu0
      %v5906 = vadd.f32 %v5817, %v5905
      %5907 = vmatmul.bf16.gmra.mxu0 %v5668
      %v5908 = vpop.f32.mrf.mxu0
      %v5909 = vadd.f32 %v5820, %v5908
      %v5910 = vpop.f32.mrf.mxu0
      %v5911 = vadd.f32 %v5822, %v5910
      %5912 = vmatmul.bf16.gmra.mxu0 %v5671
      %v5913 = vpop.f32.mrf.mxu0
      %v5914 = vadd.f32 %v5825, %v5913
      %v5915 = vpop.f32.mrf.mxu0
      %v5916 = vadd.f32 %v5827, %v5915
      %5917 = vmatmul.bf16.gmra.mxu0 %v5674
      %v5918 = vpop.f32.mrf.mxu0
      %v5919 = vadd.f32 %v5830, %v5918
      %v5920 = vpop.f32.mrf.mxu0
      %v5921 = vadd.f32 %v5832, %v5920
      %5922 = vmatmul.bf16.gmra.mxu0 %v5677
      %v5923 = vpop.f32.mrf.mxu0
      %v5924 = vadd.f32 %v5835, %v5923
      %v5925 = vpop.f32.mrf.mxu0
      %v5926 = vadd.f32 %v5837, %v5925
      %5927 = vmatmul.bf16.gmra.mxu0 %v5680
      %v5928 = vpop.f32.mrf.mxu0
      %v5929 = vadd.f32 %v5840, %v5928
      %v5930 = vpop.f32.mrf.mxu0
      %v5931 = vadd.f32 %v5842, %v5930
      %5932 = vmatmul.bf16.gmra.mxu0 %v5683
      %v5933 = vpop.f32.mrf.mxu0
      %v5934 = vadd.f32 %v5845, %v5933
      %v5935 = vpop.f32.mrf.mxu0
      %v5936 = vadd.f32 %v5847, %v5935
      %5937 = vmatmul.bf16.gmra.mxu0 %v5686
      %v5938 = vpop.f32.mrf.mxu0
      %v5939 = vadd.f32 %v5850, %v5938
      %v5940 = vpop.f32.mrf.mxu0
      %v5941 = vadd.f32 %v5852, %v5940
      %5942 = vmatmul.bf16.gmra.mxu0 %v5689
      %v5943 = vpop.f32.mrf.mxu0
      %v5944 = vadd.f32 %v5855, %v5943
      %v5945 = vpop.f32.mrf.mxu0
      %v5946 = vadd.f32 %v5857, %v5945
      %5947 = vmatmul.bf16.gmra.mxu0 %v5692
      %v5948 = vpop.f32.mrf.mxu0
      %v5949 = vadd.f32 %v5860, %v5948
      %v5950 = vpop.f32.mrf.mxu0
      %v5951 = vadd.f32 %v5862, %v5950
      %5952 = vmatmul.bf16.gmra.mxu0 %v5695
      %v5953 = vpop.f32.mrf.mxu0
      %v5954 = vadd.f32 %v5865, %v5953
      %v5955 = vpop.f32.mrf.mxu0
      %v5956 = vadd.f32 %v5867, %v5955
      %5957 = vmatmul.bf16.gmra.mxu0 %v5698
      %v5958 = vpop.f32.mrf.mxu0
      %v5959 = vadd.f32 %v5870, %v5958
      %v5960 = vpop.f32.mrf.mxu0
      %v5961 = vadd.f32 %v5872, %v5960
      %5962 = vmatmul.bf16.gmra.mxu0 %v5701
      %v5963 = vpop.f32.mrf.mxu0
      %v5964 = vadd.f32 %v5875, %v5963
      %v5965 = vpop.f32.mrf.mxu0
      %v5966 = vadd.f32 %v5877, %v5965
      %5967 = vmatmul.bf16.gmra.mxu0 %v5704
      %v5968 = vpop.f32.mrf.mxu0
      %v5969 = vadd.f32 %v5880, %v5968
      %v5970 = vpop.f32.mrf.mxu0
      %v5971 = vadd.f32 %v5882, %v5970
      %5972 = vdwg.mxu0
      %v5973 = vmax.f32 %v5894, 0.0
      %v5974 = vmax.f32 %v5896, 0.0
      %v5975 = vmax.f32 %v5899, 0.0
      %v5976 = vmax.f32 %v5901, 0.0
      %v5977 = vmax.f32 %v5904, 0.0
      %v5978 = vmax.f32 %v5906, 0.0
      %v5979 = vmax.f32 %v5909, 0.0
      %v5980 = vmax.f32 %v5911, 0.0
      %v5981 = vmax.f32 %v5914, 0.0
      %v5982 = vmax.f32 %v5916, 0.0
      %v5983 = vmax.f32 %v5919, 0.0
      %v5984 = vmax.f32 %v5921, 0.0
      %v5985 = vmax.f32 %v5924, 0.0
      %v5986 = vmax.f32 %v5926, 0.0
      %v5987 = vmax.f32 %v5929, 0.0
      %v5988 = vmax.f32 %v5931, 0.0
      %v5989 = vmax.f32 %v5934, 0.0
      %v5990 = vmax.f32 %v5936, 0.0
      %v5991 = vmax.f32 %v5939, 0.0
      %v5992 = vmax.f32 %v5941, 0.0
      %v5993 = vmax.f32 %v5944, 0.0
      %v5994 = vmax.f32 %v5946, 0.0
      %v5995 = vmax.f32 %v5949, 0.0
      %v5996 = vmax.f32 %v5951, 0.0
      %v5997 = vmax.f32 %v5954, 0.0
      %v5998 = vmax.f32 %v5956, 0.0
      %v5999 = vmax.f32 %v5959, 0.0
      %v6000 = vmax.f32 %v5961, 0.0
      %v6001 = vmax.f32 %v5964, 0.0
      %v6002 = vmax.f32 %v5966, 0.0
      %v6003 = vmax.f32 %v5969, 0.0
      %v6004 = vmax.f32 %v5971, 0.0
      %v6005 = vpack.c.bf16 %v5974, %v5973
      %v6006 = vpack.c.bf16 %v5976, %v5975
      %v6007 = vpack.c.bf16 %v5978, %v5977
      %v6008 = vpack.c.bf16 %v5980, %v5979
      %v6009 = vpack.c.bf16 %v5982, %v5981
      %v6010 = vpack.c.bf16 %v5984, %v5983
      %v6011 = vpack.c.bf16 %v5986, %v5985
      %v6012 = vpack.c.bf16 %v5988, %v5987
      %v6013 = vpack.c.bf16 %v5990, %v5989
      %v6014 = vpack.c.bf16 %v5992, %v5991
      %v6015 = vpack.c.bf16 %v5994, %v5993
      %v6016 = vpack.c.bf16 %v5996, %v5995
      %v6017 = vpack.c.bf16 %v5998, %v5997
      %v6018 = vpack.c.bf16 %v6000, %v5999
      %v6019 = vpack.c.bf16 %v6002, %v6001
      %v6020 = vpack.c.bf16 %v6004, %v6003
      %s6021 = scalar_lea.vmem %s5, 4
      %v6022 = vld [vmem:[%s6021] sm:$0xf]
      %s6023 = scalar_lea.vmem %s6, 1
      %v6024 = vld [vmem:[%s6023] sm:$0x1]
      %v6026 = vperm.slane %v6024, 0
      %v6029 = vsel %vm1627, %v6005, 0
      %v6032 = vsel %vm1627, %v6006, 0
      %v6035 = vsel %vm1627, %v6007, 0
      %v6038 = vsel %vm1627, %v6008, 0
      %v6041 = vsel %vm1627, %v6009, 0
      %v6044 = vsel %vm1627, %v6010, 0
      %v6047 = vsel %vm1627, %v6011, 0
      %v6050 = vsel %vm1627, %v6012, 0
      %v6053 = vsel %vm1627, %v6013, 0
      %v6056 = vsel %vm1627, %v6014, 0
      %v6059 = vsel %vm1627, %v6015, 0
      %v6062 = vsel %vm1627, %v6016, 0
      %v6065 = vsel %vm1627, %v6017, 0
      %v6068 = vsel %vm1627, %v6018, 0
      %v6071 = vsel %vm1627, %v6019, 0
      %v6074 = vsel %vm1627, %v6020, 0
      %v6077 = vsel %vm4023, %v6022, 0
      %6079 = vmatpush.bf16.msra.mxu0 0
      %6080 = vmatpush.bf16.msra.mxu0 0
      %6081 = vmatpush.bf16.msra.mxu0 0
      %6082 = vmatpush.bf16.msra.mxu0 0
      %6083 = vmatpush.bf16.msra.mxu0 0
      %6084 = vmatpush.bf16.msra.mxu0 0
      %6085 = vmatpush.bf16.msra.mxu0 0
      %6086 = vmatpush.bf16.msra.mxu0 %v6077
      %6087 = vmatmul.bf16.gmra.mxu0 %v6029
      %v6088 = vpop.f32.mrf.mxu0
      %v6089 = vadd.f32 %v6026, %v6088
      %v6090 = vpop.f32.mrf.mxu0
      %v6091 = vadd.f32 %v6026, %v6090
      %6092 = vmatmul.bf16.gmra.mxu0 %v6032
      %v6093 = vpop.f32.mrf.mxu0
      %v6094 = vadd.f32 %v6026, %v6093
      %v6095 = vpop.f32.mrf.mxu0
      %v6096 = vadd.f32 %v6026, %v6095
      %6097 = vmatmul.bf16.gmra.mxu0 %v6035
      %v6098 = vpop.f32.mrf.mxu0
      %v6099 = vadd.f32 %v6026, %v6098
      %v6100 = vpop.f32.mrf.mxu0
      %v6101 = vadd.f32 %v6026, %v6100
      %6102 = vmatmul.bf16.gmra.mxu0 %v6038
      %v6103 = vpop.f32.mrf.mxu0
      %v6104 = vadd.f32 %v6026, %v6103
      %v6105 = vpop.f32.mrf.mxu0
      %v6106 = vadd.f32 %v6026, %v6105
      %6107 = vmatmul.bf16.gmra.mxu0 %v6041
      %v6108 = vpop.f32.mrf.mxu0
      %v6109 = vadd.f32 %v6026, %v6108
      %v6110 = vpop.f32.mrf.mxu0
      %v6111 = vadd.f32 %v6026, %v6110
      %6112 = vmatmul.bf16.gmra.mxu0 %v6044
      %v6113 = vpop.f32.mrf.mxu0
      %v6114 = vadd.f32 %v6026, %v6113
      %v6115 = vpop.f32.mrf.mxu0
      %v6116 = vadd.f32 %v6026, %v6115
      %6117 = vmatmul.bf16.gmra.mxu0 %v6047
      %v6118 = vpop.f32.mrf.mxu0
      %v6119 = vadd.f32 %v6026, %v6118
      %v6120 = vpop.f32.mrf.mxu0
      %v6121 = vadd.f32 %v6026, %v6120
      %6122 = vmatmul.bf16.gmra.mxu0 %v6050
      %v6123 = vpop.f32.mrf.mxu0
      %v6124 = vadd.f32 %v6026, %v6123
      %v6125 = vpop.f32.mrf.mxu0
      %v6126 = vadd.f32 %v6026, %v6125
      %6127 = vmatmul.bf16.gmra.mxu0 %v6053
      %v6128 = vpop.f32.mrf.mxu0
      %v6129 = vadd.f32 %v6026, %v6128
      %v6130 = vpop.f32.mrf.mxu0
      %v6131 = vadd.f32 %v6026, %v6130
      %6132 = vmatmul.bf16.gmra.mxu0 %v6056
      %v6133 = vpop.f32.mrf.mxu0
      %v6134 = vadd.f32 %v6026, %v6133
      %v6135 = vpop.f32.mrf.mxu0
      %v6136 = vadd.f32 %v6026, %v6135
      %6137 = vmatmul.bf16.gmra.mxu0 %v6059
      %v6138 = vpop.f32.mrf.mxu0
      %v6139 = vadd.f32 %v6026, %v6138
      %v6140 = vpop.f32.mrf.mxu0
      %v6141 = vadd.f32 %v6026, %v6140
      %6142 = vmatmul.bf16.gmra.mxu0 %v6062
      %v6143 = vpop.f32.mrf.mxu0
      %v6144 = vadd.f32 %v6026, %v6143
      %v6145 = vpop.f32.mrf.mxu0
      %v6146 = vadd.f32 %v6026, %v6145
      %6147 = vmatmul.bf16.gmra.mxu0 %v6065
      %v6148 = vpop.f32.mrf.mxu0
      %v6149 = vadd.f32 %v6026, %v6148
      %v6150 = vpop.f32.mrf.mxu0
      %v6151 = vadd.f32 %v6026, %v6150
      %6152 = vmatmul.bf16.gmra.mxu0 %v6068
      %v6153 = vpop.f32.mrf.mxu0
      %v6154 = vadd.f32 %v6026, %v6153
      %v6155 = vpop.f32.mrf.mxu0
      %v6156 = vadd.f32 %v6026, %v6155
      %6157 = vmatmul.bf16.gmra.mxu0 %v6071
      %v6158 = vpop.f32.mrf.mxu0
      %v6159 = vadd.f32 %v6026, %v6158
      %v6160 = vpop.f32.mrf.mxu0
      %v6161 = vadd.f32 %v6026, %v6160
      %6162 = vmatmul.bf16.gmra.mxu0 %v6074
      %v6163 = vpop.f32.mrf.mxu0
      %v6164 = vadd.f32 %v6026, %v6163
      %v6165 = vpop.f32.mrf.mxu0
      %v6166 = vadd.f32 %v6026, %v6165
      %6167 = vdwg.mxu0
      %v6168 = vadd.f32 %v4148, %v6089
      %v6169 = vadd.f32 %v4149, %v6091
      %v6170 = vadd.f32 %v4150, %v6094
      %v6171 = vadd.f32 %v4151, %v6096
      %v6172 = vadd.f32 %v4152, %v6099
      %v6173 = vadd.f32 %v4153, %v6101
      %v6174 = vadd.f32 %v4154, %v6104
      %v6175 = vadd.f32 %v4155, %v6106
      %v6176 = vadd.f32 %v4156, %v6109
      %v6177 = vadd.f32 %v4157, %v6111
      %v6178 = vadd.f32 %v4158, %v6114
      %v6179 = vadd.f32 %v4159, %v6116
      %v6180 = vadd.f32 %v4160, %v6119
      %v6181 = vadd.f32 %v4161, %v6121
      %v6182 = vadd.f32 %v4162, %v6124
      %v6183 = vadd.f32 %v4163, %v6126
      %v6184 = vadd.f32 %v4164, %v6129
      %v6185 = vadd.f32 %v4165, %v6131
      %v6186 = vadd.f32 %v4166, %v6134
      %v6187 = vadd.f32 %v4167, %v6136
      %v6188 = vadd.f32 %v4168, %v6139
      %v6189 = vadd.f32 %v4169, %v6141
      %v6190 = vadd.f32 %v4170, %v6144
      %v6191 = vadd.f32 %v4171, %v6146
      %v6192 = vadd.f32 %v4172, %v6149
      %v6193 = vadd.f32 %v4173, %v6151
      %v6194 = vadd.f32 %v4174, %v6154
      %v6195 = vadd.f32 %v4175, %v6156
      %v6196 = vadd.f32 %v4176, %v6159
      %v6197 = vadd.f32 %v4177, %v6161
      %v6198 = vadd.f32 %v4178, %v6164
      %v6199 = vadd.f32 %v4179, %v6166
      %v6200 = vmax.f32 %v6168, 0.0
      %v6201 = vmax.f32 %v6169, 0.0
      %v6202 = vmax.f32 %v6170, 0.0
      %v6203 = vmax.f32 %v6171, 0.0
      %v6204 = vmax.f32 %v6172, 0.0
      %v6205 = vmax.f32 %v6173, 0.0
      %v6206 = vmax.f32 %v6174, 0.0
      %v6207 = vmax.f32 %v6175, 0.0
      %v6208 = vmax.f32 %v6176, 0.0
      %v6209 = vmax.f32 %v6177, 0.0
      %v6210 = vmax.f32 %v6178, 0.0
      %v6211 = vmax.f32 %v6179, 0.0
      %v6212 = vmax.f32 %v6180, 0.0
      %v6213 = vmax.f32 %v6181, 0.0
      %v6214 = vmax.f32 %v6182, 0.0
      %v6215 = vmax.f32 %v6183, 0.0
      %v6216 = vmax.f32 %v6184, 0.0
      %v6217 = vmax.f32 %v6185, 0.0
      %v6218 = vmax.f32 %v6186, 0.0
      %v6219 = vmax.f32 %v6187, 0.0
      %v6220 = vmax.f32 %v6188, 0.0
      %v6221 = vmax.f32 %v6189, 0.0
      %v6222 = vmax.f32 %v6190, 0.0
      %v6223 = vmax.f32 %v6191, 0.0
      %v6224 = vmax.f32 %v6192, 0.0
      %v6225 = vmax.f32 %v6193, 0.0
      %v6226 = vmax.f32 %v6194, 0.0
      %v6227 = vmax.f32 %v6195, 0.0
      %v6228 = vmax.f32 %v6196, 0.0
      %v6229 = vmax.f32 %v6197, 0.0
      %v6230 = vmax.f32 %v6198, 0.0
      %v6231 = vmax.f32 %v6199, 0.0
      %6232 = vst.msk [vmem:[%s278] sm:$0xff] %vm1825, 0.0
      %6233 = vst.msk [vmem:[%s278 + $0x8] sm:$0xff] %vm1825, 0.0
      %6234 = vst.msk [vmem:[%s278 + $0x10] sm:$0x3] %vm2042, 0.0
      %6235 = vst.msk [vmem:[%s278 + $0x18] sm:$0xff] %vm1825, 0.0
      %6236 = vst.msk [vmem:[%s278 + $0x20] sm:$0xff] %vm1825, 0.0
      %6237 = vst.msk [vmem:[%s278 + $0x28] sm:$0x3] %vm2042, 0.0
      %6238 = vst.msk [vmem:[%s278 + $0x30] sm:$0xff] %vm1825, 0.0
      %6239 = vst.msk [vmem:[%s278 + $0x38] sm:$0xff] %vm1825, 0.0
      %6240 = vst.msk [vmem:[%s278 + $0x40] sm:$0x3] %vm2042, 0.0
      %6241 = vst.msk [vmem:[%s278 + $0x48] sm:$0xff] %vm1825, 0.0
      %6242 = vst.msk [vmem:[%s278 + $0x50] sm:$0xff] %vm1825, 0.0
      %6243 = vst.msk [vmem:[%s278 + $0x58] sm:$0x3] %vm2042, 0.0
      %6244 = vst.msk [vmem:[%s278 + $0x60] sm:$0xff] %vm1825, 0.0
      %6245 = vst.msk [vmem:[%s278 + $0x68] sm:$0xff] %vm1825, 0.0
      %6246 = vst.msk [vmem:[%s278 + $0x70] sm:$0x3] %vm2042, 0.0
      %6247 = vst.msk [vmem:[%s278 + $0x78] sm:$0xff] %vm1825, 0.0
      %6248 = vst.msk [vmem:[%s278 + $0x80] sm:$0xff] %vm1825, 0.0
      %6249 = vst.msk [vmem:[%s278 + $0x88] sm:$0x3] %vm2042, 0.0
      %6250 = vst.msk [vmem:[%s278 + $0x90] sm:$0xff] %vm1825, 0.0
      %6251 = vst.msk [vmem:[%s278 + $0x98] sm:$0xff] %vm1825, 0.0
      %6252 = vst.msk [vmem:[%s278 + $0xa0] sm:$0x3] %vm2042, 0.0
      %6253 = vst.msk [vmem:[%s278 + $0xa8] sm:$0xff] %vm1825, 0.0
      %6254 = vst.msk [vmem:[%s278 + $0xb0] sm:$0xff] %vm1825, 0.0
      %6255 = vst.msk [vmem:[%s278 + $0xb8] sm:$0x3] %vm2042, 0.0
      %6256 = vst.msk [vmem:[%s278 + $0xc0] sm:$0xff] %vm1825, 0.0
      %6257 = vst.msk [vmem:[%s278 + $0xc8] sm:$0xff] %vm1825, 0.0
      %6258 = vst.msk [vmem:[%s278 + $0xd0] sm:$0x3] %vm2042, 0.0
      %6259 = vst.msk [vmem:[%s278 + $0xd8] sm:$0xff] %vm1825, 0.0
      %6260 = vst.msk [vmem:[%s278 + $0xe0] sm:$0xff] %vm1825, 0.0
      %6261 = vst.msk [vmem:[%s278 + $0xe8] sm:$0x3] %vm2042, 0.0
      %6262 = vst.msk [vmem:[%s278 + $0xf0] sm:$0xff] %vm1825, 0.0
      %6263 = vst.msk [vmem:[%s278 + $0xf8] sm:$0xff] %vm1825, 0.0
      %6264 = vst.msk [vmem:[%s278 + $0x100] sm:$0x3] %vm2042, 0.0
      %6265 = vst.msk [vmem:[%s278 + $0x108] sm:$0xff] %vm1825, 0.0
      %6266 = vst.msk [vmem:[%s278 + $0x110] sm:$0xff] %vm1825, 0.0
      %6267 = vst.msk [vmem:[%s278 + $0x118] sm:$0x3] %vm2042, 0.0
      %6268 = vst.msk [vmem:[%s278 + $0x120] sm:$0xff] %vm1825, 0.0
      %6269 = vst.msk [vmem:[%s278 + $0x128] sm:$0xff] %vm1825, 0.0
      %6270 = vst.msk [vmem:[%s278 + $0x130] sm:$0x3] %vm2042, 0.0
      %6271 = vst.msk [vmem:[%s278 + $0x138] sm:$0xff] %vm1825, 0.0
      %6272 = vst.msk [vmem:[%s278 + $0x140] sm:$0xff] %vm1825, 0.0
      %6273 = vst.msk [vmem:[%s278 + $0x148] sm:$0x3] %vm2042, 0.0
      %6274 = vst.msk [vmem:[%s278 + $0x150] sm:$0xff] %vm1825, 0.0
      %6275 = vst.msk [vmem:[%s278 + $0x158] sm:$0xff] %vm1825, 0.0
      %6276 = vst.msk [vmem:[%s278 + $0x160] sm:$0x3] %vm2042, 0.0
      %6277 = vst.msk [vmem:[%s278 + $0x168] sm:$0xff] %vm1825, 0.0
      %6278 = vst.msk [vmem:[%s278 + $0x170] sm:$0xff] %vm1825, 0.0
      %6279 = vst.msk [vmem:[%s278 + $0x178] sm:$0x3] %vm2042, 0.0
      %6280 = vst.msk [vmem:[%s278 + $0x180] sm:$0xff] %vm1825, 0.0
      %6281 = vst.msk [vmem:[%s278 + $0x188] sm:$0xff] %vm1825, 0.0
      %6282 = vst.msk [vmem:[%s278 + $0x190] sm:$0x3] %vm2042, 0.0
      %6283 = vst.msk [vmem:[%s278 + $0x198] sm:$0xff] %vm1825, 0.0
      %6284 = vst.msk [vmem:[%s278 + $0x1a0] sm:$0xff] %vm1825, 0.0
      %6285 = vst.msk [vmem:[%s278 + $0x1a8] sm:$0x3] %vm2042, 0.0
      %s6286 = scalar_lea.vmem %s278, 24
      %6287 = vst.msk [vmem:[%s6286 + $0x1] sm:$0xff] %vm1825, %v6200
      %6288 = vst.msk [vmem:[%s6286 + $0x9] sm:$0xff] %vm1825, %v6201
      %6289 = vst.msk [vmem:[%s6286 + $0x19] sm:$0xff] %vm1825, %v6202
      %6290 = vst.msk [vmem:[%s6286 + $0x21] sm:$0xff] %vm1825, %v6203
      %6291 = vst.msk [vmem:[%s6286 + $0x31] sm:$0xff] %vm1825, %v6204
      %6292 = vst.msk [vmem:[%s6286 + $0x39] sm:$0xff] %vm1825, %v6205
      %6293 = vst.msk [vmem:[%s6286 + $0x49] sm:$0xff] %vm1825, %v6206
      %6294 = vst.msk [vmem:[%s6286 + $0x51] sm:$0xff] %vm1825, %v6207
      %6295 = vst.msk [vmem:[%s6286 + $0x61] sm:$0xff] %vm1825, %v6208
      %6296 = vst.msk [vmem:[%s6286 + $0x69] sm:$0xff] %vm1825, %v6209
      %6297 = vst.msk [vmem:[%s6286 + $0x79] sm:$0xff] %vm1825, %v6210
      %6298 = vst.msk [vmem:[%s6286 + $0x81] sm:$0xff] %vm1825, %v6211
      %6299 = vst.msk [vmem:[%s6286 + $0x91] sm:$0xff] %vm1825, %v6212
      %6300 = vst.msk [vmem:[%s6286 + $0x99] sm:$0xff] %vm1825, %v6213
      %6301 = vst.msk [vmem:[%s6286 + $0xa9] sm:$0xff] %vm1825, %v6214
      %6302 = vst.msk [vmem:[%s6286 + $0xb1] sm:$0xff] %vm1825, %v6215
      %6303 = vst.msk [vmem:[%s6286 + $0xc1] sm:$0xff] %vm1825, %v6216
      %6304 = vst.msk [vmem:[%s6286 + $0xc9] sm:$0xff] %vm1825, %v6217
      %6305 = vst.msk [vmem:[%s6286 + $0xd9] sm:$0xff] %vm1825, %v6218
      %6306 = vst.msk [vmem:[%s6286 + $0xe1] sm:$0xff] %vm1825, %v6219
      %6307 = vst.msk [vmem:[%s6286 + $0xf1] sm:$0xff] %vm1825, %v6220
      %6308 = vst.msk [vmem:[%s6286 + $0xf9] sm:$0xff] %vm1825, %v6221
      %6309 = vst.msk [vmem:[%s6286 + $0x109] sm:$0xff] %vm1825, %v6222
      %6310 = vst.msk [vmem:[%s6286 + $0x111] sm:$0xff] %vm1825, %v6223
      %6311 = vst.msk [vmem:[%s6286 + $0x121] sm:$0xff] %vm1825, %v6224
      %6312 = vst.msk [vmem:[%s6286 + $0x129] sm:$0xff] %vm1825, %v6225
      %6313 = vst.msk [vmem:[%s6286 + $0x139] sm:$0xff] %vm1825, %v6226
      %6314 = vst.msk [vmem:[%s6286 + $0x141] sm:$0xff] %vm1825, %v6227
      %6315 = vst.msk [vmem:[%s6286 + $0x151] sm:$0xff] %vm1825, %v6228
      %6316 = vst.msk [vmem:[%s6286 + $0x159] sm:$0xff] %vm1825, %v6229
      %6317 = vst.msk [vmem:[%s6286 + $0x169] sm:$0xff] %vm1825, %v6230
      %6318 = vst.msk [vmem:[%s6286 + $0x171] sm:$0xff] %vm1825, %v6231
      %p6319 = scmp.lt.s32.totalorder %s18, 1
      %s6320 = scalar_select %p6319, %s18, 1
      %s6321 = smul.addr %s6320, 54
      %s6322 = smul.addr %s6321, 8
      %s6323 = scalar_lea.vmem %s7, %s6322
      // Predicated region
      $region49: #{tpu_custom_call.1} parent=47 // pred_check
        %p6324 = pneg %p188
      $region50: #{tpu_custom_call.1} parent=47 // pred_check_branch
        %6326 = sbr.rel (%p6324) target = $region52
      $region51: #{tpu_custom_call.1} parent=47 // pred_region
        _
      $region52: #{tpu_custom_call.1} parent=47 // pred_fallthru
        _
    $region48: #{tpu_custom_call.1} parent=5 // pred_fallthru
      _
    %p6327 = scmp.le.s32.totalorder 2, %s13
    // Predicated region
    $region53: #{tpu_custom_call.1} parent=5 // pred_check
      %p6328 = pneg %p6327
    $region54: #{tpu_custom_call.1} parent=5 // pred_check_branch
      %6330 = sbr.rel (%p6328) target = $region56
    $region55: #{tpu_custom_call.1} parent=5 // pred_region
      %s6331 = ssub.s32 %s13, 2
      // Predicated region
      $region57: #{tpu_custom_call.1} parent=55 // pred_check
        %p6332 = pneg %p194
      $region58: #{tpu_custom_call.1} parent=55 // pred_check_branch
        %6334 = sbr.rel (%p6332) target = $region60
      $region59: #{tpu_custom_call.1} parent=55 // pred_region
        %p6335 = scmp.lt.s32.totalorder %s19, 1
        %s6336 = scalar_select %p6335, %s19, 1
        %s6337 = smul.addr %s6336, 54
        %s6338 = smul.addr %s6337, 8
        %s6339 = scalar_lea.vmem %s7, %s6338
      $region60: #{tpu_custom_call.1} parent=55 // pred_fallthru
        _
    $region56: #{tpu_custom_call.1} parent=5 // pred_fallthru
      _
  $region6: #{tpu_custom_call.1} parent=0 // loop_footer
    %s17 = sadd.s32 1, %s13
  $region7: #{tpu_custom_call.1} parent=0 // loop_footer_branch
    %12 = sbr.rel target = $region3
  $region8: #{tpu_custom_call.1} parent=0 // loop_exit
    _

</llo_original>
